<compile_context>
chip_gen: v6e
topology: v6e:2x2x1
jax: 0.10.0
libtpu: 0.0.40
codegen_flags: <defaults>
</compile_context>

<pallas_src>
import functools
import math

import jax
import jax.numpy as jnp
from jax import lax
from jax.experimental import pallas as pl
from jax.experimental.pallas import tpu as pltpu


_NEG_BIG = -1e30                  # finite "-inf": avoids inf - inf -> NaN in online softmax.
_VMEM_LIMIT = 48 * 1024 * 1024    # fits v7x (64 MiB physical/TC) with headroom.


# --------------------------- QKV projection kernel ---------------------------
def _qkv_proj_kernel(x_ref, wq_ref, wk_ref, wv_ref, bq_ref, bk_ref, bv_ref,
                     q_ref, k_ref, v_ref, *, num_heads, head_dim):
    """One (batch, seq-tile) step: bf16 MXU matmuls with f32 accumulation, results
    written directly in head-major (NH, TS, hd) layout (no XLA transpose later)."""
    x = x_ref[0].astype(jnp.bfloat16)                     # (TS, H)
    q = jnp.dot(x, wq_ref[...], preferred_element_type=jnp.float32) + bq_ref[...]
    k = jnp.dot(x, wk_ref[...], preferred_element_type=jnp.float32) + bk_ref[...]
    v = jnp.dot(x, wv_ref[...], preferred_element_type=jnp.float32) + bv_ref[...]
    for h in range(num_heads):                            # static loop, per-head lane slice
        sl = slice(h * head_dim, (h + 1) * head_dim)
        q_ref[0, h] = q[:, sl].astype(q_ref.dtype)
        k_ref[0, h] = k[:, sl].astype(k_ref.dtype)
        v_ref[0, h] = v[:, sl].astype(v_ref.dtype)


# --------------------------- Flash attention kernel ---------------------------
def _flash_attn_kernel(q_ref, k_ref, v_ref, o_ref, m_sc, l_sc, acc_sc,
                       *, q_tile, kv_tile, causal):
    qi = pl.program_id(1)
    ki = pl.program_id(2)

    @pl.when(ki == 0)
    def _init():
        m_sc[...] = jnp.full_like(m_sc, _NEG_BIG)
        l_sc[...] = jnp.zeros_like(l_sc)
        acc_sc[...] = jnp.zeros_like(acc_sc)

    def _compute(apply_mask):
        q = q_ref[0]                                       # (NH, TQ, hd)  bf16
        k = k_ref[0]                                       # (NH, TKV, hd) bf16
        v = v_ref[0]                                       # (NH, TKV, hd) bf16

        # Batched over heads; contracts the last dims (no explicit transpose).
        s = jnp.einsum("hqd,hkd->hqk", q, k,
                       preferred_element_type=jnp.float32)  # (NH, TQ, TKV) f32

        if apply_mask:
            q_pos = qi * q_tile + lax.broadcasted_iota(jnp.int32, s.shape, 1)
            k_pos = ki * kv_tile + lax.broadcasted_iota(jnp.int32, s.shape, 2)
            s = jnp.where(q_pos >= k_pos, s, _NEG_BIG)

        m_prev = m_sc[...]
        m_new = jnp.maximum(m_prev, jnp.max(s, axis=-1, keepdims=True))
        alpha = jnp.exp(m_prev - m_new)
        p = jnp.exp(s - m_new)
        l_sc[...] = alpha * l_sc[...] + jnp.sum(p, axis=-1, keepdims=True)
        acc_sc[...] = alpha * acc_sc[...] + jnp.einsum(
            "hqk,hkd->hqd", p.astype(v.dtype), v,
            preferred_element_type=jnp.float32)
        m_sc[...] = m_new

    if causal:
        q_lo = qi * q_tile
        q_hi = q_lo + (q_tile - 1)
        k_lo = ki * kv_tile
        k_hi = k_lo + (kv_tile - 1)
        # Fully-above-diagonal tiles: skipped entirely (and their DMAs are elided
        # by the clamped K/V index_map in the wrapper).
        # Straddling tiles: masked path.  Fully-below tiles: unmasked fast path.
        pl.when(jnp.logical_and(k_lo <= q_hi, k_hi > q_lo))(lambda: _compute(True))
        pl.when(k_hi <= q_lo)(lambda: _compute(False))
    else:
        _compute(False)

    @pl.when(ki == pl.num_programs(2) - 1)
    def _finalize():
        # Normalize after the PV matmuls; reciprocal runs on the EUP slot.
        ctx = acc_sc[...] * pl.reciprocal(l_sc[...], approx=True)
        o_ref[0] = ctx.astype(o_ref.dtype)


# --------------------------- Output projection kernel -------------------------
def _out_proj_kernel(ctx_ref, wo_ref, bo_ref, o_ref, *, num_heads, head_dim):
    """Consumes the head-major context directly: out = sum_h ctx[h] @ wo[h*hd:(h+1)*hd, :]."""
    acc = jnp.zeros(o_ref.shape[1:], jnp.float32)          # (TS, H)
    for h in range(num_heads):
        acc = acc + jnp.dot(ctx_ref[0, h],
                            wo_ref[h * head_dim:(h + 1) * head_dim, :],
                            preferred_element_type=jnp.float32)
    o_ref[0] = (acc + bo_ref[...]).astype(o_ref.dtype)


# ---------------------------------- Wrapper -----------------------------------
def _pick_tile(dim, target):
    if dim <= target:
        return dim
    for t in range(target, 0, -1):
        if dim % t == 0 and t % 8 == 0:
            return t
    return dim


def memory_efficient_attention(x, params, num_heads, causal=False, *,
                               q_tile=None, kv_tile=None, proj_tile=None):
    """x: [B, S, H].  params: pre-transposed weights [H, H] and biases [1, H] (f32)."""
    B, S, H = x.shape
    assert H % num_heads == 0, "hidden_dim must be divisible by num_heads"
    hd = H // num_heads

    proj_tile = proj_tile or _pick_tile(S, 256)
    q_tile = q_tile or _pick_tile(S, 256)
    kv_tile = kv_tile or _pick_tile(S, 256)
    assert S % proj_tile == 0 and S % q_tile == 0 and S % kv_tile == 0

    # Fold the 1/sqrt(head_dim) scale into the q weights/bias; cast weights to bf16
    # once here (bf16 MXU path, half the weight HBM/VMEM traffic).
    scale = 1.0 / math.sqrt(hd)
    wq = (params["wq"] * scale).astype(jnp.bfloat16)
    wk = params["wk"].astype(jnp.bfloat16)
    wv = params["wv"].astype(jnp.bfloat16)
    wo = params["wo"].astype(jnp.bfloat16)
    bq = params["bq"] * scale
    bk, bv, bo = params["bk"], params["bv"], params["bo"]

    w_spec = pl.BlockSpec((H, H), lambda b, s: (0, 0))
    b_spec = pl.BlockSpec((1, H), lambda b, s: (0, 0))
    xs_spec = pl.BlockSpec((1, proj_tile, H), lambda b, s: (b, s, 0))
    head_spec = pl.BlockSpec((1, num_heads, proj_tile, hd), lambda b, s: (b, 0, s, 0))

    # ---- 1) fused Q/K/V projection, head-major bf16 output --------------------
    q, k, v = pl.pallas_call(
        functools.partial(_qkv_proj_kernel, num_heads=num_heads, head_dim=hd),
        out_shape=tuple(jax.ShapeDtypeStruct((B, num_heads, S, hd), jnp.bfloat16)
                        for _ in range(3)),
        grid_spec=pltpu.PrefetchScalarGridSpec(
            num_scalar_prefetch=0,
            grid=(B, S // proj_tile),
            in_specs=[xs_spec, w_spec, w_spec, w_spec, b_spec, b_spec, b_spec],
            out_specs=(head_spec, head_spec, head_spec),
        ),
        compiler_params=pltpu.CompilerParams(
            dimension_semantics=("parallel", "parallel"),
            vmem_limit_bytes=_VMEM_LIMIT),
    )(x, wq, wk, wv, bq, bk, bv)

    # ---- 2) flash attention (all heads batched per grid step) -----------------
    if causal:
        def kv_block_index(qi, ki):
            # Clamp so fully-masked KV steps repeat the previous block index:
            # the pipeliner then elides their DMAs (~2x K/V traffic saving).
            last = lax.div((qi + 1) * q_tile - 1, jnp.int32(kv_tile))
            return jnp.minimum(ki, last)
    else:
        def kv_block_index(qi, ki):
            return ki

    q_spec = pl.BlockSpec((1, num_heads, q_tile, hd), lambda b, qi, ki: (b, 0, qi, 0))
    kv_spec = pl.BlockSpec((1, num_heads, kv_tile, hd),
                           lambda b, qi, ki: (b, 0, kv_block_index(qi, ki), 0))

    ctx = pl.pallas_call(
        functools.partial(_flash_attn_kernel,
                          q_tile=q_tile, kv_tile=kv_tile, causal=causal),
        out_shape=jax.ShapeDtypeStruct((B, num_heads, S, hd), jnp.bfloat16),
        grid_spec=pltpu.PrefetchScalarGridSpec(
            num_scalar_prefetch=0,
            grid=(B, S // q_tile, S // kv_tile),
            in_specs=[q_spec, kv_spec, kv_spec],
            out_specs=q_spec,
            scratch_shapes=[
                pltpu.VMEM((num_heads, q_tile, 1), jnp.float32),    # running max
                pltpu.VMEM((num_heads, q_tile, 1), jnp.float32),    # running denominator
                pltpu.VMEM((num_heads, q_tile, hd), jnp.float32),   # output accumulator
            ],
        ),
        compiler_params=pltpu.CompilerParams(
            dimension_semantics=("parallel", "parallel", "arbitrary"),
            vmem_limit_bytes=_VMEM_LIMIT),
    )(q, k, v)

    # ---- 3) output projection (reads head-major ctx directly) -----------------
    out = pl.pallas_call(
        functools.partial(_out_proj_kernel, num_heads=num_heads, head_dim=hd),
        out_shape=jax.ShapeDtypeStruct((B, S, H), x.dtype),
        grid_spec=pltpu.PrefetchScalarGridSpec(
            num_scalar_prefetch=0,
            grid=(B, S // proj_tile),
            in_specs=[head_spec, w_spec, b_spec],
            out_specs=xs_spec,
        ),
        compiler_params=pltpu.CompilerParams(
            dimension_semantics=("parallel", "parallel"),
            vmem_limit_bytes=_VMEM_LIMIT),
    )(ctx, wo, bo)
    return out


# ----------------------------- Pure-JAX reference ------------------------------
def reference_attention(x, params, num_heads, causal=False):
    B, S, H = x.shape
    hd = H // num_heads
    q = x @ params["wq"] + params["bq"]
    k = x @ params["wk"] + params["bk"]
    v = x @ params["wv"] + params["bv"]

    def to_heads(t):
        return t.reshape(B, S, num_heads, hd).transpose(0, 2, 1, 3)

    qh, kh, vh = to_heads(q) / math.sqrt(hd), to_heads(k), to_heads(v)
    scores = jnp.einsum("bnqd,bnkd->bnqk", qh, kh)
    if causal:
        mask = jnp.tril(jnp.ones((S, S), dtype=bool))
        scores = jnp.where(mask[None, None], scores, -jnp.inf)
    p = jax.nn.softmax(scores, axis=-1)
    ctx = jnp.einsum("bnqk,bnkd->bnqd", p, vh)
    ctx = ctx.transpose(0, 2, 1, 3).reshape(B, S, H)
    return ctx @ params["wo"] + params["bo"]


# ----------------------------- Deterministic init ------------------------------
def xavier_uniform(key, out_dim, in_dim):
    bound = math.sqrt(6.0 / (in_dim + out_dim))
    # PyTorch stores Linear weight as [out, in]; transpose so y = x @ W + b.
    w_pt = jax.random.uniform(key, (out_dim, in_dim), jnp.float32, -bound, bound)
    return w_pt.T


def init_params(key, hidden_dim):
    ks = jax.random.split(key, 4)
    zeros_b = jnp.zeros((1, hidden_dim), jnp.float32)
    return {
        "wq": xavier_uniform(ks[0], hidden_dim, hidden_dim),
        "wk": xavier_uniform(ks[1], hidden_dim, hidden_dim),
        "wv": xavier_uniform(ks[2], hidden_dim, hidden_dim),
        "wo": xavier_uniform(ks[3], hidden_dim, hidden_dim),
        "bq": zeros_b, "bk": zeros_b, "bv": zeros_b, "bo": zeros_b,
    }


# ------------------------------------ Main -------------------------------------
if __name__ == "__main__":
    B, S, H, NH = 2, 16, 32, 4

    key = jax.random.PRNGKey(0)
    k_x, k_p = jax.random.split(key)
    x = jax.random.normal(k_x, (B, S, H), jnp.float32)
    params = init_params(k_p, H)

    attn = jax.jit(
        memory_efficient_attention,
        static_argnames=("num_heads", "causal", "q_tile", "kv_tile", "proj_tile"))

    # Tolerance is loosened vs. a pure-f32 run because the kernels use the bf16
    # MXU path (f32 accumulation); error is ~1e-2 relative at these magnitudes.
    TOL = dict(rtol=2e-2, atol=2e-2)

    # Small tiles so the multi-step online-softmax path is exercised.
    out = jax.block_until_ready(
        attn(x, params, num_heads=NH, causal=False, q_tile=8, kv_tile=8))
    ref = reference_attention(x, params, NH, causal=False)
    assert out.shape == (B, S, H)
    assert jnp.allclose(out, ref, **TOL), "mismatch vs reference"

    # Causal path (exercises mask, fast-path tiles, and KV DMA elision).
    out_c = jax.block_until_ready(
        attn(x, params, num_heads=NH, causal=True, q_tile=8, kv_tile=8))
    ref_c = reference_attention(x, params, NH, causal=True)
    assert jnp.allclose(out_c, ref_c, **TOL), "causal mismatch"

    print("KERNEL_OK")
</pallas_src>

<mosaic_0001>
module attributes {stable_mosaic.version = 11 : i64} {
  func.func @_out_proj_kernel(%arg0: i32, %arg1: i32, %arg2: memref<1x4x16x8xbf16, #tpu.memory_space<vmem>>, %arg3: memref<32x32xbf16, #tpu.memory_space<vmem>>, %arg4: memref<1x32xf32, #tpu.memory_space<vmem>>, %arg5: memref<1x16x32xf32, #tpu.memory_space<vmem>>) attributes {dimension_semantics = [#tpu.dimension_semantics<parallel>, #tpu.dimension_semantics<parallel>], iteration_bounds = array<i64: 2, 1>, scalar_prefetch = 0 : i64, scratch_operands = 0 : i64, tpu.core_type = #tpu.core_type<tc>, window_params = [{transform_indices = @transform_0, window_bounds = array<i64: 1, 4, 16, 8>}, {pipeline_mode = #tpu.pipeline_mode<synchronous>, transform_indices = @transform_1, window_bounds = array<i64: 32, 32>}, {pipeline_mode = #tpu.pipeline_mode<synchronous>, transform_indices = @transform_2, window_bounds = array<i64: 1, 32>}, {transform_indices = @transform_3, window_bounds = array<i64: 1, 16, 32>}]} {
    %cst = arith.constant 0.000000e+00 : f32
    %0 = vector.broadcast %cst : f32 to vector<16x32xf32>
    %c0 = arith.constant 0 : index
    %c0_0 = arith.constant 0 : index
    %c0_1 = arith.constant 0 : index
    %c0_2 = arith.constant 0 : index
    %1 = vector.load %arg2[%c0, %c0_0, %c0_1, %c0_2] : memref<1x4x16x8xbf16, #tpu.memory_space<vmem>>, vector<1x1x16x8xbf16>
    %2 = vector.shape_cast %1 : vector<1x1x16x8xbf16> to vector<16x8xbf16>
    %c0_3 = arith.constant 0 : index
    %c0_4 = arith.constant 0 : index
    %3 = vector.load %arg3[%c0_3, %c0_4] : memref<32x32xbf16, #tpu.memory_space<vmem>>, vector<8x32xbf16>
    %cst_5 = arith.constant dense<0.000000e+00> : vector<16x32xf32>
    %4 = tpu.matmul %2, %3, %cst_5 {dimension_numbers = #tpu.dot_dimension_numbers<[1], [0], [0], [1], [0, 0, 1, 1], [], []>} : vector<16x8xbf16>, vector<8x32xbf16>, vector<16x32xf32> -> vector<16x32xf32>
    %5 = arith.addf %0, %4 : vector<16x32xf32>
    %c0_6 = arith.constant 0 : index
    %c1 = arith.constant 1 : index
    %c0_7 = arith.constant 0 : index
    %c0_8 = arith.constant 0 : index
    %6 = vector.load %arg2[%c0_6, %c1, %c0_7, %c0_8] : memref<1x4x16x8xbf16, #tpu.memory_space<vmem>>, vector<1x1x16x8xbf16>
    %7 = vector.shape_cast %6 : vector<1x1x16x8xbf16> to vector<16x8xbf16>
    %c8 = arith.constant 8 : index
    %c0_9 = arith.constant 0 : index
    %8 = vector.load %arg3[%c8, %c0_9] : memref<32x32xbf16, #tpu.memory_space<vmem>>, vector<8x32xbf16>
    %cst_10 = arith.constant dense<0.000000e+00> : vector<16x32xf32>
    %9 = tpu.matmul %7, %8, %cst_10 {dimension_numbers = #tpu.dot_dimension_numbers<[1], [0], [0], [1], [0, 0, 1, 1], [], []>} : vector<16x8xbf16>, vector<8x32xbf16>, vector<16x32xf32> -> vector<16x32xf32>
    %10 = arith.addf %5, %9 : vector<16x32xf32>
    %c0_11 = arith.constant 0 : index
    %c2 = arith.constant 2 : index
    %c0_12 = arith.constant 0 : index
    %c0_13 = arith.constant 0 : index
    %11 = vector.load %arg2[%c0_11, %c2, %c0_12, %c0_13] : memref<1x4x16x8xbf16, #tpu.memory_space<vmem>>, vector<1x1x16x8xbf16>
    %12 = vector.shape_cast %11 : vector<1x1x16x8xbf16> to vector<16x8xbf16>
    %c16 = arith.constant 16 : index
    %c0_14 = arith.constant 0 : index
    %13 = vector.load %arg3[%c16, %c0_14] : memref<32x32xbf16, #tpu.memory_space<vmem>>, vector<8x32xbf16>
    %cst_15 = arith.constant dense<0.000000e+00> : vector<16x32xf32>
    %14 = tpu.matmul %12, %13, %cst_15 {dimension_numbers = #tpu.dot_dimension_numbers<[1], [0], [0], [1], [0, 0, 1, 1], [], []>} : vector<16x8xbf16>, vector<8x32xbf16>, vector<16x32xf32> -> vector<16x32xf32>
    %15 = arith.addf %10, %14 : vector<16x32xf32>
    %c0_16 = arith.constant 0 : index
    %c3 = arith.constant 3 : index
    %c0_17 = arith.constant 0 : index
    %c0_18 = arith.constant 0 : index
    %16 = vector.load %arg2[%c0_16, %c3, %c0_17, %c0_18] : memref<1x4x16x8xbf16, #tpu.memory_space<vmem>>, vector<1x1x16x8xbf16>
    %17 = vector.shape_cast %16 : vector<1x1x16x8xbf16> to vector<16x8xbf16>
    %c24 = arith.constant 24 : index
    %c0_19 = arith.constant 0 : index
    %18 = vector.load %arg3[%c24, %c0_19] : memref<32x32xbf16, #tpu.memory_space<vmem>>, vector<8x32xbf16>
    %cst_20 = arith.constant dense<0.000000e+00> : vector<16x32xf32>
    %19 = tpu.matmul %17, %18, %cst_20 {dimension_numbers = #tpu.dot_dimension_numbers<[1], [0], [0], [1], [0, 0, 1, 1], [], []>} : vector<16x8xbf16>, vector<8x32xbf16>, vector<16x32xf32> -> vector<16x32xf32>
    %20 = arith.addf %15, %19 : vector<16x32xf32>
    %c0_21 = arith.constant 0 : index
    %c0_22 = arith.constant 0 : index
    %21 = vector.load %arg4[%c0_21, %c0_22] : memref<1x32xf32, #tpu.memory_space<vmem>>, vector<1x32xf32>
    %22 = vector.broadcast %21 : vector<1x32xf32> to vector<16x32xf32>
    %23 = arith.addf %20, %22 : vector<16x32xf32>
    %c0_23 = arith.constant 0 : index
    %c0_24 = arith.constant 0 : index
    %c0_25 = arith.constant 0 : index
    %24 = vector.load %arg5[%c0_23, %c0_24, %c0_25] : memref<1x16x32xf32, #tpu.memory_space<vmem>>, vector<1x16x32xf32>
    %25 = vector.shape_cast %24 : vector<1x16x32xf32> to vector<16x32xf32>
    %26 = vector.shape_cast %23 : vector<16x32xf32> to vector<1x16x32xf32>
    tpu.vector_store %arg5[%c0_23, %c0_24, %c0_25], %26 {strides = array<i32>} : memref<1x16x32xf32, #tpu.memory_space<vmem>>, vector<1x16x32xf32>,
    return
  }
  func.func @transform_0(%arg0: i32, %arg1: i32) -> (i32, i32, i32, i32) {
    %c0_i32 = arith.constant 0 : i32
    %c0_i32_0 = arith.constant 0 : i32
    %c0_i32_1 = arith.constant 0 : i32
    return %arg0, %c0_i32, %arg1, %c0_i32_0 : i32, i32, i32, i32
  }
  func.func @transform_1(%arg0: i32, %arg1: i32) -> (i32, i32) {
    %c0_i32 = arith.constant 0 : i32
    %c0_i32_0 = arith.constant 0 : i32
    %c0_i32_1 = arith.constant 0 : i32
    return %c0_i32, %c0_i32_0 : i32, i32
  }
  func.func @transform_2(%arg0: i32, %arg1: i32) -> (i32, i32) {
    %c0_i32 = arith.constant 0 : i32
    %c0_i32_0 = arith.constant 0 : i32
    %c0_i32_1 = arith.constant 0 : i32
    return %c0_i32, %c0_i32_0 : i32, i32
  }
  func.func @transform_3(%arg0: i32, %arg1: i32) -> (i32, i32, i32) {
    %c0_i32 = arith.constant 0 : i32
    %c0_i32_0 = arith.constant 0 : i32
    return %arg0, %arg1, %c0_i32 : i32, i32, i32
  }
}

module attributes {stable_mosaic.version = 11 : i64} {
  func.func @_flash_attn_kernel(%arg0: i32, %arg1: i32, %arg2: i32, %arg3: memref<1x4x8x8xbf16, #tpu.memory_space<vmem>>, %arg4: memref<1x4x8x8xbf16, #tpu.memory_space<vmem>>, %arg5: memref<1x4x8x8xbf16, #tpu.memory_space<vmem>>, %arg6: memref<1x4x8x8xbf16, #tpu.memory_space<vmem>>, %arg7: memref<4x8x1xf32, #tpu.memory_space<vmem>>, %arg8: memref<4x8x1xf32, #tpu.memory_space<vmem>>, %arg9: memref<4x8x8xf32, #tpu.memory_space<vmem>>) attributes {dimension_semantics = [#tpu.dimension_semantics<parallel>, #tpu.dimension_semantics<parallel>, #tpu.dimension_semantics<arbitrary>], iteration_bounds = array<i64: 2, 2, 2>, scalar_prefetch = 0 : i64, scratch_operands = 3 : i64, tpu.core_type = #tpu.core_type<tc>, window_params = [{transform_indices = @transform_0, window_bounds = array<i64: 1, 4, 8, 8>}, {transform_indices = @transform_1, window_bounds = array<i64: 1, 4, 8, 8>}, {transform_indices = @transform_2, window_bounds = array<i64: 1, 4, 8, 8>}, {transform_indices = @transform_3, window_bounds = array<i64: 1, 4, 8, 8>}]} {
    %c0_i32 = arith.constant 0 : i32
    %0 = arith.cmpi eq, %arg2, %c0_i32 : i32
    %1 = arith.extui %0 : i1 to i32
    %c0_i32_0 = arith.constant 0 : i32
    %2 = arith.cmpi ne, %1, %c0_i32_0 : i32
    scf.if %2 {
      %cst_34 = arith.constant -1.000000e+30 : f32
      %36 = vector.broadcast %cst_34 : f32 to vector<4x8x1xf32>
      %c0_35 = arith.constant 0 : index
      %c0_36 = arith.constant 0 : index
      %c0_37 = arith.constant 0 : index
      %37 = vector.load %arg7[%c0_35, %c0_36, %c0_37] : memref<4x8x1xf32, #tpu.memory_space<vmem>>, vector<4x8x1xf32>
      tpu.vector_store %arg7[%c0_35, %c0_36, %c0_37], %36 {strides = array<i32>} : memref<4x8x1xf32, #tpu.memory_space<vmem>>, vector<4x8x1xf32>,
      %cst_38 = arith.constant 0.000000e+00 : f32
      %38 = vector.broadcast %cst_38 : f32 to vector<4x8x1xf32>
      %c0_39 = arith.constant 0 : index
      %c0_40 = arith.constant 0 : index
      %c0_41 = arith.constant 0 : index
      %39 = vector.load %arg8[%c0_39, %c0_40, %c0_41] : memref<4x8x1xf32, #tpu.memory_space<vmem>>, vector<4x8x1xf32>
      tpu.vector_store %arg8[%c0_39, %c0_40, %c0_41], %38 {strides = array<i32>} : memref<4x8x1xf32, #tpu.memory_space<vmem>>, vector<4x8x1xf32>,
      %cst_42 = arith.constant 0.000000e+00 : f32
      %40 = vector.broadcast %cst_42 : f32 to vector<4x8x8xf32>
      %c0_43 = arith.constant 0 : index
      %c0_44 = arith.constant 0 : index
      %c0_45 = arith.constant 0 : index
      %41 = vector.load %arg9[%c0_43, %c0_44, %c0_45] : memref<4x8x8xf32, #tpu.memory_space<vmem>>, vector<4x8x8xf32>
      tpu.vector_store %arg9[%c0_43, %c0_44, %c0_45], %40 {strides = array<i32>} : memref<4x8x8xf32, #tpu.memory_space<vmem>>, vector<4x8x8xf32>,
    } else {
    }
    %c0 = arith.constant 0 : index
    %c0_1 = arith.constant 0 : index
    %c0_2 = arith.constant 0 : index
    %c0_3 = arith.constant 0 : index
    %3 = vector.load %arg3[%c0, %c0_1, %c0_2, %c0_3] : memref<1x4x8x8xbf16, #tpu.memory_space<vmem>>, vector<1x4x8x8xbf16>
    %4 = vector.shape_cast %3 : vector<1x4x8x8xbf16> to vector<4x8x8xbf16>
    %c0_4 = arith.constant 0 : index
    %c0_5 = arith.constant 0 : index
    %c0_6 = arith.constant 0 : index
    %c0_7 = arith.constant 0 : index
    %5 = vector.load %arg4[%c0_4, %c0_5, %c0_6, %c0_7] : memref<1x4x8x8xbf16, #tpu.memory_space<vmem>>, vector<1x4x8x8xbf16>
    %6 = vector.shape_cast %5 : vector<1x4x8x8xbf16> to vector<4x8x8xbf16>
    %c0_8 = arith.constant 0 : index
    %c0_9 = arith.constant 0 : index
    %c0_10 = arith.constant 0 : index
    %c0_11 = arith.constant 0 : index
    %7 = vector.load %arg5[%c0_8, %c0_9, %c0_10, %c0_11] : memref<1x4x8x8xbf16, #tpu.memory_space<vmem>>, vector<1x4x8x8xbf16>
    %8 = vector.shape_cast %7 : vector<1x4x8x8xbf16> to vector<4x8x8xbf16>
    "tpu.trace_start"() <{level = 10 : i32, message = "hqd,hkd->hqk"}> : () -> ()
    %cst = arith.constant dense<0.000000e+00> : vector<4x8x8xf32>
    %9 = tpu.matmul %4, %6, %cst {dimension_numbers = #tpu.dot_dimension_numbers<[2], [2], [1], [1], [0, 0, 0, 1, 1, 1], [0], [0]>} : vector<4x8x8xbf16>, vector<4x8x8xbf16>, vector<4x8x8xf32> -> vector<4x8x8xf32>
    "tpu.trace_stop"() : () -> ()
    %c0_12 = arith.constant 0 : index
    %c0_13 = arith.constant 0 : index
    %c0_14 = arith.constant 0 : index
    %10 = vector.load %arg7[%c0_12, %c0_13, %c0_14] : memref<4x8x1xf32, #tpu.memory_space<vmem>>, vector<4x8x1xf32>
    %cst_15 = arith.constant dense<0xFF800000> : vector<4x8xf32>
    %11 = vector.multi_reduction <maximumf>, %9, %cst_15 [2] : vector<4x8x8xf32> to vector<4x8xf32>
    %12 = vector.shape_cast %11 : vector<4x8xf32> to vector<4x8x1xf32>
    %13 = arith.maximumf %10, %12 : vector<4x8x1xf32>
    %14 = arith.subf %10, %13 : vector<4x8x1xf32>
    %15 = math.exp %14 : vector<4x8x1xf32>
    %16 = vector.broadcast %13 : vector<4x8x1xf32> to vector<4x8x8xf32>
    %17 = arith.subf %9, %16 : vector<4x8x8xf32>
    %18 = math.exp %17 : vector<4x8x8xf32>
    %c0_16 = arith.constant 0 : index
    %c0_17 = arith.constant 0 : index
    %c0_18 = arith.constant 0 : index
    %19 = vector.load %arg8[%c0_16, %c0_17, %c0_18] : memref<4x8x1xf32, #tpu.memory_space<vmem>>, vector<4x8x1xf32>
    %20 = arith.mulf %15, %19 : vector<4x8x1xf32>
    %cst_19 = arith.constant dense<0.000000e+00> : vector<4x8xf32>
    %21 = vector.multi_reduction <add>, %18, %cst_19 [2] : vector<4x8x8xf32> to vector<4x8xf32>
    %22 = vector.shape_cast %21 : vector<4x8xf32> to vector<4x8x1xf32>
    %23 = arith.addf %20, %22 : vector<4x8x1xf32>
    %c0_20 = arith.constant 0 : index
    %c0_21 = arith.constant 0 : index
    %c0_22 = arith.constant 0 : index
    %24 = vector.load %arg8[%c0_20, %c0_21, %c0_22] : memref<4x8x1xf32, #tpu.memory_space<vmem>>, vector<4x8x1xf32>
    tpu.vector_store %arg8[%c0_20, %c0_21, %c0_22], %23 {strides = array<i32>} : memref<4x8x1xf32, #tpu.memory_space<vmem>>, vector<4x8x1xf32>,
    %c0_23 = arith.constant 0 : index
    %c0_24 = arith.constant 0 : index
    %c0_25 = arith.constant 0 : index
    %25 = vector.load %arg9[%c0_23, %c0_24, %c0_25] : memref<4x8x8xf32, #tpu.memory_space<vmem>>, vector<4x8x8xf32>
    %26 = vector.broadcast %15 : vector<4x8x1xf32> to vector<4x8x8xf32>
    %27 = arith.mulf %26, %25 : vector<4x8x8xf32>
    %28 = arith.truncf %18 : vector<4x8x8xf32> to vector<4x8x8xbf16>
    "tpu.trace_start"() <{level = 10 : i32, message = "hqk,hkd->hqd"}> : () -> ()
    %cst_26 = arith.constant dense<0.000000e+00> : vector<4x8x8xf32>
    %29 = tpu.matmul %28, %8, %cst_26 {dimension_numbers = #tpu.dot_dimension_numbers<[2], [1], [1], [2], [0, 0, 0, 1, 1, 2], [0], [0]>} : vector<4x8x8xbf16>, vector<4x8x8xbf16>, vector<4x8x8xf32> -> vector<4x8x8xf32>
    "tpu.trace_stop"() : () -> ()
    %30 = arith.addf %27, %29 : vector<4x8x8xf32>
    %c0_27 = arith.constant 0 : index
    %c0_28 = arith.constant 0 : index
    %c0_29 = arith.constant 0 : index
    %31 = vector.load %arg9[%c0_27, %c0_28, %c0_29] : memref<4x8x8xf32, #tpu.memory_space<vmem>>, vector<4x8x8xf32>
    tpu.vector_store %arg9[%c0_27, %c0_28, %c0_29], %30 {strides = array<i32>} : memref<4x8x8xf32, #tpu.memory_space<vmem>>, vector<4x8x8xf32>,
    %c0_30 = arith.constant 0 : index
    %c0_31 = arith.constant 0 : index
    %c0_32 = arith.constant 0 : index
    %32 = vector.load %arg7[%c0_30, %c0_31, %c0_32] : memref<4x8x1xf32, #tpu.memory_space<vmem>>, vector<4x8x1xf32>
    tpu.vector_store %arg7[%c0_30, %c0_31, %c0_32], %13 {strides = array<i32>} : memref<4x8x1xf32, #tpu.memory_space<vmem>>, vector<4x8x1xf32>,
    %c1_i32 = arith.constant 1 : i32
    %33 = arith.cmpi eq, %arg2, %c1_i32 : i32
    %34 = arith.extui %33 : i1 to i32
    %c0_i32_33 = arith.constant 0 : i32
    %35 = arith.cmpi ne, %34, %c0_i32_33 : i32
    scf.if %35 {
      %c0_34 = arith.constant 0 : index
      %c0_35 = arith.constant 0 : index
      %c0_36 = arith.constant 0 : index
      %36 = vector.load %arg9[%c0_34, %c0_35, %c0_36] : memref<4x8x8xf32, #tpu.memory_space<vmem>>, vector<4x8x8xf32>
      %c0_37 = arith.constant 0 : index
      %c0_38 = arith.constant 0 : index
      %c0_39 = arith.constant 0 : index
      %37 = vector.load %arg8[%c0_37, %c0_38, %c0_39] : memref<4x8x1xf32, #tpu.memory_space<vmem>>, vector<4x8x1xf32>
      %38 = tpu.reciprocal %37 {approx = true} : vector<4x8x1xf32> -> vector<4x8x1xf32>
      %39 = vector.broadcast %38 : vector<4x8x1xf32> to vector<4x8x8xf32>
      %40 = arith.mulf %36, %39 : vector<4x8x8xf32>
      %41 = arith.truncf %40 : vector<4x8x8xf32> to vector<4x8x8xbf16>
      %c0_40 = arith.constant 0 : index
      %c0_41 = arith.constant 0 : index
      %c0_42 = arith.constant 0 : index
      %c0_43 = arith.constant 0 : index
      %42 = vector.load %arg6[%c0_40, %c0_41, %c0_42, %c0_43] : memref<1x4x8x8xbf16, #tpu.memory_space<vmem>>, vector<1x4x8x8xbf16>
      %43 = vector.shape_cast %42 : vector<1x4x8x8xbf16> to vector<4x8x8xbf16>
      %44 = vector.shape_cast %41 : vector<4x8x8xbf16> to vector<1x4x8x8xbf16>
      tpu.vector_store %arg6[%c0_40, %c0_41, %c0_42, %c0_43], %44 {strides = array<i32>} : memref<1x4x8x8xbf16, #tpu.memory_space<vmem>>, vector<1x4x8x8xbf16>,
    } else {
    }
    return
  }
  func.func @transform_0(%arg0: i32, %arg1: i32, %arg2: i32) -> (i32, i32, i32, i32) {
    %c0_i32 = arith.constant 0 : i32
    %c0_i32_0 = arith.constant 0 : i32
    %c0_i32_1 = arith.constant 0 : i32
    return %arg0, %c0_i32, %arg1, %c0_i32_0 : i32, i32, i32, i32
  }
  func.func @transform_1(%arg0: i32, %arg1: i32, %arg2: i32) -> (i32, i32, i32, i32) {
    %c0_i32 = arith.constant 0 : i32
    %c0_i32_0 = arith.constant 0 : i32
    %c0_i32_1 = arith.constant 0 : i32
    return %arg0, %c0_i32, %arg2, %c0_i32_0 : i32, i32, i32, i32
  }
  func.func @transform_2(%arg0: i32, %arg1: i32, %arg2: i32) -> (i32, i32, i32, i32) {
    %c0_i32 = arith.constant 0 : i32
    %c0_i32_0 = arith.constant 0 : i32
    %c0_i32_1 = arith.constant 0 : i32
    return %arg0, %c0_i32, %arg2, %c0_i32_0 : i32, i32, i32, i32
  }
  func.func @transform_3(%arg0: i32, %arg1: i32, %arg2: i32) -> (i32, i32, i32, i32) {
    %c0_i32 = arith.constant 0 : i32
    %c0_i32_0 = arith.constant 0 : i32
    %c0_i32_1 = arith.constant 0 : i32
    return %arg0, %c0_i32, %arg1, %c0_i32_0 : i32, i32, i32, i32
  }
}

module attributes {stable_mosaic.version = 11 : i64} {
  func.func @_qkv_proj_kernel(%arg0: i32, %arg1: i32, %arg2: memref<1x16x32xf32, #tpu.memory_space<vmem>>, %arg3: memref<32x32xbf16, #tpu.memory_space<vmem>>, %arg4: memref<32x32xbf16, #tpu.memory_space<vmem>>, %arg5: memref<32x32xbf16, #tpu.memory_space<vmem>>, %arg6: memref<1x32xf32, #tpu.memory_space<vmem>>, %arg7: memref<1x32xf32, #tpu.memory_space<vmem>>, %arg8: memref<1x32xf32, #tpu.memory_space<vmem>>, %arg9: memref<1x4x16x8xbf16, #tpu.memory_space<vmem>>, %arg10: memref<1x4x16x8xbf16, #tpu.memory_space<vmem>>, %arg11: memref<1x4x16x8xbf16, #tpu.memory_space<vmem>>) attributes {dimension_semantics = [#tpu.dimension_semantics<parallel>, #tpu.dimension_semantics<parallel>], iteration_bounds = array<i64: 2, 1>, scalar_prefetch = 0 : i64, scratch_operands = 0 : i64, tpu.core_type = #tpu.core_type<tc>, window_params = [{transform_indices = @transform_0, window_bounds = array<i64: 1, 16, 32>}, {pipeline_mode = #tpu.pipeline_mode<synchronous>, transform_indices = @transform_1, window_bounds = array<i64: 32, 32>}, {pipeline_mode = #tpu.pipeline_mode<synchronous>, transform_indices = @transform_2, window_bounds = array<i64: 32, 32>}, {pipeline_mode = #tpu.pipeline_mode<synchronous>, transform_indices = @transform_3, window_bounds = array<i64: 32, 32>}, {pipeline_mode = #tpu.pipeline_mode<synchronous>, transform_indices = @transform_4, window_bounds = array<i64: 1, 32>}, {pipeline_mode = #tpu.pipeline_mode<synchronous>, transform_indices = @transform_5, window_bounds = array<i64: 1, 32>}, {pipeline_mode = #tpu.pipeline_mode<synchronous>, transform_indices = @transform_6, window_bounds = array<i64: 1, 32>}, {transform_indices = @transform_7, window_bounds = array<i64: 1, 4, 16, 8>}, {transform_indices = @transform_8, window_bounds = array<i64: 1, 4, 16, 8>}, {transform_indices = @transform_9, window_bounds = array<i64: 1, 4, 16, 8>}]} {
    %c0 = arith.constant 0 : index
    %c0_0 = arith.constant 0 : index
    %c0_1 = arith.constant 0 : index
    %0 = vector.load %arg2[%c0, %c0_0, %c0_1] : memref<1x16x32xf32, #tpu.memory_space<vmem>>, vector<1x16x32xf32>
    %1 = vector.shape_cast %0 : vector<1x16x32xf32> to vector<16x32xf32>
    %2 = arith.truncf %1 : vector<16x32xf32> to vector<16x32xbf16>
    %c0_2 = arith.constant 0 : index
    %c0_3 = arith.constant 0 : index
    %3 = vector.load %arg3[%c0_2, %c0_3] : memref<32x32xbf16, #tpu.memory_space<vmem>>, vector<32x32xbf16>
    %cst = arith.constant dense<0.000000e+00> : vector<16x32xf32>
    %4 = tpu.matmul %2, %3, %cst {dimension_numbers = #tpu.dot_dimension_numbers<[1], [0], [0], [1], [0, 0, 1, 1], [], []>} : vector<16x32xbf16>, vector<32x32xbf16>, vector<16x32xf32> -> vector<16x32xf32>
    %c0_4 = arith.constant 0 : index
    %c0_5 = arith.constant 0 : index
    %5 = vector.load %arg6[%c0_4, %c0_5] : memref<1x32xf32, #tpu.memory_space<vmem>>, vector<1x32xf32>
    %6 = vector.broadcast %5 : vector<1x32xf32> to vector<16x32xf32>
    %7 = arith.addf %4, %6 : vector<16x32xf32>
    %c0_6 = arith.constant 0 : index
    %c0_7 = arith.constant 0 : index
    %8 = vector.load %arg4[%c0_6, %c0_7] : memref<32x32xbf16, #tpu.memory_space<vmem>>, vector<32x32xbf16>
    %cst_8 = arith.constant dense<0.000000e+00> : vector<16x32xf32>
    %9 = tpu.matmul %2, %8, %cst_8 {dimension_numbers = #tpu.dot_dimension_numbers<[1], [0], [0], [1], [0, 0, 1, 1], [], []>} : vector<16x32xbf16>, vector<32x32xbf16>, vector<16x32xf32> -> vector<16x32xf32>
    %c0_9 = arith.constant 0 : index
    %c0_10 = arith.constant 0 : index
    %10 = vector.load %arg7[%c0_9, %c0_10] : memref<1x32xf32, #tpu.memory_space<vmem>>, vector<1x32xf32>
    %11 = vector.broadcast %10 : vector<1x32xf32> to vector<16x32xf32>
    %12 = arith.addf %9, %11 : vector<16x32xf32>
    %c0_11 = arith.constant 0 : index
    %c0_12 = arith.constant 0 : index
    %13 = vector.load %arg5[%c0_11, %c0_12] : memref<32x32xbf16, #tpu.memory_space<vmem>>, vector<32x32xbf16>
    %cst_13 = arith.constant dense<0.000000e+00> : vector<16x32xf32>
    %14 = tpu.matmul %2, %13, %cst_13 {dimension_numbers = #tpu.dot_dimension_numbers<[1], [0], [0], [1], [0, 0, 1, 1], [], []>} : vector<16x32xbf16>, vector<32x32xbf16>, vector<16x32xf32> -> vector<16x32xf32>
    %c0_14 = arith.constant 0 : index
    %c0_15 = arith.constant 0 : index
    %15 = vector.load %arg8[%c0_14, %c0_15] : memref<1x32xf32, #tpu.memory_space<vmem>>, vector<1x32xf32>
    %16 = vector.broadcast %15 : vector<1x32xf32> to vector<16x32xf32>
    %17 = arith.addf %14, %16 : vector<16x32xf32>
    %18 = vector.extract_strided_slice %7 {offsets = [0, 0], sizes = [16, 8], strides = [1, 1]} : vector<16x32xf32> to vector<16x8xf32>
    %19 = arith.truncf %18 : vector<16x8xf32> to vector<16x8xbf16>
    %c0_16 = arith.constant 0 : index
    %c0_17 = arith.constant 0 : index
    %c0_18 = arith.constant 0 : index
    %c0_19 = arith.constant 0 : index
    %20 = vector.load %arg9[%c0_16, %c0_17, %c0_18, %c0_19] : memref<1x4x16x8xbf16, #tpu.memory_space<vmem>>, vector<1x1x16x8xbf16>
    %21 = vector.shape_cast %20 : vector<1x1x16x8xbf16> to vector<16x8xbf16>
    %22 = vector.shape_cast %19 : vector<16x8xbf16> to vector<1x1x16x8xbf16>
    tpu.vector_store %arg9[%c0_16, %c0_17, %c0_18, %c0_19], %22 {strides = array<i32>} : memref<1x4x16x8xbf16, #tpu.memory_space<vmem>>, vector<1x1x16x8xbf16>,
    %23 = vector.extract_strided_slice %12 {offsets = [0, 0], sizes = [16, 8], strides = [1, 1]} : vector<16x32xf32> to vector<16x8xf32>
    %24 = arith.truncf %23 : vector<16x8xf32> to vector<16x8xbf16>
    %c0_20 = arith.constant 0 : index
    %c0_21 = arith.constant 0 : index
    %c0_22 = arith.constant 0 : index
    %c0_23 = arith.constant 0 : index
    %25 = vector.load %arg10[%c0_20, %c0_21, %c0_22, %c0_23] : memref<1x4x16x8xbf16, #tpu.memory_space<vmem>>, vector<1x1x16x8xbf16>
    %26 = vector.shape_cast %25 : vector<1x1x16x8xbf16> to vector<16x8xbf16>
    %27 = vector.shape_cast %24 : vector<16x8xbf16> to vector<1x1x16x8xbf16>
    tpu.vector_store %arg10[%c0_20, %c0_21, %c0_22, %c0_23], %27 {strides = array<i32>} : memref<1x4x16x8xbf16, #tpu.memory_space<vmem>>, vector<1x1x16x8xbf16>,
    %28 = vector.extract_strided_slice %17 {offsets = [0, 0], sizes = [16, 8], strides = [1, 1]} : vector<16x32xf32> to vector<16x8xf32>
    %29 = arith.truncf %28 : vector<16x8xf32> to vector<16x8xbf16>
    %c0_24 = arith.constant 0 : index
    %c0_25 = arith.constant 0 : index
    %c0_26 = arith.constant 0 : index
    %c0_27 = arith.constant 0 : index
    %30 = vector.load %arg11[%c0_24, %c0_25, %c0_26, %c0_27] : memref<1x4x16x8xbf16, #tpu.memory_space<vmem>>, vector<1x1x16x8xbf16>
    %31 = vector.shape_cast %30 : vector<1x1x16x8xbf16> to vector<16x8xbf16>
    %32 = vector.shape_cast %29 : vector<16x8xbf16> to vector<1x1x16x8xbf16>
    tpu.vector_store %arg11[%c0_24, %c0_25, %c0_26, %c0_27], %32 {strides = array<i32>} : memref<1x4x16x8xbf16, #tpu.memory_space<vmem>>, vector<1x1x16x8xbf16>,
    %33 = vector.extract_strided_slice %7 {offsets = [0, 8], sizes = [16, 8], strides = [1, 1]} : vector<16x32xf32> to vector<16x8xf32>
    %34 = arith.truncf %33 : vector<16x8xf32> to vector<16x8xbf16>
    %c0_28 = arith.constant 0 : index
    %c1 = arith.constant 1 : index
    %c0_29 = arith.constant 0 : index
    %c0_30 = arith.constant 0 : index
    %35 = vector.load %arg9[%c0_28, %c1, %c0_29, %c0_30] : memref<1x4x16x8xbf16, #tpu.memory_space<vmem>>, vector<1x1x16x8xbf16>
    %36 = vector.shape_cast %35 : vector<1x1x16x8xbf16> to vector<16x8xbf16>
    %37 = vector.shape_cast %34 : vector<16x8xbf16> to vector<1x1x16x8xbf16>
    tpu.vector_store %arg9[%c0_28, %c1, %c0_29, %c0_30], %37 {strides = array<i32>} : memref<1x4x16x8xbf16, #tpu.memory_space<vmem>>, vector<1x1x16x8xbf16>,
    %38 = vector.extract_strided_slice %12 {offsets = [0, 8], sizes = [16, 8], strides = [1, 1]} : vector<16x32xf32> to vector<16x8xf32>
    %39 = arith.truncf %38 : vector<16x8xf32> to vector<16x8xbf16>
    %c0_31 = arith.constant 0 : index
    %c1_32 = arith.constant 1 : index
    %c0_33 = arith.constant 0 : index
    %c0_34 = arith.constant 0 : index
    %40 = vector.load %arg10[%c0_31, %c1_32, %c0_33, %c0_34] : memref<1x4x16x8xbf16, #tpu.memory_space<vmem>>, vector<1x1x16x8xbf16>
    %41 = vector.shape_cast %40 : vector<1x1x16x8xbf16> to vector<16x8xbf16>
    %42 = vector.shape_cast %39 : vector<16x8xbf16> to vector<1x1x16x8xbf16>
    tpu.vector_store %arg10[%c0_31, %c1_32, %c0_33, %c0_34], %42 {strides = array<i32>} : memref<1x4x16x8xbf16, #tpu.memory_space<vmem>>, vector<1x1x16x8xbf16>,
    %43 = vector.extract_strided_slice %17 {offsets = [0, 8], sizes = [16, 8], strides = [1, 1]} : vector<16x32xf32> to vector<16x8xf32>
    %44 = arith.truncf %43 : vector<16x8xf32> to vector<16x8xbf16>
    %c0_35 = arith.constant 0 : index
    %c1_36 = arith.constant 1 : index
    %c0_37 = arith.constant 0 : index
    %c0_38 = arith.constant 0 : index
    %45 = vector.load %arg11[%c0_35, %c1_36, %c0_37, %c0_38] : memref<1x4x16x8xbf16, #tpu.memory_space<vmem>>, vector<1x1x16x8xbf16>
    %46 = vector.shape_cast %45 : vector<1x1x16x8xbf16> to vector<16x8xbf16>
    %47 = vector.shape_cast %44 : vector<16x8xbf16> to vector<1x1x16x8xbf16>
    tpu.vector_store %arg11[%c0_35, %c1_36, %c0_37, %c0_38], %47 {strides = array<i32>} : memref<1x4x16x8xbf16, #tpu.memory_space<vmem>>, vector<1x1x16x8xbf16>,
    %48 = vector.extract_strided_slice %7 {offsets = [0, 16], sizes = [16, 8], strides = [1, 1]} : vector<16x32xf32> to vector<16x8xf32>
    %49 = arith.truncf %48 : vector<16x8xf32> to vector<16x8xbf16>
    %c0_39 = arith.constant 0 : index
    %c2 = arith.constant 2 : index
    %c0_40 = arith.constant 0 : index
    %c0_41 = arith.constant 0 : index
    %50 = vector.load %arg9[%c0_39, %c2, %c0_40, %c0_41] : memref<1x4x16x8xbf16, #tpu.memory_space<vmem>>, vector<1x1x16x8xbf16>
    %51 = vector.shape_cast %50 : vector<1x1x16x8xbf16> to vector<16x8xbf16>
    %52 = vector.shape_cast %49 : vector<16x8xbf16> to vector<1x1x16x8xbf16>
    tpu.vector_store %arg9[%c0_39, %c2, %c0_40, %c0_41], %52 {strides = array<i32>} : memref<1x4x16x8xbf16, #tpu.memory_space<vmem>>, vector<1x1x16x8xbf16>,
    %53 = vector.extract_strided_slice %12 {offsets = [0, 16], sizes = [16, 8], strides = [1, 1]} : vector<16x32xf32> to vector<16x8xf32>
    %54 = arith.truncf %53 : vector<16x8xf32> to vector<16x8xbf16>
    %c0_42 = arith.constant 0 : index
    %c2_43 = arith.constant 2 : index
    %c0_44 = arith.constant 0 : index
    %c0_45 = arith.constant 0 : index
    %55 = vector.load %arg10[%c0_42, %c2_43, %c0_44, %c0_45] : memref<1x4x16x8xbf16, #tpu.memory_space<vmem>>, vector<1x1x16x8xbf16>
    %56 = vector.shape_cast %55 : vector<1x1x16x8xbf16> to vector<16x8xbf16>
    %57 = vector.shape_cast %54 : vector<16x8xbf16> to vector<1x1x16x8xbf16>
    tpu.vector_store %arg10[%c0_42, %c2_43, %c0_44, %c0_45], %57 {strides = array<i32>} : memref<1x4x16x8xbf16, #tpu.memory_space<vmem>>, vector<1x1x16x8xbf16>,
    %58 = vector.extract_strided_slice %17 {offsets = [0, 16], sizes = [16, 8], strides = [1, 1]} : vector<16x32xf32> to vector<16x8xf32>
    %59 = arith.truncf %58 : vector<16x8xf32> to vector<16x8xbf16>
    %c0_46 = arith.constant 0 : index
    %c2_47 = arith.constant 2 : index
    %c0_48 = arith.constant 0 : index
    %c0_49 = arith.constant 0 : index
    %60 = vector.load %arg11[%c0_46, %c2_47, %c0_48, %c0_49] : memref<1x4x16x8xbf16, #tpu.memory_space<vmem>>, vector<1x1x16x8xbf16>
    %61 = vector.shape_cast %60 : vector<1x1x16x8xbf16> to vector<16x8xbf16>
    %62 = vector.shape_cast %59 : vector<16x8xbf16> to vector<1x1x16x8xbf16>
    tpu.vector_store %arg11[%c0_46, %c2_47, %c0_48, %c0_49], %62 {strides = array<i32>} : memref<1x4x16x8xbf16, #tpu.memory_space<vmem>>, vector<1x1x16x8xbf16>,
    %63 = vector.extract_strided_slice %7 {offsets = [0, 24], sizes = [16, 8], strides = [1, 1]} : vector<16x32xf32> to vector<16x8xf32>
    %64 = arith.truncf %63 : vector<16x8xf32> to vector<16x8xbf16>
    %c0_50 = arith.constant 0 : index
    %c3 = arith.constant 3 : index
    %c0_51 = arith.constant 0 : index
    %c0_52 = arith.constant 0 : index
    %65 = vector.load %arg9[%c0_50, %c3, %c0_51, %c0_52] : memref<1x4x16x8xbf16, #tpu.memory_space<vmem>>, vector<1x1x16x8xbf16>
    %66 = vector.shape_cast %65 : vector<1x1x16x8xbf16> to vector<16x8xbf16>
    %67 = vector.shape_cast %64 : vector<16x8xbf16> to vector<1x1x16x8xbf16>
    tpu.vector_store %arg9[%c0_50, %c3, %c0_51, %c0_52], %67 {strides = array<i32>} : memref<1x4x16x8xbf16, #tpu.memory_space<vmem>>, vector<1x1x16x8xbf16>,
    %68 = vector.extract_strided_slice %12 {offsets = [0, 24], sizes = [16, 8], strides = [1, 1]} : vector<16x32xf32> to vector<16x8xf32>
    %69 = arith.truncf %68 : vector<16x8xf32> to vector<16x8xbf16>
    %c0_53 = arith.constant 0 : index
    %c3_54 = arith.constant 3 : index
    %c0_55 = arith.constant 0 : index
    %c0_56 = arith.constant 0 : index
    %70 = vector.load %arg10[%c0_53, %c3_54, %c0_55, %c0_56] : memref<1x4x16x8xbf16, #tpu.memory_space<vmem>>, vector<1x1x16x8xbf16>
    %71 = vector.shape_cast %70 : vector<1x1x16x8xbf16> to vector<16x8xbf16>
    %72 = vector.shape_cast %69 : vector<16x8xbf16> to vector<1x1x16x8xbf16>
    tpu.vector_store %arg10[%c0_53, %c3_54, %c0_55, %c0_56], %72 {strides = array<i32>} : memref<1x4x16x8xbf16, #tpu.memory_space<vmem>>, vector<1x1x16x8xbf16>,
    %73 = vector.extract_strided_slice %17 {offsets = [0, 24], sizes = [16, 8], strides = [1, 1]} : vector<16x32xf32> to vector<16x8xf32>
    %74 = arith.truncf %73 : vector<16x8xf32> to vector<16x8xbf16>
    %c0_57 = arith.constant 0 : index
    %c3_58 = arith.constant 3 : index
    %c0_59 = arith.constant 0 : index
    %c0_60 = arith.constant 0 : index
    %75 = vector.load %arg11[%c0_57, %c3_58, %c0_59, %c0_60] : memref<1x4x16x8xbf16, #tpu.memory_space<vmem>>, vector<1x1x16x8xbf16>
    %76 = vector.shape_cast %75 : vector<1x1x16x8xbf16> to vector<16x8xbf16>
    %77 = vector.shape_cast %74 : vector<16x8xbf16> to vector<1x1x16x8xbf16>
    tpu.vector_store %arg11[%c0_57, %c3_58, %c0_59, %c0_60], %77 {strides = array<i32>} : memref<1x4x16x8xbf16, #tpu.memory_space<vmem>>, vector<1x1x16x8xbf16>,
    return
  }
  func.func @transform_0(%arg0: i32, %arg1: i32) -> (i32, i32, i32) {
    %c0_i32 = arith.constant 0 : i32
    %c0_i32_0 = arith.constant 0 : i32
    return %arg0, %arg1, %c0_i32 : i32, i32, i32
  }
  func.func @transform_1(%arg0: i32, %arg1: i32) -> (i32, i32) {
    %c0_i32 = arith.constant 0 : i32
    %c0_i32_0 = arith.constant 0 : i32
    %c0_i32_1 = arith.constant 0 : i32
    return %c0_i32, %c0_i32_0 : i32, i32
  }
  func.func @transform_2(%arg0: i32, %arg1: i32) -> (i32, i32) {
    %c0_i32 = arith.constant 0 : i32
    %c0_i32_0 = arith.constant 0 : i32
    %c0_i32_1 = arith.constant 0 : i32
    return %c0_i32, %c0_i32_0 : i32, i32
  }
  func.func @transform_3(%arg0: i32, %arg1: i32) -> (i32, i32) {
    %c0_i32 = arith.constant 0 : i32
    %c0_i32_0 = arith.constant 0 : i32
    %c0_i32_1 = arith.constant 0 : i32
    return %c0_i32, %c0_i32_0 : i32, i32
  }
  func.func @transform_4(%arg0: i32, %arg1: i32) -> (i32, i32) {
    %c0_i32 = arith.constant 0 : i32
    %c0_i32_0 = arith.constant 0 : i32
    %c0_i32_1 = arith.constant 0 : i32
    return %c0_i32, %c0_i32_0 : i32, i32
  }
  func.func @transform_5(%arg0: i32, %arg1: i32) -> (i32, i32) {
    %c0_i32 = arith.constant 0 : i32
    %c0_i32_0 = arith.constant 0 : i32
    %c0_i32_1 = arith.constant 0 : i32
    return %c0_i32, %c0_i32_0 : i32, i32
  }
  func.func @transform_6(%arg0: i32, %arg1: i32) -> (i32, i32) {
    %c0_i32 = arith.constant 0 : i32
    %c0_i32_0 = arith.constant 0 : i32
    %c0_i32_1 = arith.constant 0 : i32
    return %c0_i32, %c0_i32_0 : i32, i32
  }
  func.func @transform_7(%arg0: i32, %arg1: i32) -> (i32, i32, i32, i32) {
    %c0_i32 = arith.constant 0 : i32
    %c0_i32_0 = arith.constant 0 : i32
    %c0_i32_1 = arith.constant 0 : i32
    return %arg0, %c0_i32, %arg1, %c0_i32_0 : i32, i32, i32, i32
  }
  func.func @transform_8(%arg0: i32, %arg1: i32) -> (i32, i32, i32, i32) {
    %c0_i32 = arith.constant 0 : i32
    %c0_i32_0 = arith.constant 0 : i32
    %c0_i32_1 = arith.constant 0 : i32
    return %arg0, %c0_i32, %arg1, %c0_i32_0 : i32, i32, i32, i32
  }
  func.func @transform_9(%arg0: i32, %arg1: i32) -> (i32, i32, i32, i32) {
    %c0_i32 = arith.constant 0 : i32
    %c0_i32_0 = arith.constant 0 : i32
    %c0_i32_1 = arith.constant 0 : i32
    return %arg0, %c0_i32, %arg1, %c0_i32_0 : i32, i32, i32, i32
  }
}

</mosaic_0001>

<llo_original>
// kernel: memory_efficient_attention.3
$region0: #{memory_efficient_attention.3}
  #allocation0 [shape = 'u32[]', space=smem, size = 0x4, offset = 0x4, fixed_abs, tag = 'smem constant byte address 0x4 - core index']
  #allocation1 [shape = 'u32[144,128]{1,0:T(1,128)}', space=vmem, size = 0x12000, scoped, tag = 'internal scratch']
  %s0 = inlined_call_operand.vmem [shape: f32[2,16,32], index: 0, kind: input, shape index: {}]
  %s1 = inlined_call_operand.vmem [shape: bf16[32,32], index: 1, kind: input, shape index: {}]
  %s2 = inlined_call_operand.vmem [shape: bf16[32,32], index: 2, kind: input, shape index: {}]
  %s3 = inlined_call_operand.vmem [shape: bf16[32,32], index: 3, kind: input, shape index: {}]
  %s4 = inlined_call_operand.vmem [shape: f32[1,32], index: 4, kind: input, shape index: {}]
  %s5 = inlined_call_operand.vmem [shape: f32[1,32], index: 5, kind: input, shape index: {}]
  %s6 = inlined_call_operand.vmem [shape: f32[1,32], index: 6, kind: input, shape index: {}]
  %s7 = inlined_call_operand.vmem [shape: bf16[2,4,16,8], index: 7, kind: output, shape index: {0}]
  %s8 = inlined_call_operand.vmem [shape: bf16[2,4,16,8], index: 8, kind: output, shape index: {1}]
  %s9 = inlined_call_operand.vmem [shape: bf16[2,4,16,8], index: 9, kind: output, shape index: {2}]
  %10 = xla_tuple %s7, %s8, %s9
  %s11 = sld [smem:[#allocation0]]
  $region77: #{memory_efficient_attention.3} parent=0
    _
  %s13 = ssub.s32 1, %s11
  %s14 = scalar_select 0, %s13, %s11
  loop: start=0, step=1, limit=4
  $region2: #{memory_efficient_attention.3} parent=0 // loop_pre_header
    _
  $region3: #{memory_efficient_attention.3} parent=0 // loop_header
    %s16 = sphi 0, %s20
    %p17 = scmp.ge.s32.totalorder %s16, 4
    %s23 = sphi 0, %s35
    %s24 = sphi 0, %s31
    %s25 = sphi 0, %s23
    %s26 = sphi 0, %s24
    %s27 = sphi 0, %s25
    %s28 = sphi 0, %s26
    %s40 = sphi 0, %s42
    %s43 = sphi 0, %s40
    %s44 = sphi 0, %s43
    %s60 = sphi 0, %s44
    %s64 = sphi 0, %s64
    %s66 = sphi 0, %s64
    %s67 = sphi 0, %s66
    %s81 = sphi 0, %s67
    %s85 = sphi 0, %s85
    %s87 = sphi 0, %s85
    %s88 = sphi 0, %s87
    %s102 = sphi 0, %s88
    %s106 = sphi 0, %s106
    %s108 = sphi 0, %s106
    %s109 = sphi 0, %s108
    %s123 = sphi 0, %s109
    %s127 = sphi 0, %s127
    %s129 = sphi 0, %s127
    %s130 = sphi 0, %s129
    %s144 = sphi 0, %s130
    %s148 = sphi 0, %s148
    %s150 = sphi 0, %s148
    %s151 = sphi 0, %s150
    %s165 = sphi 0, %s151
    %s169 = sphi 0, %s169
    %s171 = sphi 0, %s169
    %s172 = sphi 0, %s171
    %s186 = sphi 0, %s172
    %s194 = sphi 0, %s196
    %s197 = sphi 0, %s194
    %s198 = sphi 0, %s197
    %s214 = sphi 0, %s198
    %s222 = sphi 0, %s224
    %s225 = sphi 0, %s222
    %s226 = sphi 0, %s225
    %s242 = sphi 0, %s226
    %s250 = sphi 0, %s252
    %s253 = sphi 0, %s250
    %s254 = sphi 0, %s253
    %s270 = sphi 0, %s254
  $region4: #{memory_efficient_attention.3} parent=0 // loop_header_branch
    %19 = sbr.rel (%p17) target = $region8
  $region5: #{memory_efficient_attention.3} parent=0 // loop_body
    %s21 = ssub.s32 %s16, 1
    %s22 = ssub.s32 %s16, 2
    %s29 = sadd.s32 1, %s24
    %p30 = scmp.ge.s32.totalorder %s29, 1
    %s31 = scalar_select %p30, 0, %s29
    %s32 = sadd.s32 1, %s23
    %s33 = scalar_select %p30, %s32, %s23
    %p34 = scmp.ge.s32.totalorder %s33, 2
    %s35 = scalar_select %p34, 0, %s33
    %s36 = ssub.s32 %s23, %s35
    %s37 = ssub.s32 %s24, %s31
    %s38 = sor.u32 %s36, %s37
    %p39 = scmp.eq.s32.totalorder %s38, 0
    %s41 = sadd.s32 %s40, 1
    %s42 = scalar_select %p39, %s40, %s41
    %p45 = pneg %p39
    %p46 = scmp.eq.s32.totalorder %s16, 1
    %p47 = por %p45, %p46
    %p48 = scmp.ne.s32.totalorder %s40, %s43
    %p49 = scmp.eq.s32.totalorder %s16, 0
    %p50 = por %p48, %p49
    %p51 = scmp.ne.s32.totalorder %s40, %s43
    %p52 = scmp.eq.s32.totalorder %s21, 1
    %p53 = por %p51, %p52
    %p54 = scmp.ne.s32.totalorder %s43, %s44
    %p55 = scmp.eq.s32.totalorder %s21, 0
    %p56 = por %p54, %p55
    %p57 = scmp.ne.s32.totalorder %s43, %s44
    %p58 = scmp.eq.s32.totalorder %s22, 1
    %p59 = por %p57, %p58
    %p61 = scmp.ne.s32.totalorder %s44, %s60
    %p62 = scmp.eq.s32.totalorder %s22, 0
    %p63 = por %p61, %p62
    %s65 = sadd.s32 %s64, 1
    %p68 = scmp.eq.s32.totalorder %s16, 1
    %p69 = scmp.ne.s32.totalorder %s64, %s66
    %p70 = scmp.eq.s32.totalorder %s16, 0
    %p71 = por %p69, %p70
    %p72 = scmp.ne.s32.totalorder %s64, %s66
    %p73 = scmp.eq.s32.totalorder %s21, 1
    %p74 = por %p72, %p73
    %p75 = scmp.ne.s32.totalorder %s66, %s67
    %p76 = scmp.eq.s32.totalorder %s21, 0
    %p77 = por %p75, %p76
    %p78 = scmp.ne.s32.totalorder %s66, %s67
    %p79 = scmp.eq.s32.totalorder %s22, 1
    %p80 = por %p78, %p79
    %p82 = scmp.ne.s32.totalorder %s67, %s81
    %p83 = scmp.eq.s32.totalorder %s22, 0
    %p84 = por %p82, %p83
    %s86 = sadd.s32 %s85, 1
    %p89 = scmp.eq.s32.totalorder %s16, 1
    %p90 = scmp.ne.s32.totalorder %s85, %s87
    %p91 = scmp.eq.s32.totalorder %s16, 0
    %p92 = por %p90, %p91
    %p93 = scmp.ne.s32.totalorder %s85, %s87
    %p94 = scmp.eq.s32.totalorder %s21, 1
    %p95 = por %p93, %p94
    %p96 = scmp.ne.s32.totalorder %s87, %s88
    %p97 = scmp.eq.s32.totalorder %s21, 0
    %p98 = por %p96, %p97
    %p99 = scmp.ne.s32.totalorder %s87, %s88
    %p100 = scmp.eq.s32.totalorder %s22, 1
    %p101 = por %p99, %p100
    %p103 = scmp.ne.s32.totalorder %s88, %s102
    %p104 = scmp.eq.s32.totalorder %s22, 0
    %p105 = por %p103, %p104
    %s107 = sadd.s32 %s106, 1
    %p110 = scmp.eq.s32.totalorder %s16, 1
    %p111 = scmp.ne.s32.totalorder %s106, %s108
    %p112 = scmp.eq.s32.totalorder %s16, 0
    %p113 = por %p111, %p112
    %p114 = scmp.ne.s32.totalorder %s106, %s108
    %p115 = scmp.eq.s32.totalorder %s21, 1
    %p116 = por %p114, %p115
    %p117 = scmp.ne.s32.totalorder %s108, %s109
    %p118 = scmp.eq.s32.totalorder %s21, 0
    %p119 = por %p117, %p118
    %p120 = scmp.ne.s32.totalorder %s108, %s109
    %p121 = scmp.eq.s32.totalorder %s22, 1
    %p122 = por %p120, %p121
    %p124 = scmp.ne.s32.totalorder %s109, %s123
    %p125 = scmp.eq.s32.totalorder %s22, 0
    %p126 = por %p124, %p125
    %s128 = sadd.s32 %s127, 1
    %p131 = scmp.eq.s32.totalorder %s16, 1
    %p132 = scmp.ne.s32.totalorder %s127, %s129
    %p133 = scmp.eq.s32.totalorder %s16, 0
    %p134 = por %p132, %p133
    %p135 = scmp.ne.s32.totalorder %s127, %s129
    %p136 = scmp.eq.s32.totalorder %s21, 1
    %p137 = por %p135, %p136
    %p138 = scmp.ne.s32.totalorder %s129, %s130
    %p139 = scmp.eq.s32.totalorder %s21, 0
    %p140 = por %p138, %p139
    %p141 = scmp.ne.s32.totalorder %s129, %s130
    %p142 = scmp.eq.s32.totalorder %s22, 1
    %p143 = por %p141, %p142
    %p145 = scmp.ne.s32.totalorder %s130, %s144
    %p146 = scmp.eq.s32.totalorder %s22, 0
    %p147 = por %p145, %p146
    %s149 = sadd.s32 %s148, 1
    %p152 = scmp.eq.s32.totalorder %s16, 1
    %p153 = scmp.ne.s32.totalorder %s148, %s150
    %p154 = scmp.eq.s32.totalorder %s16, 0
    %p155 = por %p153, %p154
    %p156 = scmp.ne.s32.totalorder %s148, %s150
    %p157 = scmp.eq.s32.totalorder %s21, 1
    %p158 = por %p156, %p157
    %p159 = scmp.ne.s32.totalorder %s150, %s151
    %p160 = scmp.eq.s32.totalorder %s21, 0
    %p161 = por %p159, %p160
    %p162 = scmp.ne.s32.totalorder %s150, %s151
    %p163 = scmp.eq.s32.totalorder %s22, 1
    %p164 = por %p162, %p163
    %p166 = scmp.ne.s32.totalorder %s151, %s165
    %p167 = scmp.eq.s32.totalorder %s22, 0
    %p168 = por %p166, %p167
    %s170 = sadd.s32 %s169, 1
    %p173 = scmp.eq.s32.totalorder %s16, 1
    %p174 = scmp.ne.s32.totalorder %s169, %s171
    %p175 = scmp.eq.s32.totalorder %s16, 0
    %p176 = por %p174, %p175
    %p177 = scmp.ne.s32.totalorder %s169, %s171
    %p178 = scmp.eq.s32.totalorder %s21, 1
    %p179 = por %p177, %p178
    %p180 = scmp.ne.s32.totalorder %s171, %s172
    %p181 = scmp.eq.s32.totalorder %s21, 0
    %p182 = por %p180, %p181
    %p183 = scmp.ne.s32.totalorder %s171, %s172
    %p184 = scmp.eq.s32.totalorder %s22, 1
    %p185 = por %p183, %p184
    %p187 = scmp.ne.s32.totalorder %s172, %s186
    %p188 = scmp.eq.s32.totalorder %s22, 0
    %p189 = por %p187, %p188
    %s190 = ssub.s32 %s23, %s35
    %s191 = ssub.s32 %s24, %s31
    %s192 = sor.u32 %s190, %s191
    %p193 = scmp.eq.s32.totalorder %s192, 0
    %s195 = sadd.s32 %s194, 1
    %s196 = scalar_select %p193, %s194, %s195
    %p199 = pneg %p193
    %p200 = scmp.eq.s32.totalorder %s16, 1
    %p201 = por %p199, %p200
    %p202 = scmp.ne.s32.totalorder %s194, %s197
    %p203 = scmp.eq.s32.totalorder %s16, 0
    %p204 = por %p202, %p203
    %p205 = scmp.ne.s32.totalorder %s194, %s197
    %p206 = scmp.eq.s32.totalorder %s21, 1
    %p207 = por %p205, %p206
    %p208 = scmp.ne.s32.totalorder %s197, %s198
    %p209 = scmp.eq.s32.totalorder %s21, 0
    %p210 = por %p208, %p209
    %p211 = scmp.ne.s32.totalorder %s197, %s198
    %p212 = scmp.eq.s32.totalorder %s22, 1
    %p213 = por %p211, %p212
    %p215 = scmp.ne.s32.totalorder %s198, %s214
    %p216 = scmp.eq.s32.totalorder %s22, 0
    %p217 = por %p215, %p216
    %s218 = ssub.s32 %s23, %s35
    %s219 = ssub.s32 %s24, %s31
    %s220 = sor.u32 %s218, %s219
    %p221 = scmp.eq.s32.totalorder %s220, 0
    %s223 = sadd.s32 %s222, 1
    %s224 = scalar_select %p221, %s222, %s223
    %p227 = pneg %p221
    %p228 = scmp.eq.s32.totalorder %s16, 1
    %p229 = por %p227, %p228
    %p230 = scmp.ne.s32.totalorder %s222, %s225
    %p231 = scmp.eq.s32.totalorder %s16, 0
    %p232 = por %p230, %p231
    %p233 = scmp.ne.s32.totalorder %s222, %s225
    %p234 = scmp.eq.s32.totalorder %s21, 1
    %p235 = por %p233, %p234
    %p236 = scmp.ne.s32.totalorder %s225, %s226
    %p237 = scmp.eq.s32.totalorder %s21, 0
    %p238 = por %p236, %p237
    %p239 = scmp.ne.s32.totalorder %s225, %s226
    %p240 = scmp.eq.s32.totalorder %s22, 1
    %p241 = por %p239, %p240
    %p243 = scmp.ne.s32.totalorder %s226, %s242
    %p244 = scmp.eq.s32.totalorder %s22, 0
    %p245 = por %p243, %p244
    %s246 = ssub.s32 %s23, %s35
    %s247 = ssub.s32 %s24, %s31
    %s248 = sor.u32 %s246, %s247
    %p249 = scmp.eq.s32.totalorder %s248, 0
    %s251 = sadd.s32 %s250, 1
    %s252 = scalar_select %p249, %s250, %s251
    %p255 = pneg %p249
    %p256 = scmp.eq.s32.totalorder %s16, 1
    %p257 = por %p255, %p256
    %p258 = scmp.ne.s32.totalorder %s250, %s253
    %p259 = scmp.eq.s32.totalorder %s16, 0
    %p260 = por %p258, %p259
    %p261 = scmp.ne.s32.totalorder %s250, %s253
    %p262 = scmp.eq.s32.totalorder %s21, 1
    %p263 = por %p261, %p262
    %p264 = scmp.ne.s32.totalorder %s253, %s254
    %p265 = scmp.eq.s32.totalorder %s21, 0
    %p266 = por %p264, %p265
    %p267 = scmp.ne.s32.totalorder %s253, %s254
    %p268 = scmp.eq.s32.totalorder %s22, 1
    %p269 = por %p267, %p268
    %p271 = scmp.ne.s32.totalorder %s254, %s270
    %p272 = scmp.eq.s32.totalorder %s22, 0
    %p273 = por %p271, %p272
    %p274 = scmp.le.s32.totalorder 1, %s16
    %p275 = scmp.lt.s32.totalorder %s16, 3
    %p276 = pnand %p274, %p275
    %p277 = pneg %p276
    // Predicated region
    $region9: #{memory_efficient_attention.3} parent=5 // pred_check
      _
    $region10: #{memory_efficient_attention.3} parent=5 // pred_check_branch
      %279 = sbr.rel (%p276) target = $region12
    $region11: #{memory_efficient_attention.3} parent=5 // pred_region
      %s280 = ssub.s32 %s16, 1
      // Predicated region
      $region13: #{memory_efficient_attention.3} parent=11 // pred_check
        %p281 = pneg %p77
      $region14: #{memory_efficient_attention.3} parent=11 // pred_check_branch
        %283 = sbr.rel (%p281) target = $region16
      $region15: #{memory_efficient_attention.3} parent=11 // pred_region
        _
      $region16: #{memory_efficient_attention.3} parent=11 // pred_fallthru
        _
      // Predicated region
      $region17: #{memory_efficient_attention.3} parent=11 // pred_check
        %p284 = pneg %p98
      $region18: #{memory_efficient_attention.3} parent=11 // pred_check_branch
        %286 = sbr.rel (%p284) target = $region20
      $region19: #{memory_efficient_attention.3} parent=11 // pred_region
        _
      $region20: #{memory_efficient_attention.3} parent=11 // pred_fallthru
        _
      // Predicated region
      $region21: #{memory_efficient_attention.3} parent=11 // pred_check
        %p287 = pneg %p119
      $region22: #{memory_efficient_attention.3} parent=11 // pred_check_branch
        %289 = sbr.rel (%p287) target = $region24
      $region23: #{memory_efficient_attention.3} parent=11 // pred_region
        _
      $region24: #{memory_efficient_attention.3} parent=11 // pred_fallthru
        _
      // Predicated region
      $region25: #{memory_efficient_attention.3} parent=11 // pred_check
        %p290 = pneg %p140
      $region26: #{memory_efficient_attention.3} parent=11 // pred_check_branch
        %292 = sbr.rel (%p290) target = $region28
      $region27: #{memory_efficient_attention.3} parent=11 // pred_region
        _
      $region28: #{memory_efficient_attention.3} parent=11 // pred_fallthru
        _
      // Predicated region
      $region29: #{memory_efficient_attention.3} parent=11 // pred_check
        %p293 = pneg %p161
      $region30: #{memory_efficient_attention.3} parent=11 // pred_check_branch
        %295 = sbr.rel (%p293) target = $region32
      $region31: #{memory_efficient_attention.3} parent=11 // pred_region
        _
      $region32: #{memory_efficient_attention.3} parent=11 // pred_fallthru
        _
      // Predicated region
      $region33: #{memory_efficient_attention.3} parent=11 // pred_check
        %p296 = pneg %p182
      $region34: #{memory_efficient_attention.3} parent=11 // pred_check_branch
        %298 = sbr.rel (%p296) target = $region36
      $region35: #{memory_efficient_attention.3} parent=11 // pred_region
        _
      $region36: #{memory_efficient_attention.3} parent=11 // pred_fallthru
        _
    $region12: #{memory_efficient_attention.3} parent=5 // pred_fallthru
      _
    %p299 = scmp.lt.s32.totalorder %s16, 2
    // Predicated region
    $region37: #{memory_efficient_attention.3} parent=5 // pred_check
      %p300 = pneg %p299
    $region38: #{memory_efficient_attention.3} parent=5 // pred_check_branch
      %302 = sbr.rel (%p300) target = $region40
    $region39: #{memory_efficient_attention.3} parent=5 // pred_region
      // Predicated region
      $region41: #{memory_efficient_attention.3} parent=39 // pred_check
        %p303 = pneg %p50
      $region42: #{memory_efficient_attention.3} parent=39 // pred_check_branch
        %305 = sbr.rel (%p303) target = $region44
      $region43: #{memory_efficient_attention.3} parent=39 // pred_region
        %s306 = smul.u32 2, %s24
        %p307 = scmp.lt.s32.totalorder %s23, 1
        %s308 = scalar_select %p307, %s23, 1
        %p309 = scmp.lt.s32.totalorder %s306, 1
        %s310 = scalar_select %p309, %s306, 1
        %s311 = smul.addr %s308, 2
        %s312 = sadd.s32 %s310, %s311
        %s313 = smul.addr %s312, 8
        %s314 = scalar_lea.vmem %s0, %s313
        %s315 = smul.u32 2, %s24
      $region44: #{memory_efficient_attention.3} parent=39 // pred_fallthru
        _
    $region40: #{memory_efficient_attention.3} parent=5 // pred_fallthru
      _
    %p316 = scmp.le.s32.totalorder 1, %s16
    %p317 = scmp.lt.s32.totalorder %s16, 3
    %p318 = pnand %p316, %p317
    %p319 = pneg %p318
    // Predicated region
    $region45: #{memory_efficient_attention.3} parent=5 // pred_check
      _
    $region46: #{memory_efficient_attention.3} parent=5 // pred_check_branch
      %321 = sbr.rel (%p318) target = $region48
    $region47: #{memory_efficient_attention.3} parent=5 // pred_region
      %s322 = ssub.s32 %s16, 1
      %s323 = smul.u32 2, %s26
      %p324 = scmp.lt.s32.totalorder %s25, 1
      %s325 = scalar_select %p324, %s25, 1
      %p326 = scmp.lt.s32.totalorder %s323, 1
      %s327 = scalar_select %p326, %s323, 1
      %s328 = smul.addr %s325, 2
      %s329 = sadd.s32 %s327, %s328
      %s330 = smul.addr %s329, 8
      %s331 = scalar_lea.vmem %s0, %s330
      %p332 = pneg %p56
      %p333 = pneg %p53
      %p334 = pneg %p77
      %p335 = pneg %p74
      %p336 = pneg %p98
      %p337 = pneg %p95
      %p338 = pneg %p119
      %p339 = pneg %p116
      %p340 = pneg %p140
      %p341 = pneg %p137
      %p342 = pneg %p161
      %p343 = pneg %p158
      %p344 = pneg %p182
      %p345 = pneg %p179
      %p346 = pneg %p210
      %p347 = pneg %p207
      %s348 = smul.u32 2, %s26
      %p349 = scmp.lt.s32.totalorder %s25, 1
      %s350 = scalar_select %p349, %s25, 1
      %p351 = scmp.lt.s32.totalorder %s348, 1
      %s352 = scalar_select %p351, %s348, 1
      %s353 = smul.addr %s350, 8
      %s354 = sadd.s32 %s352, %s353
      %s355 = smul.addr %s354, 4
      %s356 = scalar_lea.vmem %s7, %s355
      %p357 = pneg %p238
      %p358 = pneg %p235
      %s359 = smul.u32 2, %s26
      %p360 = scmp.lt.s32.totalorder %s25, 1
      %s361 = scalar_select %p360, %s25, 1
      %p362 = scmp.lt.s32.totalorder %s359, 1
      %s363 = scalar_select %p362, %s359, 1
      %s364 = smul.addr %s361, 8
      %s365 = sadd.s32 %s363, %s364
      %s366 = smul.addr %s365, 4
      %s367 = scalar_lea.vmem %s8, %s366
      %p368 = pneg %p266
      %p369 = pneg %p263
      %s370 = smul.u32 2, %s26
      %p371 = scmp.lt.s32.totalorder %s25, 1
      %s372 = scalar_select %p371, %s25, 1
      %p373 = scmp.lt.s32.totalorder %s370, 1
      %s374 = scalar_select %p373, %s370, 1
      %s375 = smul.addr %s372, 8
      %s376 = sadd.s32 %s374, %s375
      %s377 = smul.addr %s376, 4
      %s378 = scalar_lea.vmem %s9, %s377
      %s379 = smul.u32 2, %s26
      %p380 = scmp.lt.s32.totalorder %s25, 1
      %s381 = scalar_select %p380, %s25, 1
      %p382 = scmp.lt.s32.totalorder %s379, 1
      %s383 = scalar_select %p382, %s379, 1
      %s384 = smul.addr %s381, 2
      %s385 = sadd.s32 %s383, %s384
      %s386 = smul.addr %s385, 8
      %s387 = scalar_lea.vmem %s0, %s386
      %s388 = smul.u32 2, %s26
      %s389 = smul.u32 2, %s26
      %p390 = scmp.lt.s32.totalorder %s25, 1
      %s391 = scalar_select %p390, %s25, 1
      %p392 = scmp.lt.s32.totalorder %s389, 1
      %s393 = scalar_select %p392, %s389, 1
      %s394 = smul.addr %s391, 8
      %s395 = sadd.s32 %s393, %s394
      %s396 = smul.addr %s395, 4
      %s397 = scalar_lea.vmem %s7, %s396
      %s398 = smul.u32 2, %s26
      %s399 = smul.u32 2, %s26
      %p400 = scmp.lt.s32.totalorder %s25, 1
      %s401 = scalar_select %p400, %s25, 1
      %p402 = scmp.lt.s32.totalorder %s399, 1
      %s403 = scalar_select %p402, %s399, 1
      %s404 = smul.addr %s401, 8
      %s405 = sadd.s32 %s403, %s404
      %s406 = smul.addr %s405, 4
      %s407 = scalar_lea.vmem %s8, %s406
      %s408 = smul.u32 2, %s26
      %s409 = smul.u32 2, %s26
      %p410 = scmp.lt.s32.totalorder %s25, 1
      %s411 = scalar_select %p410, %s25, 1
      %p412 = scmp.lt.s32.totalorder %s409, 1
      %s413 = scalar_select %p412, %s409, 1
      %s414 = smul.addr %s411, 8
      %s415 = sadd.s32 %s413, %s414
      %s416 = smul.addr %s415, 4
      %s417 = scalar_lea.vmem %s9, %s416
      %s418 = smul.u32 2, %s26
      %v420 = vld [vmem:[%s387] sm:$0xff]
      %v421 = vld [vmem:[%s387 + $0x8] sm:$0xff]
      %v422 = vpack.c.bf16 %v421, %v420
      %v423 = vld [vmem:[%s1] sm:$0xf]
      %v424 = vld [vmem:[%s1 + $0x4] sm:$0xf]
      %v425 = vld [vmem:[%s1 + $0x8] sm:$0xf]
      %v426 = vld [vmem:[%s1 + $0xc] sm:$0xf]
      %v427 = vld [vmem:[%s4] sm:$0x1]
      %v429 = vlaneseq
      %v430 = vshrl.u32 %v429, 7
      %v431 = vsub.s32 0, %v430
      %v432 = vrot.slane %v427, %v431
      %v438 = vunpack.c.l.b16 %v423
      %v439 = vunpack.c.l.b16 %v424
      %v440 = vunpack.c.l.b16 %v425
      %v441 = vunpack.c.l.b16 %v426
      %v442 = vpack.c.b16 %v439, %v438
      %v443 = vpack.c.b16 %v441, %v440
      %vm446 = vcmask 261120
      %v448 = vsel %vm446, %v422, 0
      %450 = vmatprep.subr.bf16.mxu0 0
      %451 = vmatpush1.bf16.msra.mxu0 0
      %452 = vmatprep.subr.bf16.mxu0 0
      %453 = vmatpush1.bf16.msra.mxu0 0
      %454 = vmatprep.subr.bf16.mxu0 0
      %455 = vmatpush1.bf16.msra.mxu0 0
      %456 = vmatprep.subr.bf16.mxu0 0
      %457 = vmatpush1.bf16.msra.mxu0 0
      %458 = vmatprep.subr.bf16.mxu0 0
      %459 = vmatpush1.bf16.msra.mxu0 0
      %460 = vmatprep.subr.bf16.mxu0 0
      %461 = vmatpush1.bf16.msra.mxu0 0
      %462 = vmatprep.subr.bf16.mxu0 0
      %463 = vmatpush1.bf16.msra.mxu0 %v443
      %464 = vmatprep.subr.bf16.mxu0 0
      %465 = vmatpush1.bf16.msra.mxu0 %v442
      %466 = vmatprep.subr.bf16.mxu0 0
      %467 = vmatpush2.bf16.msra.mxu0 0
      %468 = vmatprep.subr.bf16.mxu0 0
      %469 = vmatpush2.bf16.msra.mxu0 0
      %470 = vmatprep.subr.bf16.mxu0 0
      %471 = vmatpush2.bf16.msra.mxu0 0
      %472 = vmatprep.subr.bf16.mxu0 0
      %473 = vmatpush2.bf16.msra.mxu0 0
      %474 = vmatprep.subr.bf16.mxu0 0
      %475 = vmatpush2.bf16.msra.mxu0 0
      %476 = vmatprep.subr.bf16.mxu0 0
      %477 = vmatpush2.bf16.msra.mxu0 0
      %478 = vmatprep.subr.bf16.mxu0 0
      %479 = vmatpush2.bf16.msra.mxu0 0
      %480 = vmatprep.subr.bf16.mxu0 0
      %481 = vmatpush2.bf16.msra.mxu0 0
      %482 = vmatprep.mubr.bf16.mxu0 0
      %483 = vmatmul.mubr.bf16.gmra.mxu0 %v448
      %v484 = vpop.f32.mrf.mxu0
      %v485 = vadd.f32 %v432, %v484
      %v486 = vpop.f32.mrf.mxu0
      %v487 = vpop.f32.mrf.mxu0
      %v488 = vadd.f32 %v432, %v487
      %v489 = vpop.f32.mrf.mxu0
      %490 = vdwg.mxu0
      %v491 = vld [vmem:[%s2] sm:$0xf]
      %v492 = vld [vmem:[%s2 + $0x4] sm:$0xf]
      %v493 = vld [vmem:[%s2 + $0x8] sm:$0xf]
      %v494 = vld [vmem:[%s2 + $0xc] sm:$0xf]
      %v495 = vld [vmem:[%s5] sm:$0x1]
      %v497 = vlaneseq
      %v498 = vshrl.u32 %v497, 7
      %v499 = vsub.s32 0, %v498
      %v500 = vrot.slane %v495, %v499
      %v506 = vunpack.c.l.b16 %v491
      %v507 = vunpack.c.l.b16 %v492
      %v508 = vunpack.c.l.b16 %v493
      %v509 = vunpack.c.l.b16 %v494
      %v510 = vpack.c.b16 %v507, %v506
      %v511 = vpack.c.b16 %v509, %v508
      %514 = vmatprep.subr.bf16.mxu0 0
      %515 = vmatpush1.bf16.msra.mxu0 0
      %516 = vmatprep.subr.bf16.mxu0 0
      %517 = vmatpush1.bf16.msra.mxu0 0
      %518 = vmatprep.subr.bf16.mxu0 0
      %519 = vmatpush1.bf16.msra.mxu0 0
      %520 = vmatprep.subr.bf16.mxu0 0
      %521 = vmatpush1.bf16.msra.mxu0 0
      %522 = vmatprep.subr.bf16.mxu0 0
      %523 = vmatpush1.bf16.msra.mxu0 0
      %524 = vmatprep.subr.bf16.mxu0 0
      %525 = vmatpush1.bf16.msra.mxu0 0
      %526 = vmatprep.subr.bf16.mxu0 0
      %527 = vmatpush1.bf16.msra.mxu0 %v511
      %528 = vmatprep.subr.bf16.mxu0 0
      %529 = vmatpush1.bf16.msra.mxu0 %v510
      %530 = vmatprep.subr.bf16.mxu0 0
      %531 = vmatpush2.bf16.msra.mxu0 0
      %532 = vmatprep.subr.bf16.mxu0 0
      %533 = vmatpush2.bf16.msra.mxu0 0
      %534 = vmatprep.subr.bf16.mxu0 0
      %535 = vmatpush2.bf16.msra.mxu0 0
      %536 = vmatprep.subr.bf16.mxu0 0
      %537 = vmatpush2.bf16.msra.mxu0 0
      %538 = vmatprep.subr.bf16.mxu0 0
      %539 = vmatpush2.bf16.msra.mxu0 0
      %540 = vmatprep.subr.bf16.mxu0 0
      %541 = vmatpush2.bf16.msra.mxu0 0
      %542 = vmatprep.subr.bf16.mxu0 0
      %543 = vmatpush2.bf16.msra.mxu0 0
      %544 = vmatprep.subr.bf16.mxu0 0
      %545 = vmatpush2.bf16.msra.mxu0 0
      %546 = vmatprep.mubr.bf16.mxu0 0
      %547 = vmatmul.mubr.bf16.gmra.mxu0 %v448
      %v548 = vpop.f32.mrf.mxu0
      %v549 = vadd.f32 %v500, %v548
      %v550 = vpop.f32.mrf.mxu0
      %v551 = vpop.f32.mrf.mxu0
      %v552 = vadd.f32 %v500, %v551
      %v553 = vpop.f32.mrf.mxu0
      %554 = vdwg.mxu0
      %v555 = vld [vmem:[%s3] sm:$0xf]
      %v556 = vld [vmem:[%s3 + $0x4] sm:$0xf]
      %v557 = vld [vmem:[%s3 + $0x8] sm:$0xf]
      %v558 = vld [vmem:[%s3 + $0xc] sm:$0xf]
      %v559 = vld [vmem:[%s6] sm:$0x1]
      %v561 = vlaneseq
      %v562 = vshrl.u32 %v561, 7
      %v563 = vsub.s32 0, %v562
      %v564 = vrot.slane %v559, %v563
      %v570 = vunpack.c.l.b16 %v555
      %v571 = vunpack.c.l.b16 %v556
      %v572 = vunpack.c.l.b16 %v557
      %v573 = vunpack.c.l.b16 %v558
      %v574 = vpack.c.b16 %v571, %v570
      %v575 = vpack.c.b16 %v573, %v572
      %578 = vmatprep.subr.bf16.mxu0 0
      %579 = vmatpush1.bf16.msra.mxu0 0
      %580 = vmatprep.subr.bf16.mxu0 0
      %581 = vmatpush1.bf16.msra.mxu0 0
      %582 = vmatprep.subr.bf16.mxu0 0
      %583 = vmatpush1.bf16.msra.mxu0 0
      %584 = vmatprep.subr.bf16.mxu0 0
      %585 = vmatpush1.bf16.msra.mxu0 0
      %586 = vmatprep.subr.bf16.mxu0 0
      %587 = vmatpush1.bf16.msra.mxu0 0
      %588 = vmatprep.subr.bf16.mxu0 0
      %589 = vmatpush1.bf16.msra.mxu0 0
      %590 = vmatprep.subr.bf16.mxu0 0
      %591 = vmatpush1.bf16.msra.mxu0 %v575
      %592 = vmatprep.subr.bf16.mxu0 0
      %593 = vmatpush1.bf16.msra.mxu0 %v574
      %594 = vmatprep.subr.bf16.mxu0 0
      %595 = vmatpush2.bf16.msra.mxu0 0
      %596 = vmatprep.subr.bf16.mxu0 0
      %597 = vmatpush2.bf16.msra.mxu0 0
      %598 = vmatprep.subr.bf16.mxu0 0
      %599 = vmatpush2.bf16.msra.mxu0 0
      %600 = vmatprep.subr.bf16.mxu0 0
      %601 = vmatpush2.bf16.msra.mxu0 0
      %602 = vmatprep.subr.bf16.mxu0 0
      %603 = vmatpush2.bf16.msra.mxu0 0
      %604 = vmatprep.subr.bf16.mxu0 0
      %605 = vmatpush2.bf16.msra.mxu0 0
      %606 = vmatprep.subr.bf16.mxu0 0
      %607 = vmatpush2.bf16.msra.mxu0 0
      %608 = vmatprep.subr.bf16.mxu0 0
      %609 = vmatpush2.bf16.msra.mxu0 0
      %610 = vmatprep.mubr.bf16.mxu0 0
      %611 = vmatmul.mubr.bf16.gmra.mxu0 %v448
      %v612 = vpop.f32.mrf.mxu0
      %v613 = vadd.f32 %v564, %v612
      %v614 = vpop.f32.mrf.mxu0
      %v615 = vpop.f32.mrf.mxu0
      %v616 = vadd.f32 %v564, %v615
      %v617 = vpop.f32.mrf.mxu0
      %618 = vdwg.mxu0
      %v619 = vpack.c.bf16 %v488, %v485
      %v621 = vunpack.c.l.b16 %v619
      %v622 = vunpack.c.h.b16 %v619
      %v623 = vpack.c.b16 %v621, %v621
      %v624 = vpack.c.b16 %v622, %v622
      %vm627 = vcmask 60416
      %628 = vst.msk [vmem:[%s397] sm:$0xf] %vm627, %v623
      %629 = vst.msk [vmem:[%s397 + $0x4] sm:$0xf] %vm627, %v624
      %v630 = vpack.c.bf16 %v552, %v549
      %v632 = vunpack.c.l.b16 %v630
      %v633 = vunpack.c.h.b16 %v630
      %v634 = vpack.c.b16 %v632, %v632
      %v635 = vpack.c.b16 %v633, %v633
      %638 = vst.msk [vmem:[%s407] sm:$0xf] %vm627, %v634
      %639 = vst.msk [vmem:[%s407 + $0x4] sm:$0xf] %vm627, %v635
      %v640 = vpack.c.bf16 %v616, %v613
      %v642 = vunpack.c.l.b16 %v640
      %v643 = vunpack.c.h.b16 %v640
      %v644 = vpack.c.b16 %v642, %v642
      %v645 = vpack.c.b16 %v643, %v643
      %648 = vst.msk [vmem:[%s417] sm:$0xf] %vm627, %v644
      %649 = vst.msk [vmem:[%s417 + $0x4] sm:$0xf] %vm627, %v645
      %650 = vrot.lane.b32.xlu0 %v623, 120
      %v651 = vpop.permute.xlu0 %650
      %652 = vrot.lane.b32.xlu0 %v624, 120
      %v653 = vpop.permute.xlu0 %652
      %s656 = scalar_lea.vmem %s397, 8
      %657 = vst.msk [vmem:[%s656] sm:$0xf] %vm627, %v651
      %658 = vst.msk [vmem:[%s656 + $0x4] sm:$0xf] %vm627, %v653
      %659 = vrot.lane.b32.xlu0 %v634, 120
      %v660 = vpop.permute.xlu0 %659
      %661 = vrot.lane.b32.xlu0 %v635, 120
      %v662 = vpop.permute.xlu0 %661
      %s665 = scalar_lea.vmem %s407, 8
      %666 = vst.msk [vmem:[%s665] sm:$0xf] %vm627, %v660
      %667 = vst.msk [vmem:[%s665 + $0x4] sm:$0xf] %vm627, %v662
      %668 = vrot.lane.b32.xlu0 %v644, 120
      %v669 = vpop.permute.xlu0 %668
      %670 = vrot.lane.b32.xlu0 %v645, 120
      %v671 = vpop.permute.xlu0 %670
      %s674 = scalar_lea.vmem %s417, 8
      %675 = vst.msk [vmem:[%s674] sm:$0xf] %vm627, %v669
      %676 = vst.msk [vmem:[%s674 + $0x4] sm:$0xf] %vm627, %v671
      %677 = vrot.lane.b32.xlu0 %v623, 112
      %v678 = vpop.permute.xlu0 %677
      %679 = vrot.lane.b32.xlu0 %v624, 112
      %v680 = vpop.permute.xlu0 %679
      %s683 = scalar_lea.vmem %s397, 16
      %684 = vst.msk [vmem:[%s683] sm:$0xf] %vm627, %v678
      %685 = vst.msk [vmem:[%s683 + $0x4] sm:$0xf] %vm627, %v680
      %686 = vrot.lane.b32.xlu0 %v634, 112
      %v687 = vpop.permute.xlu0 %686
      %688 = vrot.lane.b32.xlu0 %v635, 112
      %v689 = vpop.permute.xlu0 %688
      %s692 = scalar_lea.vmem %s407, 16
      %693 = vst.msk [vmem:[%s692] sm:$0xf] %vm627, %v687
      %694 = vst.msk [vmem:[%s692 + $0x4] sm:$0xf] %vm627, %v689
      %695 = vrot.lane.b32.xlu0 %v644, 112
      %v696 = vpop.permute.xlu0 %695
      %697 = vrot.lane.b32.xlu0 %v645, 112
      %v698 = vpop.permute.xlu0 %697
      %s701 = scalar_lea.vmem %s417, 16
      %702 = vst.msk [vmem:[%s701] sm:$0xf] %vm627, %v696
      %703 = vst.msk [vmem:[%s701 + $0x4] sm:$0xf] %vm627, %v698
      %704 = vrot.lane.b32.xlu0 %v623, 104
      %v705 = vpop.permute.xlu0 %704
      %706 = vrot.lane.b32.xlu0 %v624, 104
      %v707 = vpop.permute.xlu0 %706
      %s710 = scalar_lea.vmem %s397, 24
      %711 = vst.msk [vmem:[%s710] sm:$0xf] %vm627, %v705
      %712 = vst.msk [vmem:[%s710 + $0x4] sm:$0xf] %vm627, %v707
      %713 = vrot.lane.b32.xlu0 %v634, 104
      %v714 = vpop.permute.xlu0 %713
      %715 = vrot.lane.b32.xlu0 %v635, 104
      %v716 = vpop.permute.xlu0 %715
      %s719 = scalar_lea.vmem %s407, 24
      %720 = vst.msk [vmem:[%s719] sm:$0xf] %vm627, %v714
      %721 = vst.msk [vmem:[%s719 + $0x4] sm:$0xf] %vm627, %v716
      %722 = vrot.lane.b32.xlu0 %v644, 104
      %v723 = vpop.permute.xlu0 %722
      %724 = vrot.lane.b32.xlu0 %v645, 104
      %v725 = vpop.permute.xlu0 %724
      %s728 = scalar_lea.vmem %s417, 24
      %729 = vst.msk [vmem:[%s728] sm:$0xf] %vm627, %v723
      %730 = vst.msk [vmem:[%s728 + $0x4] sm:$0xf] %vm627, %v725
      %s731 = smul.u32 2, %s26
      %p732 = scmp.lt.s32.totalorder %s25, 1
      %s733 = scalar_select %p732, %s25, 1
      %p734 = scmp.lt.s32.totalorder %s731, 1
      %s735 = scalar_select %p734, %s731, 1
      %s736 = smul.addr %s733, 8
      %s737 = sadd.s32 %s735, %s736
      %s738 = smul.addr %s737, 4
      %s739 = scalar_lea.vmem %s7, %s738
      %s740 = smul.u32 2, %s26
      %p741 = scmp.lt.s32.totalorder %s25, 1
      %s742 = scalar_select %p741, %s25, 1
      %p743 = scmp.lt.s32.totalorder %s740, 1
      %s744 = scalar_select %p743, %s740, 1
      %s745 = smul.addr %s742, 8
      %s746 = sadd.s32 %s744, %s745
      %s747 = smul.addr %s746, 4
      %s748 = scalar_lea.vmem %s8, %s747
      %s749 = smul.u32 2, %s26
      %p750 = scmp.lt.s32.totalorder %s25, 1
      %s751 = scalar_select %p750, %s25, 1
      %p752 = scmp.lt.s32.totalorder %s749, 1
      %s753 = scalar_select %p752, %s749, 1
      %s754 = smul.addr %s751, 8
      %s755 = sadd.s32 %s753, %s754
      %s756 = smul.addr %s755, 4
      %s757 = scalar_lea.vmem %s9, %s756
      // Predicated region
      $region49: #{memory_efficient_attention.3} parent=47 // pred_check
        %p758 = pneg %p207
      $region50: #{memory_efficient_attention.3} parent=47 // pred_check_branch
        %760 = sbr.rel (%p758) target = $region52
      $region51: #{memory_efficient_attention.3} parent=47 // pred_region
        %s761 = smul.u32 2, %s26
      $region52: #{memory_efficient_attention.3} parent=47 // pred_fallthru
        _
      // Predicated region
      $region53: #{memory_efficient_attention.3} parent=47 // pred_check
        %p762 = pneg %p235
      $region54: #{memory_efficient_attention.3} parent=47 // pred_check_branch
        %764 = sbr.rel (%p762) target = $region56
      $region55: #{memory_efficient_attention.3} parent=47 // pred_region
        %s765 = smul.u32 2, %s26
      $region56: #{memory_efficient_attention.3} parent=47 // pred_fallthru
        _
      // Predicated region
      $region57: #{memory_efficient_attention.3} parent=47 // pred_check
        %p766 = pneg %p263
      $region58: #{memory_efficient_attention.3} parent=47 // pred_check_branch
        %768 = sbr.rel (%p766) target = $region60
      $region59: #{memory_efficient_attention.3} parent=47 // pred_region
        %s769 = smul.u32 2, %s26
      $region60: #{memory_efficient_attention.3} parent=47 // pred_fallthru
        _
    $region48: #{memory_efficient_attention.3} parent=5 // pred_fallthru
      _
    %p770 = scmp.le.s32.totalorder 2, %s16
    // Predicated region
    $region61: #{memory_efficient_attention.3} parent=5 // pred_check
      %p771 = pneg %p770
    $region62: #{memory_efficient_attention.3} parent=5 // pred_check_branch
      %773 = sbr.rel (%p771) target = $region64
    $region63: #{memory_efficient_attention.3} parent=5 // pred_region
      %s774 = ssub.s32 %s16, 2
      // Predicated region
      $region65: #{memory_efficient_attention.3} parent=63 // pred_check
        %p775 = pneg %p213
      $region66: #{memory_efficient_attention.3} parent=63 // pred_check_branch
        %777 = sbr.rel (%p775) target = $region68
      $region67: #{memory_efficient_attention.3} parent=63 // pred_region
        %s778 = smul.u32 2, %s28
        %p779 = scmp.lt.s32.totalorder %s27, 1
        %s780 = scalar_select %p779, %s27, 1
        %p781 = scmp.lt.s32.totalorder %s778, 1
        %s782 = scalar_select %p781, %s778, 1
        %s783 = smul.addr %s780, 8
        %s784 = sadd.s32 %s782, %s783
        %s785 = smul.addr %s784, 4
        %s786 = scalar_lea.vmem %s7, %s785
      $region68: #{memory_efficient_attention.3} parent=63 // pred_fallthru
        _
      // Predicated region
      $region69: #{memory_efficient_attention.3} parent=63 // pred_check
        %p787 = pneg %p241
      $region70: #{memory_efficient_attention.3} parent=63 // pred_check_branch
        %789 = sbr.rel (%p787) target = $region72
      $region71: #{memory_efficient_attention.3} parent=63 // pred_region
        %s790 = smul.u32 2, %s28
        %p791 = scmp.lt.s32.totalorder %s27, 1
        %s792 = scalar_select %p791, %s27, 1
        %p793 = scmp.lt.s32.totalorder %s790, 1
        %s794 = scalar_select %p793, %s790, 1
        %s795 = smul.addr %s792, 8
        %s796 = sadd.s32 %s794, %s795
        %s797 = smul.addr %s796, 4
        %s798 = scalar_lea.vmem %s8, %s797
      $region72: #{memory_efficient_attention.3} parent=63 // pred_fallthru
        _
      // Predicated region
      $region73: #{memory_efficient_attention.3} parent=63 // pred_check
        %p799 = pneg %p269
      $region74: #{memory_efficient_attention.3} parent=63 // pred_check_branch
        %801 = sbr.rel (%p799) target = $region76
      $region75: #{memory_efficient_attention.3} parent=63 // pred_region
        %s802 = smul.u32 2, %s28
        %p803 = scmp.lt.s32.totalorder %s27, 1
        %s804 = scalar_select %p803, %s27, 1
        %p805 = scmp.lt.s32.totalorder %s802, 1
        %s806 = scalar_select %p805, %s802, 1
        %s807 = smul.addr %s804, 8
        %s808 = sadd.s32 %s806, %s807
        %s809 = smul.addr %s808, 4
        %s810 = scalar_lea.vmem %s9, %s809
      $region76: #{memory_efficient_attention.3} parent=63 // pred_fallthru
        _
    $region64: #{memory_efficient_attention.3} parent=5 // pred_fallthru
      _
  $region6: #{memory_efficient_attention.3} parent=0 // loop_footer
    %s20 = sadd.s32 1, %s16
  $region7: #{memory_efficient_attention.3} parent=0 // loop_footer_branch
    %15 = sbr.rel target = $region3
  $region8: #{memory_efficient_attention.3} parent=0 // loop_exit
    _

// kernel: memory_efficient_attention.5
$region0: #{memory_efficient_attention.5}
  #allocation0 [shape = 'u32[]', space=smem, size = 0x4, offset = 0x4, fixed_abs, tag = 'smem constant byte address 0x4 - core index']
  #allocation1 [shape = 'u32[144,128]{1,0:T(1,128)}', space=vmem, size = 0x12000, scoped, tag = 'internal scratch']
  %s0 = inlined_call_operand.vmem [shape: bf16[2,4,16,8], index: 0, kind: input, shape index: {}]
  %s1 = inlined_call_operand.vmem [shape: bf16[32,32], index: 1, kind: input, shape index: {}]
  %s2 = inlined_call_operand.vmem [shape: f32[1,32], index: 2, kind: input, shape index: {}]
  %s3 = inlined_call_operand.hbm [shape: f32[2,16,32], index: 3, kind: output, shape index: {}]
  %s4 = sld [smem:[#allocation0]]
  $region45: #{memory_efficient_attention.5} parent=0
    _
  %s6 = ssub.s32 1, %s4
  %s7 = scalar_select 0, %s6, %s4
  $region1: #{memory_efficient_attention.5} parent=0
    #allocation2 [shape = 'u8[16384]{0}', space=vmem, size = 0x4000, scoped, tag = 'output window, operand 0']
    #allocation3 [shape = 's32[2]{0}', space=sflag, size = 0x8, scoped, tag = 'scoped memory for memory_efficient_attention.5']
    %8 = vsyncpa [#allocation3], 0
    %s9 = scalar_lea.sflag [#allocation3], 1
    %10 = vsyncpa %s9, 0
    loop: start=0, step=1, limit=4
    $region2: #{memory_efficient_attention.5} parent=1 // loop_pre_header
      _
    $region3: #{memory_efficient_attention.5} parent=1 // loop_header
      %s12 = sphi 0, %s16
      %p13 = scmp.ge.s32.totalorder %s12, 4
      %s19 = sphi 0, %s31
      %s20 = sphi 0, %s27
      %s21 = sphi 0, %s19
      %s22 = sphi 0, %s20
      %s23 = sphi 0, %s21
      %s24 = sphi 0, %s22
      %s36 = sphi 0, %s38
      %s39 = sphi 0, %s36
      %s40 = sphi 0, %s39
      %s56 = sphi 0, %s40
      %s60 = sphi 0, %s60
      %s62 = sphi 0, %s60
      %s63 = sphi 0, %s62
      %s77 = sphi 0, %s63
      %s81 = sphi 0, %s81
      %s83 = sphi 0, %s81
      %s84 = sphi 0, %s83
      %s98 = sphi 0, %s84
      %s106 = sphi 0, %s108
      %s109 = sphi 0, %s106
      %s110 = sphi 0, %s109
      %s126 = sphi 0, %s110
    $region4: #{memory_efficient_attention.5} parent=1 // loop_header_branch
      %15 = sbr.rel (%p13) target = $region8
    $region5: #{memory_efficient_attention.5} parent=1 // loop_body
      %s17 = ssub.s32 %s12, 1
      %s18 = ssub.s32 %s12, 2
      %s25 = sadd.s32 1, %s20
      %p26 = scmp.ge.s32.totalorder %s25, 1
      %s27 = scalar_select %p26, 0, %s25
      %s28 = sadd.s32 1, %s19
      %s29 = scalar_select %p26, %s28, %s19
      %p30 = scmp.ge.s32.totalorder %s29, 2
      %s31 = scalar_select %p30, 0, %s29
      %s32 = ssub.s32 %s19, %s31
      %s33 = ssub.s32 %s20, %s27
      %s34 = sor.u32 %s32, %s33
      %p35 = scmp.eq.s32.totalorder %s34, 0
      %s37 = sadd.s32 %s36, 1
      %s38 = scalar_select %p35, %s36, %s37
      %p41 = pneg %p35
      %p42 = scmp.eq.s32.totalorder %s12, 1
      %p43 = por %p41, %p42
      %p44 = scmp.ne.s32.totalorder %s36, %s39
      %p45 = scmp.eq.s32.totalorder %s12, 0
      %p46 = por %p44, %p45
      %p47 = scmp.ne.s32.totalorder %s36, %s39
      %p48 = scmp.eq.s32.totalorder %s17, 1
      %p49 = por %p47, %p48
      %p50 = scmp.ne.s32.totalorder %s39, %s40
      %p51 = scmp.eq.s32.totalorder %s17, 0
      %p52 = por %p50, %p51
      %p53 = scmp.ne.s32.totalorder %s39, %s40
      %p54 = scmp.eq.s32.totalorder %s18, 1
      %p55 = por %p53, %p54
      %p57 = scmp.ne.s32.totalorder %s40, %s56
      %p58 = scmp.eq.s32.totalorder %s18, 0
      %p59 = por %p57, %p58
      %s61 = sadd.s32 %s60, 1
      %p64 = scmp.eq.s32.totalorder %s12, 1
      %p65 = scmp.ne.s32.totalorder %s60, %s62
      %p66 = scmp.eq.s32.totalorder %s12, 0
      %p67 = por %p65, %p66
      %p68 = scmp.ne.s32.totalorder %s60, %s62
      %p69 = scmp.eq.s32.totalorder %s17, 1
      %p70 = por %p68, %p69
      %p71 = scmp.ne.s32.totalorder %s62, %s63
      %p72 = scmp.eq.s32.totalorder %s17, 0
      %p73 = por %p71, %p72
      %p74 = scmp.ne.s32.totalorder %s62, %s63
      %p75 = scmp.eq.s32.totalorder %s18, 1
      %p76 = por %p74, %p75
      %p78 = scmp.ne.s32.totalorder %s63, %s77
      %p79 = scmp.eq.s32.totalorder %s18, 0
      %p80 = por %p78, %p79
      %s82 = sadd.s32 %s81, 1
      %p85 = scmp.eq.s32.totalorder %s12, 1
      %p86 = scmp.ne.s32.totalorder %s81, %s83
      %p87 = scmp.eq.s32.totalorder %s12, 0
      %p88 = por %p86, %p87
      %p89 = scmp.ne.s32.totalorder %s81, %s83
      %p90 = scmp.eq.s32.totalorder %s17, 1
      %p91 = por %p89, %p90
      %p92 = scmp.ne.s32.totalorder %s83, %s84
      %p93 = scmp.eq.s32.totalorder %s17, 0
      %p94 = por %p92, %p93
      %p95 = scmp.ne.s32.totalorder %s83, %s84
      %p96 = scmp.eq.s32.totalorder %s18, 1
      %p97 = por %p95, %p96
      %p99 = scmp.ne.s32.totalorder %s84, %s98
      %p100 = scmp.eq.s32.totalorder %s18, 0
      %p101 = por %p99, %p100
      %s102 = ssub.s32 %s19, %s31
      %s103 = ssub.s32 %s20, %s27
      %s104 = sor.u32 %s102, %s103
      %p105 = scmp.eq.s32.totalorder %s104, 0
      %s107 = sadd.s32 %s106, 1
      %s108 = scalar_select %p105, %s106, %s107
      %p111 = pneg %p105
      %p112 = scmp.eq.s32.totalorder %s12, 1
      %p113 = por %p111, %p112
      %p114 = scmp.ne.s32.totalorder %s106, %s109
      %p115 = scmp.eq.s32.totalorder %s12, 0
      %p116 = por %p114, %p115
      %p117 = scmp.ne.s32.totalorder %s106, %s109
      %p118 = scmp.eq.s32.totalorder %s17, 1
      %p119 = por %p117, %p118
      %p120 = scmp.ne.s32.totalorder %s109, %s110
      %p121 = scmp.eq.s32.totalorder %s17, 0
      %p122 = por %p120, %p121
      %p123 = scmp.ne.s32.totalorder %s109, %s110
      %p124 = scmp.eq.s32.totalorder %s18, 1
      %p125 = por %p123, %p124
      %p127 = scmp.ne.s32.totalorder %s110, %s126
      %p128 = scmp.eq.s32.totalorder %s18, 0
      %p129 = por %p127, %p128
      %p130 = scmp.le.s32.totalorder 1, %s12
      %p131 = scmp.lt.s32.totalorder %s12, 3
      %p132 = pnand %p130, %p131
      %p133 = pneg %p132
      // Predicated region
      $region9: #{memory_efficient_attention.5} parent=5 // pred_check
        _
      $region10: #{memory_efficient_attention.5} parent=5 // pred_check_branch
        %135 = sbr.rel (%p132) target = $region12
      $region11: #{memory_efficient_attention.5} parent=5 // pred_region
        %s136 = ssub.s32 %s12, 1
        // Predicated region
        $region13: #{memory_efficient_attention.5} parent=11 // pred_check
          %p137 = pneg %p73
        $region14: #{memory_efficient_attention.5} parent=11 // pred_check_branch
          %139 = sbr.rel (%p137) target = $region16
        $region15: #{memory_efficient_attention.5} parent=11 // pred_region
          _
        $region16: #{memory_efficient_attention.5} parent=11 // pred_fallthru
          _
        // Predicated region
        $region17: #{memory_efficient_attention.5} parent=11 // pred_check
          %p140 = pneg %p94
        $region18: #{memory_efficient_attention.5} parent=11 // pred_check_branch
          %142 = sbr.rel (%p140) target = $region20
        $region19: #{memory_efficient_attention.5} parent=11 // pred_region
          _
        $region20: #{memory_efficient_attention.5} parent=11 // pred_fallthru
          _
      $region12: #{memory_efficient_attention.5} parent=5 // pred_fallthru
        _
      %p143 = scmp.lt.s32.totalorder %s12, 2
      // Predicated region
      $region21: #{memory_efficient_attention.5} parent=5 // pred_check
        %p144 = pneg %p143
      $region22: #{memory_efficient_attention.5} parent=5 // pred_check_branch
        %146 = sbr.rel (%p144) target = $region24
      $region23: #{memory_efficient_attention.5} parent=5 // pred_region
        // Predicated region
        $region25: #{memory_efficient_attention.5} parent=23 // pred_check
          %p147 = pneg %p46
        $region26: #{memory_efficient_attention.5} parent=23 // pred_check_branch
          %149 = sbr.rel (%p147) target = $region28
        $region27: #{memory_efficient_attention.5} parent=23 // pred_region
          %s150 = smul.u32 2, %s20
          %p151 = scmp.lt.s32.totalorder %s19, 1
          %s152 = scalar_select %p151, %s19, 1
          %p153 = scmp.lt.s32.totalorder %s150, 1
          %s154 = scalar_select %p153, %s150, 1
          %s155 = smul.addr %s152, 8
          %s156 = sadd.s32 %s154, %s155
          %s157 = smul.addr %s156, 4
          %s158 = scalar_lea.vmem %s0, %s157
          %s159 = smul.u32 2, %s20
        $region28: #{memory_efficient_attention.5} parent=23 // pred_fallthru
          _
      $region24: #{memory_efficient_attention.5} parent=5 // pred_fallthru
        _
      %p160 = scmp.le.s32.totalorder 1, %s12
      %p161 = scmp.lt.s32.totalorder %s12, 3
      %p162 = pnand %p160, %p161
      %p163 = pneg %p162
      // Predicated region
      $region29: #{memory_efficient_attention.5} parent=5 // pred_check
        _
      $region30: #{memory_efficient_attention.5} parent=5 // pred_check_branch
        %165 = sbr.rel (%p162) target = $region32
      $region31: #{memory_efficient_attention.5} parent=5 // pred_region
        %s166 = ssub.s32 %s12, 1
        %s167 = smul.u32 2, %s22
        %p168 = scmp.lt.s32.totalorder %s21, 1
        %s169 = scalar_select %p168, %s21, 1
        %p170 = scmp.lt.s32.totalorder %s167, 1
        %s171 = scalar_select %p170, %s167, 1
        %s172 = smul.addr %s169, 8
        %s173 = sadd.s32 %s171, %s172
        %s174 = smul.addr %s173, 4
        %s175 = scalar_lea.vmem %s0, %s174
        %p176 = pneg %p52
        %p177 = pneg %p49
        %p178 = pneg %p73
        %p179 = pneg %p70
        %p180 = pneg %p94
        %p181 = pneg %p91
        %p182 = pneg %p122
        %p183 = pneg %p119
        %s184 = sand.u32 %s109, 1
        %s185 = scalar_lea.sflag [#allocation3], %s184
        %s186 = sand.u32 %s109, 1
        %s187 = smul.addr %s186, 16
        %s188 = scalar_lea.vmem [#allocation2], %s187
        %s189 = smul.u32 2, %s22
        %p190 = scmp.lt.s32.totalorder %s21, 1
        %s191 = scalar_select %p190, %s21, 1
        %p192 = scmp.lt.s32.totalorder %s189, 1
        %s193 = scalar_select %p192, %s189, 1
        %s194 = smul.addr %s191, 8
        %s195 = sadd.s32 %s193, %s194
        %s196 = smul.addr %s195, 4
        %s197 = scalar_lea.vmem %s0, %s196
        %s198 = smul.u32 2, %s22
        %s199 = smul.u32 2, %s22
        %v201 = vld [vmem:[%s197] sm:$0xf]
        %v202 = vld [vmem:[%s197 + $0x4] sm:$0xf]
        %v203 = vld [vmem:[%s1] sm:$0xf]
        %s204 = scalar_lea.vmem %s197, 8
        %v205 = vld [vmem:[%s204] sm:$0xf]
        %v206 = vld [vmem:[%s204 + $0x4] sm:$0xf]
        %v207 = vld [vmem:[%s1 + $0x4] sm:$0xf]
        %v210 = vunpack.c.l.b16 %v205
        %v211 = vunpack.c.l.b16 %v206
        %v212 = vpack.c.b16 %v211, %v210
        %vm213 = vcmask 64512
        %v215 = vsel %vm213, %v212, 0
        %vm217 = vcmask 1043456
        %v219 = vsel %vm217, %v207, 0
        %221 = vmatprep.subr.bf16.mxu0 0
        %222 = vmatpush1.bf16.msra.mxu0 0
        %223 = vmatprep.subr.bf16.mxu0 0
        %224 = vmatpush1.bf16.msra.mxu0 0
        %225 = vmatprep.subr.bf16.mxu0 0
        %226 = vmatpush1.bf16.msra.mxu0 0
        %227 = vmatprep.subr.bf16.mxu0 0
        %228 = vmatpush1.bf16.msra.mxu0 0
        %229 = vmatprep.subr.bf16.mxu0 0
        %230 = vmatpush1.bf16.msra.mxu0 0
        %231 = vmatprep.subr.bf16.mxu0 0
        %232 = vmatpush1.bf16.msra.mxu0 0
        %233 = vmatprep.subr.bf16.mxu0 0
        %234 = vmatpush1.bf16.msra.mxu0 0
        %235 = vmatprep.subr.bf16.mxu0 0
        %236 = vmatpush1.bf16.msra.mxu0 %v219
        %237 = vmatprep.subr.bf16.mxu0 0
        %238 = vmatpush2.bf16.msra.mxu0 0
        %239 = vmatprep.subr.bf16.mxu0 0
        %240 = vmatpush2.bf16.msra.mxu0 0
        %241 = vmatprep.subr.bf16.mxu0 0
        %242 = vmatpush2.bf16.msra.mxu0 0
        %243 = vmatprep.subr.bf16.mxu0 0
        %244 = vmatpush2.bf16.msra.mxu0 0
        %245 = vmatprep.subr.bf16.mxu0 0
        %246 = vmatpush2.bf16.msra.mxu0 0
        %247 = vmatprep.subr.bf16.mxu0 0
        %248 = vmatpush2.bf16.msra.mxu0 0
        %249 = vmatprep.subr.bf16.mxu0 0
        %250 = vmatpush2.bf16.msra.mxu0 0
        %251 = vmatprep.subr.bf16.mxu0 0
        %252 = vmatpush2.bf16.msra.mxu0 0
        %253 = vmatprep.mubr.bf16.mxu0 0
        %254 = vmatmul.mubr.bf16.gmra.mxu0 %v215
        %v255 = vpop.f32.mrf.mxu0
        %v256 = vadd.f32 0.0, %v255
        %v257 = vpop.f32.mrf.mxu0
        %v258 = vpop.f32.mrf.mxu0
        %v259 = vadd.f32 0.0, %v258
        %v260 = vpop.f32.mrf.mxu0
        %261 = vdwg.mxu0
        %v264 = vunpack.c.l.b16 %v201
        %v265 = vunpack.c.l.b16 %v202
        %v266 = vpack.c.b16 %v265, %v264
        %v268 = vsel %vm213, %v266, 0
        %v271 = vsel %vm217, %v203, 0
        %273 = vmatprep.subr.bf16.mxu0 0
        %274 = vmatpush1.bf16.msra.mxu0 0
        %275 = vmatprep.subr.bf16.mxu0 0
        %276 = vmatpush1.bf16.msra.mxu0 0
        %277 = vmatprep.subr.bf16.mxu0 0
        %278 = vmatpush1.bf16.msra.mxu0 0
        %279 = vmatprep.subr.bf16.mxu0 0
        %280 = vmatpush1.bf16.msra.mxu0 0
        %281 = vmatprep.subr.bf16.mxu0 0
        %282 = vmatpush1.bf16.msra.mxu0 0
        %283 = vmatprep.subr.bf16.mxu0 0
        %284 = vmatpush1.bf16.msra.mxu0 0
        %285 = vmatprep.subr.bf16.mxu0 0
        %286 = vmatpush1.bf16.msra.mxu0 0
        %287 = vmatprep.subr.bf16.mxu0 0
        %288 = vmatpush1.bf16.msra.mxu0 %v271
        %289 = vmatprep.subr.bf16.mxu0 0
        %290 = vmatpush2.bf16.msra.mxu0 0
        %291 = vmatprep.subr.bf16.mxu0 0
        %292 = vmatpush2.bf16.msra.mxu0 0
        %293 = vmatprep.subr.bf16.mxu0 0
        %294 = vmatpush2.bf16.msra.mxu0 0
        %295 = vmatprep.subr.bf16.mxu0 0
        %296 = vmatpush2.bf16.msra.mxu0 0
        %297 = vmatprep.subr.bf16.mxu0 0
        %298 = vmatpush2.bf16.msra.mxu0 0
        %299 = vmatprep.subr.bf16.mxu0 0
        %300 = vmatpush2.bf16.msra.mxu0 0
        %301 = vmatprep.subr.bf16.mxu0 0
        %302 = vmatpush2.bf16.msra.mxu0 0
        %303 = vmatprep.subr.bf16.mxu0 0
        %304 = vmatpush2.bf16.msra.mxu0 0
        %305 = vmatprep.mubr.bf16.mxu0 0
        %306 = vmatmul.mubr.bf16.gmra.mxu0 %v268
        %v307 = vpop.f32.mrf.mxu0
        %v308 = vadd.f32 %v256, %v307
        %v309 = vpop.f32.mrf.mxu0
        %v310 = vpop.f32.mrf.mxu0
        %v311 = vadd.f32 %v259, %v310
        %v312 = vpop.f32.mrf.mxu0
        %313 = vdwg.mxu0
        %s314 = scalar_lea.vmem %s197, 16
        %v315 = vld [vmem:[%s314] sm:$0xf]
        %v316 = vld [vmem:[%s314 + $0x4] sm:$0xf]
        %v317 = vld [vmem:[%s1 + $0x8] sm:$0xf]
        %v320 = vunpack.c.l.b16 %v315
        %v321 = vunpack.c.l.b16 %v316
        %v322 = vpack.c.b16 %v321, %v320
        %v324 = vsel %vm213, %v322, 0
        %v327 = vsel %vm217, %v317, 0
        %329 = vmatprep.subr.bf16.mxu0 0
        %330 = vmatpush1.bf16.msra.mxu0 0
        %331 = vmatprep.subr.bf16.mxu0 0
        %332 = vmatpush1.bf16.msra.mxu0 0
        %333 = vmatprep.subr.bf16.mxu0 0
        %334 = vmatpush1.bf16.msra.mxu0 0
        %335 = vmatprep.subr.bf16.mxu0 0
        %336 = vmatpush1.bf16.msra.mxu0 0
        %337 = vmatprep.subr.bf16.mxu0 0
        %338 = vmatpush1.bf16.msra.mxu0 0
        %339 = vmatprep.subr.bf16.mxu0 0
        %340 = vmatpush1.bf16.msra.mxu0 0
        %341 = vmatprep.subr.bf16.mxu0 0
        %342 = vmatpush1.bf16.msra.mxu0 0
        %343 = vmatprep.subr.bf16.mxu0 0
        %344 = vmatpush1.bf16.msra.mxu0 %v327
        %345 = vmatprep.subr.bf16.mxu0 0
        %346 = vmatpush2.bf16.msra.mxu0 0
        %347 = vmatprep.subr.bf16.mxu0 0
        %348 = vmatpush2.bf16.msra.mxu0 0
        %349 = vmatprep.subr.bf16.mxu0 0
        %350 = vmatpush2.bf16.msra.mxu0 0
        %351 = vmatprep.subr.bf16.mxu0 0
        %352 = vmatpush2.bf16.msra.mxu0 0
        %353 = vmatprep.subr.bf16.mxu0 0
        %354 = vmatpush2.bf16.msra.mxu0 0
        %355 = vmatprep.subr.bf16.mxu0 0
        %356 = vmatpush2.bf16.msra.mxu0 0
        %357 = vmatprep.subr.bf16.mxu0 0
        %358 = vmatpush2.bf16.msra.mxu0 0
        %359 = vmatprep.subr.bf16.mxu0 0
        %360 = vmatpush2.bf16.msra.mxu0 0
        %361 = vmatprep.mubr.bf16.mxu0 0
        %362 = vmatmul.mubr.bf16.gmra.mxu0 %v324
        %v363 = vpop.f32.mrf.mxu0
        %v364 = vadd.f32 0.0, %v363
        %v365 = vpop.f32.mrf.mxu0
        %v366 = vpop.f32.mrf.mxu0
        %v367 = vadd.f32 0.0, %v366
        %v368 = vpop.f32.mrf.mxu0
        %369 = vdwg.mxu0
        %v370 = vadd.f32 %v308, %v364
        %v371 = vadd.f32 %v311, %v367
        %s372 = scalar_lea.vmem %s197, 24
        %v373 = vld [vmem:[%s372] sm:$0xf]
        %v374 = vld [vmem:[%s372 + $0x4] sm:$0xf]
        %v375 = vld [vmem:[%s1 + $0xc] sm:$0xf]
        %v378 = vunpack.c.l.b16 %v373
        %v379 = vunpack.c.l.b16 %v374
        %v380 = vpack.c.b16 %v379, %v378
        %v382 = vsel %vm213, %v380, 0
        %v385 = vsel %vm217, %v375, 0
        %387 = vmatprep.subr.bf16.mxu0 0
        %388 = vmatpush1.bf16.msra.mxu0 0
        %389 = vmatprep.subr.bf16.mxu0 0
        %390 = vmatpush1.bf16.msra.mxu0 0
        %391 = vmatprep.subr.bf16.mxu0 0
        %392 = vmatpush1.bf16.msra.mxu0 0
        %393 = vmatprep.subr.bf16.mxu0 0
        %394 = vmatpush1.bf16.msra.mxu0 0
        %395 = vmatprep.subr.bf16.mxu0 0
        %396 = vmatpush1.bf16.msra.mxu0 0
        %397 = vmatprep.subr.bf16.mxu0 0
        %398 = vmatpush1.bf16.msra.mxu0 0
        %399 = vmatprep.subr.bf16.mxu0 0
        %400 = vmatpush1.bf16.msra.mxu0 0
        %401 = vmatprep.subr.bf16.mxu0 0
        %402 = vmatpush1.bf16.msra.mxu0 %v385
        %403 = vmatprep.subr.bf16.mxu0 0
        %404 = vmatpush2.bf16.msra.mxu0 0
        %405 = vmatprep.subr.bf16.mxu0 0
        %406 = vmatpush2.bf16.msra.mxu0 0
        %407 = vmatprep.subr.bf16.mxu0 0
        %408 = vmatpush2.bf16.msra.mxu0 0
        %409 = vmatprep.subr.bf16.mxu0 0
        %410 = vmatpush2.bf16.msra.mxu0 0
        %411 = vmatprep.subr.bf16.mxu0 0
        %412 = vmatpush2.bf16.msra.mxu0 0
        %413 = vmatprep.subr.bf16.mxu0 0
        %414 = vmatpush2.bf16.msra.mxu0 0
        %415 = vmatprep.subr.bf16.mxu0 0
        %416 = vmatpush2.bf16.msra.mxu0 0
        %417 = vmatprep.subr.bf16.mxu0 0
        %418 = vmatpush2.bf16.msra.mxu0 0
        %419 = vmatprep.mubr.bf16.mxu0 0
        %420 = vmatmul.mubr.bf16.gmra.mxu0 %v382
        %v421 = vpop.f32.mrf.mxu0
        %v422 = vadd.f32 0.0, %v421
        %v423 = vpop.f32.mrf.mxu0
        %v424 = vpop.f32.mrf.mxu0
        %v425 = vadd.f32 0.0, %v424
        %v426 = vpop.f32.mrf.mxu0
        %427 = vdwg.mxu0
        %v428 = vadd.f32 %v370, %v422
        %v429 = vadd.f32 %v371, %v425
        %v430 = vld [vmem:[%s2] sm:$0x1]
        %v432 = vlaneseq
        %v433 = vshrl.u32 %v432, 7
        %v434 = vsub.s32 0, %v433
        %v435 = vrot.slane %v430, %v434
        %v437 = vadd.f32 %v428, %v435
        %v438 = vadd.f32 %v429, %v435
        %vm439 = vcmask 261120
        %440 = vst.msk [vmem:[%s188] sm:$0xff] %vm439, %v437
        %441 = vst.msk [vmem:[%s188 + $0x8] sm:$0xff] %vm439, %v438
        %s442 = sand.u32 %s109, 1
        %s443 = scalar_lea.sflag [#allocation3], %s442
        %s444 = sand.u32 %s109, 1
        %s445 = smul.addr %s444, 16
        %s446 = scalar_lea.vmem [#allocation2], %s445
        // Predicated region
        $region33: #{memory_efficient_attention.5} parent=31 // pred_check
          %p447 = pneg %p119
        $region34: #{memory_efficient_attention.5} parent=31 // pred_check_branch
          %449 = sbr.rel (%p447) target = $region36
        $region35: #{memory_efficient_attention.5} parent=31 // pred_region
          %s450 = smul.u32 2, %s22
          %s452 = ssub.s32 256, 256
          %453 = vsyncadd %s443, %s452
          %s454 = smul.addr %s21, 2
          %s455 = sadd.s32 %s450, %s454
          %s456 = smul.addr %s455, 128
          %s457 = scalar_lea.hbm %s3, %s456
          %s458 = sshll.u32 %s446, 4
          %s459 = int_to_ptr.vmem [resolvable:$true] %s458
          %464 = dma.vmem_to_hbm [thread:$0]  %s459, 256, %s457, %s443, 128, 128, 8
        $region36: #{memory_efficient_attention.5} parent=31 // pred_fallthru
          _
      $region32: #{memory_efficient_attention.5} parent=5 // pred_fallthru
        _
      %p465 = scmp.le.s32.totalorder 2, %s12
      // Predicated region
      $region37: #{memory_efficient_attention.5} parent=5 // pred_check
        %p466 = pneg %p465
      $region38: #{memory_efficient_attention.5} parent=5 // pred_check_branch
        %468 = sbr.rel (%p466) target = $region40
      $region39: #{memory_efficient_attention.5} parent=5 // pred_region
        %s469 = ssub.s32 %s12, 2
        // Predicated region
        $region41: #{memory_efficient_attention.5} parent=39 // pred_check
          %p470 = pneg %p125
        $region42: #{memory_efficient_attention.5} parent=39 // pred_check_branch
          %472 = sbr.rel (%p470) target = $region44
        $region43: #{memory_efficient_attention.5} parent=39 // pred_region
          %s473 = sand.u32 %s110, 1
          %s474 = scalar_lea.sflag [#allocation3], %s473
          %s475 = sand.u32 %s110, 1
          %s476 = smul.addr %s475, 16
          %s477 = scalar_lea.vmem [#allocation2], %s476
          %478 = dma.done %s474, 256
        $region44: #{memory_efficient_attention.5} parent=39 // pred_fallthru
          _
      $region40: #{memory_efficient_attention.5} parent=5 // pred_fallthru
        _
    $region6: #{memory_efficient_attention.5} parent=1 // loop_footer
      %s16 = sadd.s32 1, %s12
    $region7: #{memory_efficient_attention.5} parent=1 // loop_footer_branch
      %11 = sbr.rel target = $region3
    $region8: #{memory_efficient_attention.5} parent=1 // loop_exit
      _
    %479 = vsyncpa [#allocation3], 1
    %s480 = scalar_lea.sflag [#allocation3], 1
    %481 = vsyncpa %s480, 1

// kernel: memory_efficient_attention.4
$region0: #{memory_efficient_attention.4}
  #allocation0 [shape = 'u32[]', space=smem, size = 0x4, offset = 0x4, fixed_abs, tag = 'smem constant byte address 0x4 - core index']
  #allocation1 [shape = 'u32[144,128]{1,0:T(1,128)}', space=vmem, size = 0x12000, scoped, tag = 'internal scratch']
  #allocation2 [shape = 'f32[4,8,1]{2,1,0:T(8,128)}', space=vmem, size = 0x4000, scoped, tag = 'scratch operand']
  #allocation3 [shape = 'f32[4,8,1]{2,1,0:T(8,128)}', space=vmem, size = 0x4000, scoped, tag = 'scratch operand']
  #allocation4 [shape = 'f32[4,8,8]{2,1,0:T(8,128)}', space=vmem, size = 0x4000, scoped, tag = 'scratch operand']
  %s0 = inlined_call_operand.vmem [shape: bf16[2,4,16,8], index: 0, kind: input, shape index: {}]
  %s1 = inlined_call_operand.vmem [shape: bf16[2,4,16,8], index: 1, kind: input, shape index: {}]
  %s2 = inlined_call_operand.vmem [shape: bf16[2,4,16,8], index: 2, kind: input, shape index: {}]
  %s3 = inlined_call_operand.vmem [shape: bf16[2,4,16,8], index: 3, kind: output, shape index: {}]
  %s4 = sld [smem:[#allocation0]]
  $region213: #{memory_efficient_attention.4} parent=0
    _
  %s6 = ssub.s32 1, %s4
  %s7 = scalar_select 0, %s6, %s4
  $region1: #{memory_efficient_attention.4} parent=0
    #allocation5 [shape = 'u8[16384]{0}', space=vmem, size = 0x4000, scoped, tag = 'input window, operand 0']
    #allocation6 [shape = 'u8[16384]{0}', space=vmem, size = 0x4000, scoped, tag = 'input window, operand 1']
    #allocation7 [shape = 'u8[16384]{0}', space=vmem, size = 0x4000, scoped, tag = 'input window, operand 2']
    #allocation8 [shape = 'u8[16384]{0}', space=vmem, size = 0x4000, scoped, tag = 'output window, operand 0']
    loop: start=0, step=1, limit=10
    $region2: #{memory_efficient_attention.4} parent=1 // loop_pre_header
      _
    $region3: #{memory_efficient_attention.4} parent=1 // loop_header
      %s9 = sphi 0, %s13
      %p10 = scmp.ge.s32.totalorder %s9, 10
      %s16 = sphi 0, %s35
      %s17 = sphi 0, %s31
      %s18 = sphi 0, %s27
      %s19 = sphi 0, %s16
      %s20 = sphi 0, %s17
      %s21 = sphi 0, %s18
      %s22 = sphi 0, %s19
      %s23 = sphi 0, %s20
      %s24 = sphi 0, %s21
      %s40 = sphi 0, %s42
      %s43 = sphi 0, %s40
      %s44 = sphi 0, %s43
      %s60 = sphi 0, %s44
      %s68 = sphi 0, %s70
      %s71 = sphi 0, %s68
      %s72 = sphi 0, %s71
      %s88 = sphi 0, %s72
      %s96 = sphi 0, %s98
      %s99 = sphi 0, %s96
      %s100 = sphi 0, %s99
      %s116 = sphi 0, %s100
      %s124 = sphi 0, %s126
      %s127 = sphi 0, %s124
      %s128 = sphi 0, %s127
      %s144 = sphi 0, %s128
    $region4: #{memory_efficient_attention.4} parent=1 // loop_header_branch
      %12 = sbr.rel (%p10) target = $region8
    $region5: #{memory_efficient_attention.4} parent=1 // loop_body
      %s14 = ssub.s32 %s9, 1
      %s15 = ssub.s32 %s9, 2
      %s25 = sadd.s32 1, %s18
      %p26 = scmp.ge.s32.totalorder %s25, 2
      %s27 = scalar_select %p26, 0, %s25
      %s28 = sadd.s32 1, %s17
      %s29 = scalar_select %p26, %s28, %s17
      %p30 = scmp.ge.s32.totalorder %s29, 2
      %s31 = scalar_select %p30, 0, %s29
      %s32 = sadd.s32 1, %s16
      %s33 = scalar_select %p30, %s32, %s16
      %p34 = scmp.ge.s32.totalorder %s33, 2
      %s35 = scalar_select %p34, 0, %s33
      %s36 = ssub.s32 %s16, %s35
      %s37 = ssub.s32 %s17, %s31
      %s38 = sor.u32 %s36, %s37
      %p39 = scmp.eq.s32.totalorder %s38, 0
      %s41 = sadd.s32 %s40, 1
      %s42 = scalar_select %p39, %s40, %s41
      %p45 = pneg %p39
      %p46 = scmp.eq.s32.totalorder %s9, 7
      %p47 = por %p45, %p46
      %p48 = scmp.ne.s32.totalorder %s40, %s43
      %p49 = scmp.eq.s32.totalorder %s9, 0
      %p50 = por %p48, %p49
      %p51 = scmp.ne.s32.totalorder %s40, %s43
      %p52 = scmp.eq.s32.totalorder %s14, 7
      %p53 = por %p51, %p52
      %p54 = scmp.ne.s32.totalorder %s43, %s44
      %p55 = scmp.eq.s32.totalorder %s14, 0
      %p56 = por %p54, %p55
      %p57 = scmp.ne.s32.totalorder %s43, %s44
      %p58 = scmp.eq.s32.totalorder %s15, 7
      %p59 = por %p57, %p58
      %p61 = scmp.ne.s32.totalorder %s44, %s60
      %p62 = scmp.eq.s32.totalorder %s15, 0
      %p63 = por %p61, %p62
      %s64 = ssub.s32 %s16, %s35
      %s65 = ssub.s32 %s18, %s27
      %s66 = sor.u32 %s64, %s65
      %p67 = scmp.eq.s32.totalorder %s66, 0
      %s69 = sadd.s32 %s68, 1
      %s70 = scalar_select %p67, %s68, %s69
      %p73 = pneg %p67
      %p74 = scmp.eq.s32.totalorder %s9, 7
      %p75 = por %p73, %p74
      %p76 = scmp.ne.s32.totalorder %s68, %s71
      %p77 = scmp.eq.s32.totalorder %s9, 0
      %p78 = por %p76, %p77
      %p79 = scmp.ne.s32.totalorder %s68, %s71
      %p80 = scmp.eq.s32.totalorder %s14, 7
      %p81 = por %p79, %p80
      %p82 = scmp.ne.s32.totalorder %s71, %s72
      %p83 = scmp.eq.s32.totalorder %s14, 0
      %p84 = por %p82, %p83
      %p85 = scmp.ne.s32.totalorder %s71, %s72
      %p86 = scmp.eq.s32.totalorder %s15, 7
      %p87 = por %p85, %p86
      %p89 = scmp.ne.s32.totalorder %s72, %s88
      %p90 = scmp.eq.s32.totalorder %s15, 0
      %p91 = por %p89, %p90
      %s92 = ssub.s32 %s16, %s35
      %s93 = ssub.s32 %s18, %s27
      %s94 = sor.u32 %s92, %s93
      %p95 = scmp.eq.s32.totalorder %s94, 0
      %s97 = sadd.s32 %s96, 1
      %s98 = scalar_select %p95, %s96, %s97
      %p101 = pneg %p95
      %p102 = scmp.eq.s32.totalorder %s9, 7
      %p103 = por %p101, %p102
      %p104 = scmp.ne.s32.totalorder %s96, %s99
      %p105 = scmp.eq.s32.totalorder %s9, 0
      %p106 = por %p104, %p105
      %p107 = scmp.ne.s32.totalorder %s96, %s99
      %p108 = scmp.eq.s32.totalorder %s14, 7
      %p109 = por %p107, %p108
      %p110 = scmp.ne.s32.totalorder %s99, %s100
      %p111 = scmp.eq.s32.totalorder %s14, 0
      %p112 = por %p110, %p111
      %p113 = scmp.ne.s32.totalorder %s99, %s100
      %p114 = scmp.eq.s32.totalorder %s15, 7
      %p115 = por %p113, %p114
      %p117 = scmp.ne.s32.totalorder %s100, %s116
      %p118 = scmp.eq.s32.totalorder %s15, 0
      %p119 = por %p117, %p118
      %s120 = ssub.s32 %s16, %s35
      %s121 = ssub.s32 %s17, %s31
      %s122 = sor.u32 %s120, %s121
      %p123 = scmp.eq.s32.totalorder %s122, 0
      %s125 = sadd.s32 %s124, 1
      %s126 = scalar_select %p123, %s124, %s125
      %p129 = pneg %p123
      %p130 = scmp.eq.s32.totalorder %s9, 7
      %p131 = por %p129, %p130
      %p132 = scmp.ne.s32.totalorder %s124, %s127
      %p133 = scmp.eq.s32.totalorder %s9, 0
      %p134 = por %p132, %p133
      %p135 = scmp.ne.s32.totalorder %s124, %s127
      %p136 = scmp.eq.s32.totalorder %s14, 7
      %p137 = por %p135, %p136
      %p138 = scmp.ne.s32.totalorder %s127, %s128
      %p139 = scmp.eq.s32.totalorder %s14, 0
      %p140 = por %p138, %p139
      %p141 = scmp.ne.s32.totalorder %s127, %s128
      %p142 = scmp.eq.s32.totalorder %s15, 7
      %p143 = por %p141, %p142
      %p145 = scmp.ne.s32.totalorder %s128, %s144
      %p146 = scmp.eq.s32.totalorder %s15, 0
      %p147 = por %p145, %p146
      %p148 = scmp.le.s32.totalorder 1, %s9
      %p149 = scmp.lt.s32.totalorder %s9, 9
      %p150 = pnand %p148, %p149
      %p151 = pneg %p150
      // Predicated region
      $region9: #{memory_efficient_attention.4} parent=5 // pred_check
        _
      $region10: #{memory_efficient_attention.4} parent=5 // pred_check_branch
        %153 = sbr.rel (%p150) target = $region12
      $region11: #{memory_efficient_attention.4} parent=5 // pred_region
        %s154 = ssub.s32 %s9, 1
      $region12: #{memory_efficient_attention.4} parent=5 // pred_fallthru
        _
      %p155 = scmp.lt.s32.totalorder %s9, 8
      // Predicated region
      $region13: #{memory_efficient_attention.4} parent=5 // pred_check
        %p156 = pneg %p155
      $region14: #{memory_efficient_attention.4} parent=5 // pred_check_branch
        %158 = sbr.rel (%p156) target = $region16
      $region15: #{memory_efficient_attention.4} parent=5 // pred_region
        // Predicated region
        $region17: #{memory_efficient_attention.4} parent=15 // pred_check
          %p159 = pneg %p50
        $region18: #{memory_efficient_attention.4} parent=15 // pred_check_branch
          %161 = sbr.rel (%p159) target = $region20
        $region19: #{memory_efficient_attention.4} parent=15 // pred_region
          %s162 = sand.u32 %s40, 1
          %s163 = sand.u32 %s40, 1
          %s164 = smul.addr %s163, 16
          %s165 = scalar_lea.vmem [#allocation5], %s164
          %s166 = smul.addr %s16, 8
          %s167 = sadd.s32 %s17, %s166
          %s168 = smul.addr %s167, 4
          %s169 = scalar_lea.vmem %s0, %s168
          // Predicated region
          $region21: #{memory_efficient_attention.4} parent=19 // pred_check
            _
          $region22: #{memory_efficient_attention.4} parent=19 // pred_check_branch
            %171 = sbr.rel (0) target = $region24
          $region23: #{memory_efficient_attention.4} parent=19 // pred_region
            // Predicated region
            $region25: #{memory_efficient_attention.4} parent=23 // pred_check
              _
            $region26: #{memory_efficient_attention.4} parent=23 // pred_check_branch
              %173 = sbr.rel target = $region28
            $region27: #{memory_efficient_attention.4} parent=23 // pred_region
              // Predicated region
              $region40: #{memory_efficient_attention.4} parent=27 // pred_check
                _
              $region41: #{memory_efficient_attention.4} parent=27 // pred_check_branch
                %195 = sbr.rel (0) target = $region43
              $region42: #{memory_efficient_attention.4} parent=27 // pred_region
                loop: start=0, step=1, limit=1
                $region44: #{memory_efficient_attention.4} parent=42 // loop_pre_header
                  _
                $region45: #{memory_efficient_attention.4} parent=42 // loop_header
                  %s197 = sphi 0, %s201
                  %p198 = scmp.ge.s32.totalorder %s197, 1
                  %s202 = sphi %s169, %s169
                  %s203 = sphi %s165, %s165
                $region46: #{memory_efficient_attention.4} parent=42 // loop_header_branch
                  %200 = sbr.rel (%p198) target = $region50
                $region47: #{memory_efficient_attention.4} parent=42 // loop_body
                  _
                $region48: #{memory_efficient_attention.4} parent=42 // loop_footer
                  %s201 = sadd.s32 1, %s197
                $region49: #{memory_efficient_attention.4} parent=42 // loop_footer_branch
                  %196 = sbr.rel target = $region45
                $region50: #{memory_efficient_attention.4} parent=42 // loop_exit
                  _
                %s205 = ssub.s32 16, 1
                loop: start=0, step=1, limit=1
                $region51: #{memory_efficient_attention.4} parent=42 // loop_pre_header
                  _
                $region52: #{memory_efficient_attention.4} parent=42 // loop_header
                  %s207 = sphi 0, %s211
                  %p208 = scmp.ge.s32.totalorder %s207, 1
                  %s212 = sphi %s169, %s169
                  %s213 = sphi %s165, %s165
                $region53: #{memory_efficient_attention.4} parent=42 // loop_header_branch
                  %210 = sbr.rel (%p208) target = $region57
                $region54: #{memory_efficient_attention.4} parent=42 // loop_body
                  %v214 = vld [vmem:[%s212] sm:%s205]
                  %215 = vst [vmem:[%s213] sm:%s205] %v214
                  %v216 = vld [vmem:[%s212 + $0x8] sm:%s205]
                  %217 = vst [vmem:[%s213 + $0x4] sm:%s205] %v216
                  %v218 = vld [vmem:[%s212 + $0x10] sm:%s205]
                  %219 = vst [vmem:[%s213 + $0x8] sm:%s205] %v218
                  %v220 = vld [vmem:[%s212 + $0x18] sm:%s205]
                  %221 = vst [vmem:[%s213 + $0xc] sm:%s205] %v220
                $region55: #{memory_efficient_attention.4} parent=42 // loop_footer
                  %s211 = sadd.s32 1, %s207
                $region56: #{memory_efficient_attention.4} parent=42 // loop_footer_branch
                  %206 = sbr.rel target = $region52
                $region57: #{memory_efficient_attention.4} parent=42 // loop_exit
                  _
              $region43: #{memory_efficient_attention.4} parent=27 // pred_fallthru
                _
            $region28: #{memory_efficient_attention.4} parent=23 // pred_fallthru
              _
            // Predicated region
            $region29: #{memory_efficient_attention.4} parent=23 // pred_check
              _
            $region30: #{memory_efficient_attention.4} parent=23 // pred_check_branch
              %175 = sbr.rel (0) target = $region32
            $region31: #{memory_efficient_attention.4} parent=23 // pred_region
              %s177 = ssub.s32 16, 1
              loop: start=0, step=1, limit=1
              $region33: #{memory_efficient_attention.4} parent=31 // loop_pre_header
                _
              $region34: #{memory_efficient_attention.4} parent=31 // loop_header
                %s179 = sphi 0, %s183
                %p180 = scmp.ge.s32.totalorder %s179, 1
                %s184 = sphi %s169, %s169
                %s185 = sphi %s165, %s165
              $region35: #{memory_efficient_attention.4} parent=31 // loop_header_branch
                %182 = sbr.rel (%p180) target = $region39
              $region36: #{memory_efficient_attention.4} parent=31 // loop_body
                %v186 = vld [vmem:[%s184] sm:%s177]
                %187 = vst [vmem:[%s185] sm:%s177] %v186
                %v188 = vld [vmem:[%s184 + $0x8] sm:%s177]
                %189 = vst [vmem:[%s185 + $0x4] sm:%s177] %v188
                %v190 = vld [vmem:[%s184 + $0x10] sm:%s177]
                %191 = vst [vmem:[%s185 + $0x8] sm:%s177] %v190
                %v192 = vld [vmem:[%s184 + $0x18] sm:%s177]
                %193 = vst [vmem:[%s185 + $0xc] sm:%s177] %v192
              $region37: #{memory_efficient_attention.4} parent=31 // loop_footer
                %s183 = sadd.s32 1, %s179
              $region38: #{memory_efficient_attention.4} parent=31 // loop_footer_branch
                %178 = sbr.rel target = $region34
              $region39: #{memory_efficient_attention.4} parent=31 // loop_exit
                _
            $region32: #{memory_efficient_attention.4} parent=23 // pred_fallthru
              _
          $region24: #{memory_efficient_attention.4} parent=19 // pred_fallthru
            _
          %222 = vnop
        $region20: #{memory_efficient_attention.4} parent=15 // pred_fallthru
          _
        // Predicated region
        $region58: #{memory_efficient_attention.4} parent=15 // pred_check
          %p223 = pneg %p78
        $region59: #{memory_efficient_attention.4} parent=15 // pred_check_branch
          %225 = sbr.rel (%p223) target = $region61
        $region60: #{memory_efficient_attention.4} parent=15 // pred_region
          %s226 = sand.u32 %s68, 1
          %s227 = sand.u32 %s68, 1
          %s228 = smul.addr %s227, 16
          %s229 = scalar_lea.vmem [#allocation6], %s228
          %s230 = smul.addr %s16, 8
          %s231 = sadd.s32 %s18, %s230
          %s232 = smul.addr %s231, 4
          %s233 = scalar_lea.vmem %s1, %s232
          // Predicated region
          $region62: #{memory_efficient_attention.4} parent=60 // pred_check
            _
          $region63: #{memory_efficient_attention.4} parent=60 // pred_check_branch
            %235 = sbr.rel (0) target = $region65
          $region64: #{memory_efficient_attention.4} parent=60 // pred_region
            // Predicated region
            $region66: #{memory_efficient_attention.4} parent=64 // pred_check
              _
            $region67: #{memory_efficient_attention.4} parent=64 // pred_check_branch
              %237 = sbr.rel target = $region69
            $region68: #{memory_efficient_attention.4} parent=64 // pred_region
              // Predicated region
              $region81: #{memory_efficient_attention.4} parent=68 // pred_check
                _
              $region82: #{memory_efficient_attention.4} parent=68 // pred_check_branch
                %259 = sbr.rel (0) target = $region84
              $region83: #{memory_efficient_attention.4} parent=68 // pred_region
                loop: start=0, step=1, limit=1
                $region85: #{memory_efficient_attention.4} parent=83 // loop_pre_header
                  _
                $region86: #{memory_efficient_attention.4} parent=83 // loop_header
                  %s261 = sphi 0, %s265
                  %p262 = scmp.ge.s32.totalorder %s261, 1
                  %s266 = sphi %s233, %s233
                  %s267 = sphi %s229, %s229
                $region87: #{memory_efficient_attention.4} parent=83 // loop_header_branch
                  %264 = sbr.rel (%p262) target = $region91
                $region88: #{memory_efficient_attention.4} parent=83 // loop_body
                  _
                $region89: #{memory_efficient_attention.4} parent=83 // loop_footer
                  %s265 = sadd.s32 1, %s261
                $region90: #{memory_efficient_attention.4} parent=83 // loop_footer_branch
                  %260 = sbr.rel target = $region86
                $region91: #{memory_efficient_attention.4} parent=83 // loop_exit
                  _
                %s269 = ssub.s32 16, 1
                loop: start=0, step=1, limit=1
                $region92: #{memory_efficient_attention.4} parent=83 // loop_pre_header
                  _
                $region93: #{memory_efficient_attention.4} parent=83 // loop_header
                  %s271 = sphi 0, %s275
                  %p272 = scmp.ge.s32.totalorder %s271, 1
                  %s276 = sphi %s233, %s233
                  %s277 = sphi %s229, %s229
                $region94: #{memory_efficient_attention.4} parent=83 // loop_header_branch
                  %274 = sbr.rel (%p272) target = $region98
                $region95: #{memory_efficient_attention.4} parent=83 // loop_body
                  %v278 = vld [vmem:[%s276] sm:%s269]
                  %279 = vst [vmem:[%s277] sm:%s269] %v278
                  %v280 = vld [vmem:[%s276 + $0x8] sm:%s269]
                  %281 = vst [vmem:[%s277 + $0x4] sm:%s269] %v280
                  %v282 = vld [vmem:[%s276 + $0x10] sm:%s269]
                  %283 = vst [vmem:[%s277 + $0x8] sm:%s269] %v282
                  %v284 = vld [vmem:[%s276 + $0x18] sm:%s269]
                  %285 = vst [vmem:[%s277 + $0xc] sm:%s269] %v284
                $region96: #{memory_efficient_attention.4} parent=83 // loop_footer
                  %s275 = sadd.s32 1, %s271
                $region97: #{memory_efficient_attention.4} parent=83 // loop_footer_branch
                  %270 = sbr.rel target = $region93
                $region98: #{memory_efficient_attention.4} parent=83 // loop_exit
                  _
              $region84: #{memory_efficient_attention.4} parent=68 // pred_fallthru
                _
            $region69: #{memory_efficient_attention.4} parent=64 // pred_fallthru
              _
            // Predicated region
            $region70: #{memory_efficient_attention.4} parent=64 // pred_check
              _
            $region71: #{memory_efficient_attention.4} parent=64 // pred_check_branch
              %239 = sbr.rel (0) target = $region73
            $region72: #{memory_efficient_attention.4} parent=64 // pred_region
              %s241 = ssub.s32 16, 1
              loop: start=0, step=1, limit=1
              $region74: #{memory_efficient_attention.4} parent=72 // loop_pre_header
                _
              $region75: #{memory_efficient_attention.4} parent=72 // loop_header
                %s243 = sphi 0, %s247
                %p244 = scmp.ge.s32.totalorder %s243, 1
                %s248 = sphi %s233, %s233
                %s249 = sphi %s229, %s229
              $region76: #{memory_efficient_attention.4} parent=72 // loop_header_branch
                %246 = sbr.rel (%p244) target = $region80
              $region77: #{memory_efficient_attention.4} parent=72 // loop_body
                %v250 = vld [vmem:[%s248] sm:%s241]
                %251 = vst [vmem:[%s249] sm:%s241] %v250
                %v252 = vld [vmem:[%s248 + $0x8] sm:%s241]
                %253 = vst [vmem:[%s249 + $0x4] sm:%s241] %v252
                %v254 = vld [vmem:[%s248 + $0x10] sm:%s241]
                %255 = vst [vmem:[%s249 + $0x8] sm:%s241] %v254
                %v256 = vld [vmem:[%s248 + $0x18] sm:%s241]
                %257 = vst [vmem:[%s249 + $0xc] sm:%s241] %v256
              $region78: #{memory_efficient_attention.4} parent=72 // loop_footer
                %s247 = sadd.s32 1, %s243
              $region79: #{memory_efficient_attention.4} parent=72 // loop_footer_branch
                %242 = sbr.rel target = $region75
              $region80: #{memory_efficient_attention.4} parent=72 // loop_exit
                _
            $region73: #{memory_efficient_attention.4} parent=64 // pred_fallthru
              _
          $region65: #{memory_efficient_attention.4} parent=60 // pred_fallthru
            _
          %286 = vnop
        $region61: #{memory_efficient_attention.4} parent=15 // pred_fallthru
          _
        // Predicated region
        $region99: #{memory_efficient_attention.4} parent=15 // pred_check
          %p287 = pneg %p106
        $region100: #{memory_efficient_attention.4} parent=15 // pred_check_branch
          %289 = sbr.rel (%p287) target = $region102
        $region101: #{memory_efficient_attention.4} parent=15 // pred_region
          %s290 = sand.u32 %s96, 1
          %s291 = sand.u32 %s96, 1
          %s292 = smul.addr %s291, 16
          %s293 = scalar_lea.vmem [#allocation7], %s292
          %s294 = smul.addr %s16, 8
          %s295 = sadd.s32 %s18, %s294
          %s296 = smul.addr %s295, 4
          %s297 = scalar_lea.vmem %s2, %s296
          // Predicated region
          $region103: #{memory_efficient_attention.4} parent=101 // pred_check
            _
          $region104: #{memory_efficient_attention.4} parent=101 // pred_check_branch
            %299 = sbr.rel (0) target = $region106
          $region105: #{memory_efficient_attention.4} parent=101 // pred_region
            // Predicated region
            $region107: #{memory_efficient_attention.4} parent=105 // pred_check
              _
            $region108: #{memory_efficient_attention.4} parent=105 // pred_check_branch
              %301 = sbr.rel target = $region110
            $region109: #{memory_efficient_attention.4} parent=105 // pred_region
              // Predicated region
              $region122: #{memory_efficient_attention.4} parent=109 // pred_check
                _
              $region123: #{memory_efficient_attention.4} parent=109 // pred_check_branch
                %323 = sbr.rel (0) target = $region125
              $region124: #{memory_efficient_attention.4} parent=109 // pred_region
                loop: start=0, step=1, limit=1
                $region126: #{memory_efficient_attention.4} parent=124 // loop_pre_header
                  _
                $region127: #{memory_efficient_attention.4} parent=124 // loop_header
                  %s325 = sphi 0, %s329
                  %p326 = scmp.ge.s32.totalorder %s325, 1
                  %s330 = sphi %s297, %s297
                  %s331 = sphi %s293, %s293
                $region128: #{memory_efficient_attention.4} parent=124 // loop_header_branch
                  %328 = sbr.rel (%p326) target = $region132
                $region129: #{memory_efficient_attention.4} parent=124 // loop_body
                  _
                $region130: #{memory_efficient_attention.4} parent=124 // loop_footer
                  %s329 = sadd.s32 1, %s325
                $region131: #{memory_efficient_attention.4} parent=124 // loop_footer_branch
                  %324 = sbr.rel target = $region127
                $region132: #{memory_efficient_attention.4} parent=124 // loop_exit
                  _
                %s333 = ssub.s32 16, 1
                loop: start=0, step=1, limit=1
                $region133: #{memory_efficient_attention.4} parent=124 // loop_pre_header
                  _
                $region134: #{memory_efficient_attention.4} parent=124 // loop_header
                  %s335 = sphi 0, %s339
                  %p336 = scmp.ge.s32.totalorder %s335, 1
                  %s340 = sphi %s297, %s297
                  %s341 = sphi %s293, %s293
                $region135: #{memory_efficient_attention.4} parent=124 // loop_header_branch
                  %338 = sbr.rel (%p336) target = $region139
                $region136: #{memory_efficient_attention.4} parent=124 // loop_body
                  %v342 = vld [vmem:[%s340] sm:%s333]
                  %343 = vst [vmem:[%s341] sm:%s333] %v342
                  %v344 = vld [vmem:[%s340 + $0x8] sm:%s333]
                  %345 = vst [vmem:[%s341 + $0x4] sm:%s333] %v344
                  %v346 = vld [vmem:[%s340 + $0x10] sm:%s333]
                  %347 = vst [vmem:[%s341 + $0x8] sm:%s333] %v346
                  %v348 = vld [vmem:[%s340 + $0x18] sm:%s333]
                  %349 = vst [vmem:[%s341 + $0xc] sm:%s333] %v348
                $region137: #{memory_efficient_attention.4} parent=124 // loop_footer
                  %s339 = sadd.s32 1, %s335
                $region138: #{memory_efficient_attention.4} parent=124 // loop_footer_branch
                  %334 = sbr.rel target = $region134
                $region139: #{memory_efficient_attention.4} parent=124 // loop_exit
                  _
              $region125: #{memory_efficient_attention.4} parent=109 // pred_fallthru
                _
            $region110: #{memory_efficient_attention.4} parent=105 // pred_fallthru
              _
            // Predicated region
            $region111: #{memory_efficient_attention.4} parent=105 // pred_check
              _
            $region112: #{memory_efficient_attention.4} parent=105 // pred_check_branch
              %303 = sbr.rel (0) target = $region114
            $region113: #{memory_efficient_attention.4} parent=105 // pred_region
              %s305 = ssub.s32 16, 1
              loop: start=0, step=1, limit=1
              $region115: #{memory_efficient_attention.4} parent=113 // loop_pre_header
                _
              $region116: #{memory_efficient_attention.4} parent=113 // loop_header
                %s307 = sphi 0, %s311
                %p308 = scmp.ge.s32.totalorder %s307, 1
                %s312 = sphi %s297, %s297
                %s313 = sphi %s293, %s293
              $region117: #{memory_efficient_attention.4} parent=113 // loop_header_branch
                %310 = sbr.rel (%p308) target = $region121
              $region118: #{memory_efficient_attention.4} parent=113 // loop_body
                %v314 = vld [vmem:[%s312] sm:%s305]
                %315 = vst [vmem:[%s313] sm:%s305] %v314
                %v316 = vld [vmem:[%s312 + $0x8] sm:%s305]
                %317 = vst [vmem:[%s313 + $0x4] sm:%s305] %v316
                %v318 = vld [vmem:[%s312 + $0x10] sm:%s305]
                %319 = vst [vmem:[%s313 + $0x8] sm:%s305] %v318
                %v320 = vld [vmem:[%s312 + $0x18] sm:%s305]
                %321 = vst [vmem:[%s313 + $0xc] sm:%s305] %v320
              $region119: #{memory_efficient_attention.4} parent=113 // loop_footer
                %s311 = sadd.s32 1, %s307
              $region120: #{memory_efficient_attention.4} parent=113 // loop_footer_branch
                %306 = sbr.rel target = $region116
              $region121: #{memory_efficient_attention.4} parent=113 // loop_exit
                _
            $region114: #{memory_efficient_attention.4} parent=105 // pred_fallthru
              _
          $region106: #{memory_efficient_attention.4} parent=101 // pred_fallthru
            _
          %350 = vnop
        $region102: #{memory_efficient_attention.4} parent=15 // pred_fallthru
          _
      $region16: #{memory_efficient_attention.4} parent=5 // pred_fallthru
        _
      %p351 = scmp.le.s32.totalorder 1, %s9
      %p352 = scmp.lt.s32.totalorder %s9, 9
      %p353 = pnand %p351, %p352
      %p354 = pneg %p353
      // Predicated region
      $region140: #{memory_efficient_attention.4} parent=5 // pred_check
        _
      $region141: #{memory_efficient_attention.4} parent=5 // pred_check_branch
        %356 = sbr.rel (%p353) target = $region143
      $region142: #{memory_efficient_attention.4} parent=5 // pred_region
        %s357 = ssub.s32 %s9, 1
        %s358 = sand.u32 %s43, 1
        %s359 = sand.u32 %s43, 1
        %s360 = smul.addr %s359, 16
        %s361 = scalar_lea.vmem [#allocation5], %s360
        // Predicated region
        $region144: #{memory_efficient_attention.4} parent=142 // pred_check
          %p362 = pneg %p56
        $region145: #{memory_efficient_attention.4} parent=142 // pred_check_branch
          %364 = sbr.rel (%p362) target = $region147
        $region146: #{memory_efficient_attention.4} parent=142 // pred_region
          _
        $region147: #{memory_efficient_attention.4} parent=142 // pred_fallthru
          _
        %s365 = sand.u32 %s71, 1
        %s366 = sand.u32 %s71, 1
        %s367 = smul.addr %s366, 16
        %s368 = scalar_lea.vmem [#allocation6], %s367
        // Predicated region
        $region148: #{memory_efficient_attention.4} parent=142 // pred_check
          %p369 = pneg %p84
        $region149: #{memory_efficient_attention.4} parent=142 // pred_check_branch
          %371 = sbr.rel (%p369) target = $region151
        $region150: #{memory_efficient_attention.4} parent=142 // pred_region
          _
        $region151: #{memory_efficient_attention.4} parent=142 // pred_fallthru
          _
        %s372 = sand.u32 %s99, 1
        %s373 = sand.u32 %s99, 1
        %s374 = smul.addr %s373, 16
        %s375 = scalar_lea.vmem [#allocation7], %s374
        // Predicated region
        $region152: #{memory_efficient_attention.4} parent=142 // pred_check
          %p376 = pneg %p112
        $region153: #{memory_efficient_attention.4} parent=142 // pred_check_branch
          %378 = sbr.rel (%p376) target = $region155
        $region154: #{memory_efficient_attention.4} parent=142 // pred_region
          _
        $region155: #{memory_efficient_attention.4} parent=142 // pred_fallthru
          _
        %s379 = sand.u32 %s43, 1
        %s380 = sand.u32 %s43, 1
        %s381 = smul.addr %s380, 16
        %s382 = scalar_lea.vmem [#allocation5], %s381
        %p383 = pneg %p56
        %p384 = pneg %p53
        %s385 = sand.u32 %s71, 1
        %s386 = sand.u32 %s71, 1
        %s387 = smul.addr %s386, 16
        %s388 = scalar_lea.vmem [#allocation6], %s387
        %p389 = pneg %p84
        %p390 = pneg %p81
        %s391 = sand.u32 %s99, 1
        %s392 = sand.u32 %s99, 1
        %s393 = smul.addr %s392, 16
        %s394 = scalar_lea.vmem [#allocation7], %s393
        %p395 = pneg %p112
        %p396 = pneg %p109
        %p397 = pneg %p140
        %p398 = pneg %p137
        %s399 = sand.u32 %s127, 1
        %s400 = sand.u32 %s127, 1
        %s401 = smul.addr %s400, 16
        %s402 = scalar_lea.vmem [#allocation8], %s401
        %p404 = scmp.eq.s32.totalorder %s21, 0
        // Predicated region
        $region156: #{memory_efficient_attention.4} parent=142 // pred_check
          %p405 = pneg %p404
        $region157: #{memory_efficient_attention.4} parent=142 // pred_check_branch
          %407 = sbr.rel (%p405) target = $region159
        $region158: #{memory_efficient_attention.4} parent=142 // pred_region
          %vm408 = vcmask 7168
          %409 = vst.msk [vmem:[#allocation2] sm:$0xff] %vm408, -1e+30
          %410 = vst.msk [vmem:[#allocation2 + $0x8] sm:$0xff] %vm408, -1e+30
          %411 = vst.msk [vmem:[#allocation2 + $0x10] sm:$0xff] %vm408, -1e+30
          %412 = vst.msk [vmem:[#allocation2 + $0x18] sm:$0xff] %vm408, -1e+30
          %413 = vst.msk [vmem:[#allocation3] sm:$0xff] %vm408, 0.0
          %414 = vst.msk [vmem:[#allocation3 + $0x8] sm:$0xff] %vm408, 0.0
          %415 = vst.msk [vmem:[#allocation3 + $0x10] sm:$0xff] %vm408, 0.0
          %416 = vst.msk [vmem:[#allocation3 + $0x18] sm:$0xff] %vm408, 0.0
          %vm417 = vcmask 64512
          %418 = vst.msk [vmem:[#allocation4] sm:$0xff] %vm417, 0.0
          %419 = vst.msk [vmem:[#allocation4 + $0x8] sm:$0xff] %vm417, 0.0
          %420 = vst.msk [vmem:[#allocation4 + $0x10] sm:$0xff] %vm417, 0.0
          %421 = vst.msk [vmem:[#allocation4 + $0x18] sm:$0xff] %vm417, 0.0
        $region159: #{memory_efficient_attention.4} parent=142 // pred_fallthru
          _
        %v422 = vld [vmem:[%s361] sm:$0xf]
        %v423 = vld [vmem:[%s361 + $0x4] sm:$0xf]
        %v424 = vld [vmem:[%s361 + $0x8] sm:$0xf]
        %v425 = vld [vmem:[%s361 + $0xc] sm:$0xf]
        %v426 = vld [vmem:[%s368] sm:$0xf]
        %v427 = vld [vmem:[%s368 + $0x4] sm:$0xf]
        %v428 = vld [vmem:[%s368 + $0x8] sm:$0xf]
        %v429 = vld [vmem:[%s368 + $0xc] sm:$0xf]
        %v430 = vld [vmem:[%s375] sm:$0xf]
        %v431 = vld [vmem:[%s375 + $0x4] sm:$0xf]
        %v432 = vld [vmem:[%s375 + $0x8] sm:$0xf]
        %v433 = vld [vmem:[%s375 + $0xc] sm:$0xf]
        %vm434 = vcmask 64512
        %v436 = vsel %vm434, %v422, 0
        %v439 = vsel %vm434, %v426, 0
        %441 = vmatprep.subr.bf16.mxu0 0
        %442 = vmatpush1.bf16.xpose.msra.mxu0 0
        %443 = vmatprep.subr.bf16.mxu0 0
        %444 = vmatpush1.bf16.xpose.msra.mxu0 0
        %445 = vmatprep.subr.bf16.mxu0 0
        %446 = vmatpush1.bf16.xpose.msra.mxu0 0
        %447 = vmatprep.subr.bf16.mxu0 0
        %448 = vmatpush1.bf16.xpose.msra.mxu0 0
        %449 = vmatprep.subr.bf16.mxu0 0
        %450 = vmatpush1.bf16.xpose.msra.mxu0 0
        %451 = vmatprep.subr.bf16.mxu0 0
        %452 = vmatpush1.bf16.xpose.msra.mxu0 0
        %453 = vmatprep.subr.bf16.mxu0 0
        %454 = vmatpush1.bf16.xpose.msra.mxu0 0
        %455 = vmatprep.subr.bf16.mxu0 0
        %456 = vmatpush1.bf16.xpose.msra.mxu0 %v439
        %457 = vmatprep.subr.bf16.mxu0 0
        %458 = vmatpush2.bf16.xpose.msra.mxu0 0
        %459 = vmatprep.subr.bf16.mxu0 0
        %460 = vmatpush2.bf16.xpose.msra.mxu0 0
        %461 = vmatprep.subr.bf16.mxu0 0
        %462 = vmatpush2.bf16.xpose.msra.mxu0 0
        %463 = vmatprep.subr.bf16.mxu0 0
        %464 = vmatpush2.bf16.xpose.msra.mxu0 0
        %465 = vmatprep.subr.bf16.mxu0 0
        %466 = vmatpush2.bf16.xpose.msra.mxu0 0
        %467 = vmatprep.subr.bf16.mxu0 0
        %468 = vmatpush2.bf16.xpose.msra.mxu0 0
        %469 = vmatprep.subr.bf16.mxu0 0
        %470 = vmatpush2.bf16.xpose.msra.mxu0 0
        %471 = vmatprep.subr.bf16.mxu0 0
        %472 = vmatpush2.bf16.xpose.msra.mxu0 0
        %473 = vmatprep.mubr.bf16.mxu0 0
        %474 = vmatmul.mubr.bf16.gmra.mxu0 %v436
        %v475 = vpop.f32.mrf.mxu0
        %v476 = vadd.f32 0.0, %v475
        %v477 = vpop.f32.mrf.mxu0
        %v478 = vpop.f32.mrf.mxu0
        %v479 = vpop.f32.mrf.mxu0
        %480 = vdwg.mxu0
        %v482 = vsel %vm434, %v423, 0
        %v485 = vsel %vm434, %v427, 0
        %487 = vmatprep.subr.bf16.mxu0 0
        %488 = vmatpush1.bf16.xpose.msra.mxu0 0
        %489 = vmatprep.subr.bf16.mxu0 0
        %490 = vmatpush1.bf16.xpose.msra.mxu0 0
        %491 = vmatprep.subr.bf16.mxu0 0
        %492 = vmatpush1.bf16.xpose.msra.mxu0 0
        %493 = vmatprep.subr.bf16.mxu0 0
        %494 = vmatpush1.bf16.xpose.msra.mxu0 0
        %495 = vmatprep.subr.bf16.mxu0 0
        %496 = vmatpush1.bf16.xpose.msra.mxu0 0
        %497 = vmatprep.subr.bf16.mxu0 0
        %498 = vmatpush1.bf16.xpose.msra.mxu0 0
        %499 = vmatprep.subr.bf16.mxu0 0
        %500 = vmatpush1.bf16.xpose.msra.mxu0 0
        %501 = vmatprep.subr.bf16.mxu0 0
        %502 = vmatpush1.bf16.xpose.msra.mxu0 %v485
        %503 = vmatprep.subr.bf16.mxu0 0
        %504 = vmatpush2.bf16.xpose.msra.mxu0 0
        %505 = vmatprep.subr.bf16.mxu0 0
        %506 = vmatpush2.bf16.xpose.msra.mxu0 0
        %507 = vmatprep.subr.bf16.mxu0 0
        %508 = vmatpush2.bf16.xpose.msra.mxu0 0
        %509 = vmatprep.subr.bf16.mxu0 0
        %510 = vmatpush2.bf16.xpose.msra.mxu0 0
        %511 = vmatprep.subr.bf16.mxu0 0
        %512 = vmatpush2.bf16.xpose.msra.mxu0 0
        %513 = vmatprep.subr.bf16.mxu0 0
        %514 = vmatpush2.bf16.xpose.msra.mxu0 0
        %515 = vmatprep.subr.bf16.mxu0 0
        %516 = vmatpush2.bf16.xpose.msra.mxu0 0
        %517 = vmatprep.subr.bf16.mxu0 0
        %518 = vmatpush2.bf16.xpose.msra.mxu0 0
        %519 = vmatprep.mubr.bf16.mxu0 0
        %520 = vmatmul.mubr.bf16.gmra.mxu0 %v482
        %v521 = vpop.f32.mrf.mxu0
        %v522 = vadd.f32 0.0, %v521
        %v523 = vpop.f32.mrf.mxu0
        %v524 = vpop.f32.mrf.mxu0
        %v525 = vpop.f32.mrf.mxu0
        %526 = vdwg.mxu0
        %v528 = vsel %vm434, %v424, 0
        %v531 = vsel %vm434, %v428, 0
        %533 = vmatprep.subr.bf16.mxu0 0
        %534 = vmatpush1.bf16.xpose.msra.mxu0 0
        %535 = vmatprep.subr.bf16.mxu0 0
        %536 = vmatpush1.bf16.xpose.msra.mxu0 0
        %537 = vmatprep.subr.bf16.mxu0 0
        %538 = vmatpush1.bf16.xpose.msra.mxu0 0
        %539 = vmatprep.subr.bf16.mxu0 0
        %540 = vmatpush1.bf16.xpose.msra.mxu0 0
        %541 = vmatprep.subr.bf16.mxu0 0
        %542 = vmatpush1.bf16.xpose.msra.mxu0 0
        %543 = vmatprep.subr.bf16.mxu0 0
        %544 = vmatpush1.bf16.xpose.msra.mxu0 0
        %545 = vmatprep.subr.bf16.mxu0 0
        %546 = vmatpush1.bf16.xpose.msra.mxu0 0
        %547 = vmatprep.subr.bf16.mxu0 0
        %548 = vmatpush1.bf16.xpose.msra.mxu0 %v531
        %549 = vmatprep.subr.bf16.mxu0 0
        %550 = vmatpush2.bf16.xpose.msra.mxu0 0
        %551 = vmatprep.subr.bf16.mxu0 0
        %552 = vmatpush2.bf16.xpose.msra.mxu0 0
        %553 = vmatprep.subr.bf16.mxu0 0
        %554 = vmatpush2.bf16.xpose.msra.mxu0 0
        %555 = vmatprep.subr.bf16.mxu0 0
        %556 = vmatpush2.bf16.xpose.msra.mxu0 0
        %557 = vmatprep.subr.bf16.mxu0 0
        %558 = vmatpush2.bf16.xpose.msra.mxu0 0
        %559 = vmatprep.subr.bf16.mxu0 0
        %560 = vmatpush2.bf16.xpose.msra.mxu0 0
        %561 = vmatprep.subr.bf16.mxu0 0
        %562 = vmatpush2.bf16.xpose.msra.mxu0 0
        %563 = vmatprep.subr.bf16.mxu0 0
        %564 = vmatpush2.bf16.xpose.msra.mxu0 0
        %565 = vmatprep.mubr.bf16.mxu0 0
        %566 = vmatmul.mubr.bf16.gmra.mxu0 %v528
        %v567 = vpop.f32.mrf.mxu0
        %v568 = vadd.f32 0.0, %v567
        %v569 = vpop.f32.mrf.mxu0
        %v570 = vpop.f32.mrf.mxu0
        %v571 = vpop.f32.mrf.mxu0
        %572 = vdwg.mxu0
        %v574 = vsel %vm434, %v425, 0
        %v577 = vsel %vm434, %v429, 0
        %579 = vmatprep.subr.bf16.mxu0 0
        %580 = vmatpush1.bf16.xpose.msra.mxu0 0
        %581 = vmatprep.subr.bf16.mxu0 0
        %582 = vmatpush1.bf16.xpose.msra.mxu0 0
        %583 = vmatprep.subr.bf16.mxu0 0
        %584 = vmatpush1.bf16.xpose.msra.mxu0 0
        %585 = vmatprep.subr.bf16.mxu0 0
        %586 = vmatpush1.bf16.xpose.msra.mxu0 0
        %587 = vmatprep.subr.bf16.mxu0 0
        %588 = vmatpush1.bf16.xpose.msra.mxu0 0
        %589 = vmatprep.subr.bf16.mxu0 0
        %590 = vmatpush1.bf16.xpose.msra.mxu0 0
        %591 = vmatprep.subr.bf16.mxu0 0
        %592 = vmatpush1.bf16.xpose.msra.mxu0 0
        %593 = vmatprep.subr.bf16.mxu0 0
        %594 = vmatpush1.bf16.xpose.msra.mxu0 %v577
        %595 = vmatprep.subr.bf16.mxu0 0
        %596 = vmatpush2.bf16.xpose.msra.mxu0 0
        %597 = vmatprep.subr.bf16.mxu0 0
        %598 = vmatpush2.bf16.xpose.msra.mxu0 0
        %599 = vmatprep.subr.bf16.mxu0 0
        %600 = vmatpush2.bf16.xpose.msra.mxu0 0
        %601 = vmatprep.subr.bf16.mxu0 0
        %602 = vmatpush2.bf16.xpose.msra.mxu0 0
        %603 = vmatprep.subr.bf16.mxu0 0
        %604 = vmatpush2.bf16.xpose.msra.mxu0 0
        %605 = vmatprep.subr.bf16.mxu0 0
        %606 = vmatpush2.bf16.xpose.msra.mxu0 0
        %607 = vmatprep.subr.bf16.mxu0 0
        %608 = vmatpush2.bf16.xpose.msra.mxu0 0
        %609 = vmatprep.subr.bf16.mxu0 0
        %610 = vmatpush2.bf16.xpose.msra.mxu0 0
        %611 = vmatprep.mubr.bf16.mxu0 0
        %612 = vmatmul.mubr.bf16.gmra.mxu0 %v574
        %v613 = vpop.f32.mrf.mxu0
        %v614 = vadd.f32 0.0, %v613
        %v615 = vpop.f32.mrf.mxu0
        %v616 = vpop.f32.mrf.mxu0
        %v617 = vpop.f32.mrf.mxu0
        %618 = vdwg.mxu0
        %v619 = vld [vmem:[#allocation2] sm:$0xff]
        %v620 = vld [vmem:[#allocation2 + $0x8] sm:$0xff]
        %v621 = vld [vmem:[#allocation2 + $0x10] sm:$0xff]
        %v622 = vld [vmem:[#allocation2 + $0x18] sm:$0xff]
        %v623 = vsel %vm434, %v476, -inf
        %624 = vmax.xlane.f32.xlu0 %v623
        %v625 = vpop.xlane.xlu0 %624
        %v626 = vsel %vm434, %v522, -inf
        %627 = vmax.xlane.f32.xlu0 %v626
        %v628 = vpop.xlane.xlu0 %627
        %v629 = vsel %vm434, %v568, -inf
        %630 = vmax.xlane.f32.xlu0 %v629
        %v631 = vpop.xlane.xlu0 %630
        %v632 = vsel %vm434, %v614, -inf
        %633 = vmax.xlane.f32.xlu0 %v632
        %v634 = vpop.xlane.xlu0 %633
        %v635 = vmax.f32 %v619, %v625
        %v636 = vmax.f32 %v620, %v628
        %v637 = vmax.f32 %v621, %v631
        %v638 = vmax.f32 %v622, %v634
        %v639 = vsub.f32 %v619, %v635
        %v640 = vsub.f32 %v620, %v636
        %v641 = vsub.f32 %v621, %v637
        %v642 = vsub.f32 %v622, %v638
        %v643 = vmul.f32 %v639, 1.442695
        %v644 = vpow.pop %v643
        %v645 = vmul.f32 %v640, 1.442695
        %v646 = vpow.pop %v645
        %v647 = vmul.f32 %v641, 1.442695
        %v648 = vpow.pop %v647
        %v649 = vmul.f32 %v642, 1.442695
        %v650 = vpow.pop %v649
        %652 = vset.pattern.permute.xlu0 0
        %653 = vperm.xlu0 %652, %v635
        %v654 = vpop.permute.xlu0 %653
        %657 = vset.pattern.permute.xlu0 0
        %658 = vperm.xlu0 %657, %v636
        %v659 = vpop.permute.xlu0 %658
        %662 = vset.pattern.permute.xlu0 0
        %663 = vperm.xlu0 %662, %v637
        %v664 = vpop.permute.xlu0 %663
        %667 = vset.pattern.permute.xlu0 0
        %668 = vperm.xlu0 %667, %v638
        %v669 = vpop.permute.xlu0 %668
        %v671 = vsub.f32 %v476, %v654
        %v672 = vsub.f32 %v522, %v659
        %v673 = vsub.f32 %v568, %v664
        %v674 = vsub.f32 %v614, %v669
        %v675 = vmul.f32 %v671, 1.442695
        %v676 = vpow.pop %v675
        %v677 = vmul.f32 %v672, 1.442695
        %v678 = vpow.pop %v677
        %v679 = vmul.f32 %v673, 1.442695
        %v680 = vpow.pop %v679
        %v681 = vmul.f32 %v674, 1.442695
        %v682 = vpow.pop %v681
        %v683 = vld [vmem:[#allocation3] sm:$0xff]
        %v684 = vld [vmem:[#allocation3 + $0x8] sm:$0xff]
        %v685 = vld [vmem:[#allocation3 + $0x10] sm:$0xff]
        %v686 = vld [vmem:[#allocation3 + $0x18] sm:$0xff]
        %v687 = vmul.f32 %v644, %v683
        %v688 = vmul.f32 %v646, %v684
        %v689 = vmul.f32 %v648, %v685
        %v690 = vmul.f32 %v650, %v686
        %v691 = vsel %vm434, %v676, 0.0
        %692 = vadd.xlane.f32.xlu0 %v691
        %v693 = vpop.xlane.xlu0 %692
        %v694 = vsel %vm434, %v678, 0.0
        %695 = vadd.xlane.f32.xlu0 %v694
        %v696 = vpop.xlane.xlu0 %695
        %v697 = vsel %vm434, %v680, 0.0
        %698 = vadd.xlane.f32.xlu0 %v697
        %v699 = vpop.xlane.xlu0 %698
        %v700 = vsel %vm434, %v682, 0.0
        %701 = vadd.xlane.f32.xlu0 %v700
        %v702 = vpop.xlane.xlu0 %701
        %v703 = vadd.f32 %v687, %v693
        %v704 = vadd.f32 %v688, %v696
        %v705 = vadd.f32 %v689, %v699
        %v706 = vadd.f32 %v690, %v702
        %vm707 = vcmask 7168
        %708 = vst.msk [vmem:[#allocation3] sm:$0xff] %vm707, %v703
        %709 = vst.msk [vmem:[#allocation3 + $0x8] sm:$0xff] %vm707, %v704
        %710 = vst.msk [vmem:[#allocation3 + $0x10] sm:$0xff] %vm707, %v705
        %711 = vst.msk [vmem:[#allocation3 + $0x18] sm:$0xff] %vm707, %v706
        %v712 = vld [vmem:[#allocation4] sm:$0xff]
        %v713 = vld [vmem:[#allocation4 + $0x8] sm:$0xff]
        %v714 = vld [vmem:[#allocation4 + $0x10] sm:$0xff]
        %v715 = vld [vmem:[#allocation4 + $0x18] sm:$0xff]
        %717 = vset.pattern.permute.xlu0 0
        %718 = vperm.xlu0 %717, %v644
        %v719 = vpop.permute.xlu0 %718
        %722 = vset.pattern.permute.xlu0 0
        %723 = vperm.xlu0 %722, %v646
        %v724 = vpop.permute.xlu0 %723
        %727 = vset.pattern.permute.xlu0 0
        %728 = vperm.xlu0 %727, %v648
        %v729 = vpop.permute.xlu0 %728
        %732 = vset.pattern.permute.xlu0 0
        %733 = vperm.xlu0 %732, %v650
        %v734 = vpop.permute.xlu0 %733
        %v736 = vmul.f32 %v719, %v712
        %v737 = vmul.f32 %v724, %v713
        %v738 = vmul.f32 %v729, %v714
        %v739 = vmul.f32 %v734, %v715
        %v740 = vpack.c.bf16 %v676, %v676
        %v741 = vpack.c.bf16 %v678, %v678
        %v742 = vpack.c.bf16 %v680, %v680
        %v743 = vpack.c.bf16 %v682, %v682
        %v745 = vsel %vm434, %v740, 0
        %vm747 = vcmask 1043456
        %v749 = vsel %vm747, %v430, 0
        %751 = vmatprep.subr.bf16.mxu0 0
        %752 = vmatpush1.bf16.msra.mxu0 0
        %753 = vmatprep.subr.bf16.mxu0 0
        %754 = vmatpush1.bf16.msra.mxu0 0
        %755 = vmatprep.subr.bf16.mxu0 0
        %756 = vmatpush1.bf16.msra.mxu0 0
        %757 = vmatprep.subr.bf16.mxu0 0
        %758 = vmatpush1.bf16.msra.mxu0 0
        %759 = vmatprep.subr.bf16.mxu0 0
        %760 = vmatpush1.bf16.msra.mxu0 0
        %761 = vmatprep.subr.bf16.mxu0 0
        %762 = vmatpush1.bf16.msra.mxu0 0
        %763 = vmatprep.subr.bf16.mxu0 0
        %764 = vmatpush1.bf16.msra.mxu0 0
        %765 = vmatprep.subr.bf16.mxu0 0
        %766 = vmatpush1.bf16.msra.mxu0 %v749
        %767 = vmatprep.subr.bf16.mxu0 0
        %768 = vmatpush2.bf16.msra.mxu0 0
        %769 = vmatprep.subr.bf16.mxu0 0
        %770 = vmatpush2.bf16.msra.mxu0 0
        %771 = vmatprep.subr.bf16.mxu0 0
        %772 = vmatpush2.bf16.msra.mxu0 0
        %773 = vmatprep.subr.bf16.mxu0 0
        %774 = vmatpush2.bf16.msra.mxu0 0
        %775 = vmatprep.subr.bf16.mxu0 0
        %776 = vmatpush2.bf16.msra.mxu0 0
        %777 = vmatprep.subr.bf16.mxu0 0
        %778 = vmatpush2.bf16.msra.mxu0 0
        %779 = vmatprep.subr.bf16.mxu0 0
        %780 = vmatpush2.bf16.msra.mxu0 0
        %781 = vmatprep.subr.bf16.mxu0 0
        %782 = vmatpush2.bf16.msra.mxu0 0
        %783 = vmatprep.mubr.bf16.mxu0 0
        %784 = vmatmul.mubr.bf16.gmra.mxu0 %v745
        %v785 = vpop.f32.mrf.mxu0
        %v786 = vadd.f32 0.0, %v785
        %v787 = vpop.f32.mrf.mxu0
        %v788 = vpop.f32.mrf.mxu0
        %v789 = vpop.f32.mrf.mxu0
        %790 = vdwg.mxu0
        %v792 = vsel %vm434, %v741, 0
        %v795 = vsel %vm747, %v431, 0
        %797 = vmatprep.subr.bf16.mxu0 0
        %798 = vmatpush1.bf16.msra.mxu0 0
        %799 = vmatprep.subr.bf16.mxu0 0
        %800 = vmatpush1.bf16.msra.mxu0 0
        %801 = vmatprep.subr.bf16.mxu0 0
        %802 = vmatpush1.bf16.msra.mxu0 0
        %803 = vmatprep.subr.bf16.mxu0 0
        %804 = vmatpush1.bf16.msra.mxu0 0
        %805 = vmatprep.subr.bf16.mxu0 0
        %806 = vmatpush1.bf16.msra.mxu0 0
        %807 = vmatprep.subr.bf16.mxu0 0
        %808 = vmatpush1.bf16.msra.mxu0 0
        %809 = vmatprep.subr.bf16.mxu0 0
        %810 = vmatpush1.bf16.msra.mxu0 0
        %811 = vmatprep.subr.bf16.mxu0 0
        %812 = vmatpush1.bf16.msra.mxu0 %v795
        %813 = vmatprep.subr.bf16.mxu0 0
        %814 = vmatpush2.bf16.msra.mxu0 0
        %815 = vmatprep.subr.bf16.mxu0 0
        %816 = vmatpush2.bf16.msra.mxu0 0
        %817 = vmatprep.subr.bf16.mxu0 0
        %818 = vmatpush2.bf16.msra.mxu0 0
        %819 = vmatprep.subr.bf16.mxu0 0
        %820 = vmatpush2.bf16.msra.mxu0 0
        %821 = vmatprep.subr.bf16.mxu0 0
        %822 = vmatpush2.bf16.msra.mxu0 0
        %823 = vmatprep.subr.bf16.mxu0 0
        %824 = vmatpush2.bf16.msra.mxu0 0
        %825 = vmatprep.subr.bf16.mxu0 0
        %826 = vmatpush2.bf16.msra.mxu0 0
        %827 = vmatprep.subr.bf16.mxu0 0
        %828 = vmatpush2.bf16.msra.mxu0 0
        %829 = vmatprep.mubr.bf16.mxu0 0
        %830 = vmatmul.mubr.bf16.gmra.mxu0 %v792
        %v831 = vpop.f32.mrf.mxu0
        %v832 = vadd.f32 0.0, %v831
        %v833 = vpop.f32.mrf.mxu0
        %v834 = vpop.f32.mrf.mxu0
        %v835 = vpop.f32.mrf.mxu0
        %836 = vdwg.mxu0
        %v838 = vsel %vm434, %v742, 0
        %v841 = vsel %vm747, %v432, 0
        %843 = vmatprep.subr.bf16.mxu0 0
        %844 = vmatpush1.bf16.msra.mxu0 0
        %845 = vmatprep.subr.bf16.mxu0 0
        %846 = vmatpush1.bf16.msra.mxu0 0
        %847 = vmatprep.subr.bf16.mxu0 0
        %848 = vmatpush1.bf16.msra.mxu0 0
        %849 = vmatprep.subr.bf16.mxu0 0
        %850 = vmatpush1.bf16.msra.mxu0 0
        %851 = vmatprep.subr.bf16.mxu0 0
        %852 = vmatpush1.bf16.msra.mxu0 0
        %853 = vmatprep.subr.bf16.mxu0 0
        %854 = vmatpush1.bf16.msra.mxu0 0
        %855 = vmatprep.subr.bf16.mxu0 0
        %856 = vmatpush1.bf16.msra.mxu0 0
        %857 = vmatprep.subr.bf16.mxu0 0
        %858 = vmatpush1.bf16.msra.mxu0 %v841
        %859 = vmatprep.subr.bf16.mxu0 0
        %860 = vmatpush2.bf16.msra.mxu0 0
        %861 = vmatprep.subr.bf16.mxu0 0
        %862 = vmatpush2.bf16.msra.mxu0 0
        %863 = vmatprep.subr.bf16.mxu0 0
        %864 = vmatpush2.bf16.msra.mxu0 0
        %865 = vmatprep.subr.bf16.mxu0 0
        %866 = vmatpush2.bf16.msra.mxu0 0
        %867 = vmatprep.subr.bf16.mxu0 0
        %868 = vmatpush2.bf16.msra.mxu0 0
        %869 = vmatprep.subr.bf16.mxu0 0
        %870 = vmatpush2.bf16.msra.mxu0 0
        %871 = vmatprep.subr.bf16.mxu0 0
        %872 = vmatpush2.bf16.msra.mxu0 0
        %873 = vmatprep.subr.bf16.mxu0 0
        %874 = vmatpush2.bf16.msra.mxu0 0
        %875 = vmatprep.mubr.bf16.mxu0 0
        %876 = vmatmul.mubr.bf16.gmra.mxu0 %v838
        %v877 = vpop.f32.mrf.mxu0
        %v878 = vadd.f32 0.0, %v877
        %v879 = vpop.f32.mrf.mxu0
        %v880 = vpop.f32.mrf.mxu0
        %v881 = vpop.f32.mrf.mxu0
        %882 = vdwg.mxu0
        %v884 = vsel %vm434, %v743, 0
        %v887 = vsel %vm747, %v433, 0
        %889 = vmatprep.subr.bf16.mxu0 0
        %890 = vmatpush1.bf16.msra.mxu0 0
        %891 = vmatprep.subr.bf16.mxu0 0
        %892 = vmatpush1.bf16.msra.mxu0 0
        %893 = vmatprep.subr.bf16.mxu0 0
        %894 = vmatpush1.bf16.msra.mxu0 0
        %895 = vmatprep.subr.bf16.mxu0 0
        %896 = vmatpush1.bf16.msra.mxu0 0
        %897 = vmatprep.subr.bf16.mxu0 0
        %898 = vmatpush1.bf16.msra.mxu0 0
        %899 = vmatprep.subr.bf16.mxu0 0
        %900 = vmatpush1.bf16.msra.mxu0 0
        %901 = vmatprep.subr.bf16.mxu0 0
        %902 = vmatpush1.bf16.msra.mxu0 0
        %903 = vmatprep.subr.bf16.mxu0 0
        %904 = vmatpush1.bf16.msra.mxu0 %v887
        %905 = vmatprep.subr.bf16.mxu0 0
        %906 = vmatpush2.bf16.msra.mxu0 0
        %907 = vmatprep.subr.bf16.mxu0 0
        %908 = vmatpush2.bf16.msra.mxu0 0
        %909 = vmatprep.subr.bf16.mxu0 0
        %910 = vmatpush2.bf16.msra.mxu0 0
        %911 = vmatprep.subr.bf16.mxu0 0
        %912 = vmatpush2.bf16.msra.mxu0 0
        %913 = vmatprep.subr.bf16.mxu0 0
        %914 = vmatpush2.bf16.msra.mxu0 0
        %915 = vmatprep.subr.bf16.mxu0 0
        %916 = vmatpush2.bf16.msra.mxu0 0
        %917 = vmatprep.subr.bf16.mxu0 0
        %918 = vmatpush2.bf16.msra.mxu0 0
        %919 = vmatprep.subr.bf16.mxu0 0
        %920 = vmatpush2.bf16.msra.mxu0 0
        %921 = vmatprep.mubr.bf16.mxu0 0
        %922 = vmatmul.mubr.bf16.gmra.mxu0 %v884
        %v923 = vpop.f32.mrf.mxu0
        %v924 = vadd.f32 0.0, %v923
        %v925 = vpop.f32.mrf.mxu0
        %v926 = vpop.f32.mrf.mxu0
        %v927 = vpop.f32.mrf.mxu0
        %928 = vdwg.mxu0
        %v929 = vadd.f32 %v736, %v786
        %v930 = vadd.f32 %v737, %v832
        %v931 = vadd.f32 %v738, %v878
        %v932 = vadd.f32 %v739, %v924
        %933 = vst.msk [vmem:[#allocation4] sm:$0xff] %vm434, %v929
        %934 = vst.msk [vmem:[#allocation4 + $0x8] sm:$0xff] %vm434, %v930
        %935 = vst.msk [vmem:[#allocation4 + $0x10] sm:$0xff] %vm434, %v931
        %936 = vst.msk [vmem:[#allocation4 + $0x18] sm:$0xff] %vm434, %v932
        %937 = vst.msk [vmem:[#allocation2] sm:$0xff] %vm707, %v635
        %938 = vst.msk [vmem:[#allocation2 + $0x8] sm:$0xff] %vm707, %v636
        %939 = vst.msk [vmem:[#allocation2 + $0x10] sm:$0xff] %vm707, %v637
        %940 = vst.msk [vmem:[#allocation2 + $0x18] sm:$0xff] %vm707, %v638
        %p941 = scmp.eq.s32.totalorder %s21, 1
        // Predicated region
        $region160: #{memory_efficient_attention.4} parent=142 // pred_check
          %p942 = pneg %p941
        $region161: #{memory_efficient_attention.4} parent=142 // pred_check_branch
          %944 = sbr.rel (%p942) target = $region163
        $region162: #{memory_efficient_attention.4} parent=142 // pred_region
          %v945 = vld [vmem:[#allocation4] sm:$0xff]
          %v946 = vld [vmem:[#allocation4 + $0x8] sm:$0xff]
          %v947 = vld [vmem:[#allocation4 + $0x10] sm:$0xff]
          %v948 = vld [vmem:[#allocation4 + $0x18] sm:$0xff]
          %v949 = vld [vmem:[#allocation3] sm:$0xff]
          %v950 = vld [vmem:[#allocation3 + $0x8] sm:$0xff]
          %v951 = vld [vmem:[#allocation3 + $0x10] sm:$0xff]
          %v952 = vld [vmem:[#allocation3 + $0x18] sm:$0xff]
          %v953 = vrcp.pop %v949
          %v954 = vrcp.pop %v950
          %v955 = vrcp.pop %v951
          %v956 = vrcp.pop %v952
          %958 = vset.pattern.permute.xlu0 0
          %959 = vperm.xlu0 %958, %v953
          %v960 = vpop.permute.xlu0 %959
          %963 = vset.pattern.permute.xlu0 0
          %964 = vperm.xlu0 %963, %v954
          %v965 = vpop.permute.xlu0 %964
          %968 = vset.pattern.permute.xlu0 0
          %969 = vperm.xlu0 %968, %v955
          %v970 = vpop.permute.xlu0 %969
          %973 = vset.pattern.permute.xlu0 0
          %974 = vperm.xlu0 %973, %v956
          %v975 = vpop.permute.xlu0 %974
          %v977 = vmul.f32 %v945, %v960
          %v978 = vmul.f32 %v946, %v965
          %v979 = vmul.f32 %v947, %v970
          %v980 = vmul.f32 %v948, %v975
          %v981 = vpack.c.bf16 %v977, %v977
          %v982 = vpack.c.bf16 %v978, %v978
          %v983 = vpack.c.bf16 %v979, %v979
          %v984 = vpack.c.bf16 %v980, %v980
          %vm985 = vcmask 60416
          %986 = vst.msk [vmem:[%s402] sm:$0xf] %vm985, %v981
          %987 = vst.msk [vmem:[%s402 + $0x4] sm:$0xf] %vm985, %v982
          %988 = vst.msk [vmem:[%s402 + $0x8] sm:$0xf] %vm985, %v983
          %989 = vst.msk [vmem:[%s402 + $0xc] sm:$0xf] %vm985, %v984
        $region163: #{memory_efficient_attention.4} parent=142 // pred_fallthru
          _
        %s990 = sand.u32 %s127, 1
        %s991 = sand.u32 %s127, 1
        %s992 = smul.addr %s991, 16
        %s993 = scalar_lea.vmem [#allocation8], %s992
        // Predicated region
        $region164: #{memory_efficient_attention.4} parent=142 // pred_check
          %p994 = pneg %p137
        $region165: #{memory_efficient_attention.4} parent=142 // pred_check_branch
          %996 = sbr.rel (%p994) target = $region167
        $region166: #{memory_efficient_attention.4} parent=142 // pred_region
          %s997 = smul.addr %s19, 8
          %s998 = sadd.s32 %s20, %s997
          %s999 = smul.addr %s998, 4
          %s1000 = scalar_lea.vmem %s3, %s999
          // Predicated region
          $region168: #{memory_efficient_attention.4} parent=166 // pred_check
            _
          $region169: #{memory_efficient_attention.4} parent=166 // pred_check_branch
            %1002 = sbr.rel (0) target = $region171
          $region170: #{memory_efficient_attention.4} parent=166 // pred_region
            // Predicated region
            $region172: #{memory_efficient_attention.4} parent=170 // pred_check
              _
            $region173: #{memory_efficient_attention.4} parent=170 // pred_check_branch
              %1004 = sbr.rel target = $region175
            $region174: #{memory_efficient_attention.4} parent=170 // pred_region
              // Predicated region
              $region187: #{memory_efficient_attention.4} parent=174 // pred_check
                _
              $region188: #{memory_efficient_attention.4} parent=174 // pred_check_branch
                %1026 = sbr.rel (0) target = $region190
              $region189: #{memory_efficient_attention.4} parent=174 // pred_region
                loop: start=0, step=1, limit=1
                $region191: #{memory_efficient_attention.4} parent=189 // loop_pre_header
                  _
                $region192: #{memory_efficient_attention.4} parent=189 // loop_header
                  %s1028 = sphi 0, %s1032
                  %p1029 = scmp.ge.s32.totalorder %s1028, 1
                  %s1033 = sphi %s993, %s993
                  %s1034 = sphi %s1000, %s1000
                $region193: #{memory_efficient_attention.4} parent=189 // loop_header_branch
                  %1031 = sbr.rel (%p1029) target = $region197
                $region194: #{memory_efficient_attention.4} parent=189 // loop_body
                  _
                $region195: #{memory_efficient_attention.4} parent=189 // loop_footer
                  %s1032 = sadd.s32 1, %s1028
                $region196: #{memory_efficient_attention.4} parent=189 // loop_footer_branch
                  %1027 = sbr.rel target = $region192
                $region197: #{memory_efficient_attention.4} parent=189 // loop_exit
                  _
                %s1036 = ssub.s32 16, 1
                loop: start=0, step=1, limit=1
                $region198: #{memory_efficient_attention.4} parent=189 // loop_pre_header
                  _
                $region199: #{memory_efficient_attention.4} parent=189 // loop_header
                  %s1038 = sphi 0, %s1042
                  %p1039 = scmp.ge.s32.totalorder %s1038, 1
                  %s1043 = sphi %s993, %s993
                  %s1044 = sphi %s1000, %s1000
                $region200: #{memory_efficient_attention.4} parent=189 // loop_header_branch
                  %1041 = sbr.rel (%p1039) target = $region204
                $region201: #{memory_efficient_attention.4} parent=189 // loop_body
                  %v1045 = vld [vmem:[%s1043] sm:%s1036]
                  %1046 = vst [vmem:[%s1044] sm:%s1036] %v1045
                  %v1047 = vld [vmem:[%s1043 + $0x4] sm:%s1036]
                  %1048 = vst [vmem:[%s1044 + $0x8] sm:%s1036] %v1047
                  %v1049 = vld [vmem:[%s1043 + $0x8] sm:%s1036]
                  %1050 = vst [vmem:[%s1044 + $0x10] sm:%s1036] %v1049
                  %v1051 = vld [vmem:[%s1043 + $0xc] sm:%s1036]
                  %1052 = vst [vmem:[%s1044 + $0x18] sm:%s1036] %v1051
                $region202: #{memory_efficient_attention.4} parent=189 // loop_footer
                  %s1042 = sadd.s32 1, %s1038
                $region203: #{memory_efficient_attention.4} parent=189 // loop_footer_branch
                  %1037 = sbr.rel target = $region199
                $region204: #{memory_efficient_attention.4} parent=189 // loop_exit
                  _
              $region190: #{memory_efficient_attention.4} parent=174 // pred_fallthru
                _
            $region175: #{memory_efficient_attention.4} parent=170 // pred_fallthru
              _
            // Predicated region
            $region176: #{memory_efficient_attention.4} parent=170 // pred_check
              _
            $region177: #{memory_efficient_attention.4} parent=170 // pred_check_branch
              %1006 = sbr.rel (0) target = $region179
            $region178: #{memory_efficient_attention.4} parent=170 // pred_region
              %s1008 = ssub.s32 16, 1
              loop: start=0, step=1, limit=1
              $region180: #{memory_efficient_attention.4} parent=178 // loop_pre_header
                _
              $region181: #{memory_efficient_attention.4} parent=178 // loop_header
                %s1010 = sphi 0, %s1014
                %p1011 = scmp.ge.s32.totalorder %s1010, 1
                %s1015 = sphi %s993, %s993
                %s1016 = sphi %s1000, %s1000
              $region182: #{memory_efficient_attention.4} parent=178 // loop_header_branch
                %1013 = sbr.rel (%p1011) target = $region186
              $region183: #{memory_efficient_attention.4} parent=178 // loop_body
                %v1017 = vld [vmem:[%s1015] sm:%s1008]
                %1018 = vst [vmem:[%s1016] sm:%s1008] %v1017
                %v1019 = vld [vmem:[%s1015 + $0x4] sm:%s1008]
                %1020 = vst [vmem:[%s1016 + $0x8] sm:%s1008] %v1019
                %v1021 = vld [vmem:[%s1015 + $0x8] sm:%s1008]
                %1022 = vst [vmem:[%s1016 + $0x10] sm:%s1008] %v1021
                %v1023 = vld [vmem:[%s1015 + $0xc] sm:%s1008]
                %1024 = vst [vmem:[%s1016 + $0x18] sm:%s1008] %v1023
              $region184: #{memory_efficient_attention.4} parent=178 // loop_footer
                %s1014 = sadd.s32 1, %s1010
              $region185: #{memory_efficient_attention.4} parent=178 // loop_footer_branch
                %1009 = sbr.rel target = $region181
              $region186: #{memory_efficient_attention.4} parent=178 // loop_exit
                _
            $region179: #{memory_efficient_attention.4} parent=170 // pred_fallthru
              _
          $region171: #{memory_efficient_attention.4} parent=166 // pred_fallthru
            _
          %1053 = vnop
        $region167: #{memory_efficient_attention.4} parent=142 // pred_fallthru
          _
      $region143: #{memory_efficient_attention.4} parent=5 // pred_fallthru
        _
      %p1054 = scmp.le.s32.totalorder 2, %s9
      // Predicated region
      $region205: #{memory_efficient_attention.4} parent=5 // pred_check
        %p1055 = pneg %p1054
      $region206: #{memory_efficient_attention.4} parent=5 // pred_check_branch
        %1057 = sbr.rel (%p1055) target = $region208
      $region207: #{memory_efficient_attention.4} parent=5 // pred_region
        %s1058 = ssub.s32 %s9, 2
        // Predicated region
        $region209: #{memory_efficient_attention.4} parent=207 // pred_check
          %p1059 = pneg %p143
        $region210: #{memory_efficient_attention.4} parent=207 // pred_check_branch
          %1061 = sbr.rel (%p1059) target = $region212
        $region211: #{memory_efficient_attention.4} parent=207 // pred_region
          %s1062 = sand.u32 %s128, 1
          %s1063 = sand.u32 %s128, 1
          %s1064 = smul.addr %s1063, 16
          %s1065 = scalar_lea.vmem [#allocation8], %s1064
        $region212: #{memory_efficient_attention.4} parent=207 // pred_fallthru
          _
      $region208: #{memory_efficient_attention.4} parent=5 // pred_fallthru
        _
    $region6: #{memory_efficient_attention.4} parent=1 // loop_footer
      %s13 = sadd.s32 1, %s9
    $region7: #{memory_efficient_attention.4} parent=1 // loop_footer_branch
      %8 = sbr.rel target = $region3
    $region8: #{memory_efficient_attention.4} parent=1 // loop_exit
      _

</llo_original>
